<compile_context>
chip_gen: v6e
topology: v6e:2x2x1
jax: 0.10.0
libtpu: 0.0.40
codegen_flags: <defaults>
</compile_context>

<pallas_src>
import jax
import jax.numpy as jnp
from jax.experimental import pallas as pl
from jax.experimental.pallas import tpu as pltpu

EPS = 1e-5


def _fused_kernel(x_ref, w1_ref, gamma_ref, beta_ref, w2_ref, o_ref):
    # x_ref:     (C_in, S)       S = N*H*W   (spatial on the lane axis)
    # w1_ref:    (C_mid, C_in)
    # gamma_ref: (C_mid, 1)
    # beta_ref:  (C_mid, 1)
    # w2_ref:    (T_out, C_mid)  one tile of the output channels (T_out == C_out by default)
    # o_ref:     (T_out, S)
    x = x_ref[...]

    # conv2d63: 1x1 conv == channel matmul on the MXU, stays in (C, S) layout.
    h = jnp.dot(w1_ref[...], x, preferred_element_type=jnp.float32)      # (C_mid, S)

    # batchnorm2d37: training-mode batch statistics over the spatial/lane axis,
    # one-pass form so only a single full (C_mid, S) VPU pass (h*h) is needed.
    inv_s = 1.0 / h.shape[1]                                             # true 1/(N*H*W)
    mean = jnp.sum(h, axis=1, keepdims=True) * inv_s                     # (C_mid, 1)
    e_h2 = jnp.sum(h * h, axis=1, keepdims=True) * inv_s                 # (C_mid, 1)
    var = e_h2 - mean * mean
    scale = jax.lax.rsqrt(var + EPS) * gamma_ref[...]                    # (C_mid, 1), EUP rsqrt
    shift = beta_ref[...] - scale * mean                                 # (C_mid, 1)

    # conv2d64 with the BN affine folded in:
    #   o = w2 @ (scale*h + shift) = (w2 * scale^T) @ h + (w2 @ shift)
    w2 = w2_ref[...]                                                     # (T_out, C_mid)
    w2_eff = w2 * scale.T                                                # tiny (T_out, C_mid) elementwise
    bias = jnp.dot(w2, shift, preferred_element_type=jnp.float32)        # (T_out, 1) matvec
    o_ref[...] = jnp.dot(w2_eff, h, preferred_element_type=jnp.float32) + bias


def fused_forward(x_nchw, w1, gamma, beta, w2, *, n_out_tiles=1):
    """x_nchw: (N, 528, H, W) f32; w1: (120, 528); w2: (720, 120); gamma/beta: (120,).

    n_out_tiles=1 (default): single grid step, no recompute — best on v5e/v6e.
    n_out_tiles=2: output channels split "parallel" across v7x's two TensorCores
    (first matmul + BN stats recomputed per tile; correct, benchmark vs. 1).
    """
    n, c_in, hh, ww = x_nchw.shape
    c_mid = w1.shape[0]
    c_out = w2.shape[0]
    s = n * hh * ww

    # NCHW with N == 1 flattens to (C_in, H*W) for free (pure reshape, no copy).
    if n == 1:
        x_cs = x_nchw.reshape(c_in, s)
    else:
        x_cs = jnp.transpose(x_nchw, (1, 0, 2, 3)).reshape(c_in, s)

    gamma2 = gamma.reshape(c_mid, 1)
    beta2 = beta.reshape(c_mid, 1)

    assert c_out % n_out_tiles == 0
    t_out = c_out // n_out_tiles
    assert t_out == c_out or t_out % 8 == 0

    # Advisory cost estimate (kernel is ~1 us; helps XLA overlap neighbours).
    flops = 2 * s * c_mid * (c_in + c_out) + 2 * c_out * c_mid + 6 * c_mid * s
    bytes_accessed = 4 * (c_in * s + c_mid * c_in + 2 * c_mid + c_out * c_mid + c_out * s)

    # TODO(synk): if n_out_tiles > 1 is used in production, mark the invariant
    # inputs (x, w1, gamma, beta) with pipeline_mode=pl.Buffered(1) and verify in
    # the Mosaic dump that they are not re-DMAed on later steps.
    out_cs = pl.pallas_call(
        _fused_kernel,
        out_shape=jax.ShapeDtypeStruct((c_out, s), jnp.float32),
        grid=(n_out_tiles,),
        in_specs=[
            pl.BlockSpec((c_in, s), lambda t: (0, 0)),       # x, full block
            pl.BlockSpec((c_mid, c_in), lambda t: (0, 0)),   # w1, full block
            pl.BlockSpec((c_mid, 1), lambda t: (0, 0)),      # gamma
            pl.BlockSpec((c_mid, 1), lambda t: (0, 0)),      # beta
            pl.BlockSpec((t_out, c_mid), lambda t: (t, 0)),  # w2 tile
        ],
        out_specs=pl.BlockSpec((t_out, s), lambda t: (t, 0)),
        compiler_params=pltpu.CompilerParams(
            dimension_semantics=("parallel",)),
        cost_estimate=pl.CostEstimate(
            flops=int(flops), transcendentals=int(c_mid),
            bytes_accessed=int(bytes_accessed)),
    )(x_cs, w1, gamma2, beta2, w2)

    if n == 1:
        return out_cs.reshape(1, c_out, hh, ww)
    return jnp.transpose(out_cs.reshape(c_out, n, hh, ww), (1, 0, 2, 3))


def reference_forward(x_nchw, w1, gamma, beta, w2):
    """Plain-JAX reference mirroring PyTorch training-mode BN semantics."""
    h1 = jnp.einsum("nchw,oc->nohw", x_nchw, w1)
    mean = jnp.mean(h1, axis=(0, 2, 3), keepdims=True)
    var = jnp.mean((h1 - mean) ** 2, axis=(0, 2, 3), keepdims=True)
    hn = (h1 - mean) / jnp.sqrt(var + EPS)
    hn = hn * gamma[None, :, None, None] + beta[None, :, None, None]
    return jnp.einsum("nchw,oc->nohw", hn, w2)


if __name__ == "__main__":
    key = jax.random.PRNGKey(0)
    kx, k1, k2, kg = jax.random.split(key, 4)

    N, C_IN, H, W = 1, 528, 14, 14
    C_MID, C_OUT = 120, 720

    x = jax.random.normal(kx, (N, C_IN, H, W), dtype=jnp.float32)
    # Deterministic "He-like" init for the 1x1 conv weights.
    w1 = jax.random.normal(k1, (C_MID, C_IN), dtype=jnp.float32) * (1.0 / jnp.sqrt(C_IN))
    w2 = jax.random.normal(k2, (C_OUT, C_MID), dtype=jnp.float32) * (1.0 / jnp.sqrt(C_MID))
    # BatchNorm affine params (perturb gamma a bit to exercise the scale path).
    gamma = jnp.ones((C_MID,), dtype=jnp.float32) + 0.1 * jax.random.normal(kg, (C_MID,), dtype=jnp.float32)
    beta = jnp.zeros((C_MID,), dtype=jnp.float32)

    out = jax.block_until_ready(fused_forward(x, w1, gamma, beta, w2))
    ref = jax.block_until_ready(reference_forward(x, w1, gamma, beta, w2))

    assert out.shape == (N, C_OUT, H, W), out.shape
    assert jnp.allclose(out, ref, atol=2e-3, rtol=2e-3), float(jnp.max(jnp.abs(out - ref)))
    print("KERNEL_OK")
</pallas_src>

<mosaic_0001>
module attributes {stable_mosaic.version = 11 : i64} {
  func.func @_fused_kernel(%arg0: i32, %arg1: memref<528x196xf32, #tpu.memory_space<vmem>>, %arg2: memref<120x528xf32, #tpu.memory_space<vmem>>, %arg3: memref<120x1xf32, #tpu.memory_space<vmem>>, %arg4: memref<120x1xf32, #tpu.memory_space<vmem>>, %arg5: memref<720x120xf32, #tpu.memory_space<vmem>>, %arg6: memref<720x196xf32, #tpu.memory_space<vmem>>) attributes {dimension_semantics = [#tpu.dimension_semantics<parallel>], iteration_bounds = array<i64: 1>, scalar_prefetch = 0 : i64, scratch_operands = 0 : i64, tpu.core_type = #tpu.core_type<tc>, window_params = [{pipeline_mode = #tpu.pipeline_mode<synchronous>, transform_indices = @transform_0, window_bounds = array<i64: 528, 196>}, {pipeline_mode = #tpu.pipeline_mode<synchronous>, transform_indices = @transform_1, window_bounds = array<i64: 120, 528>}, {pipeline_mode = #tpu.pipeline_mode<synchronous>, transform_indices = @transform_2, window_bounds = array<i64: 120, 1>}, {pipeline_mode = #tpu.pipeline_mode<synchronous>, transform_indices = @transform_3, window_bounds = array<i64: 120, 1>}, {transform_indices = @transform_4, window_bounds = array<i64: 720, 120>}, {transform_indices = @transform_5, window_bounds = array<i64: 720, 196>}]} {
    %c0 = arith.constant 0 : index
    %c0_0 = arith.constant 0 : index
    %0 = vector.load %arg1[%c0, %c0_0] : memref<528x196xf32, #tpu.memory_space<vmem>>, vector<528x196xf32>
    %c0_1 = arith.constant 0 : index
    %c0_2 = arith.constant 0 : index
    %1 = vector.load %arg2[%c0_1, %c0_2] : memref<120x528xf32, #tpu.memory_space<vmem>>, vector<120x528xf32>
    %cst = arith.constant dense<0.000000e+00> : vector<120x196xf32>
    %2 = tpu.matmul %1, %0, %cst {dimension_numbers = #tpu.dot_dimension_numbers<[1], [0], [0], [1], [0, 0, 1, 1], [], []>} : vector<120x528xf32>, vector<528x196xf32>, vector<120x196xf32> -> vector<120x196xf32>
    %cst_3 = arith.constant dense<0.000000e+00> : vector<120xf32>
    %3 = vector.multi_reduction <add>, %2, %cst_3 [1] : vector<120x196xf32> to vector<120xf32>
    %4 = vector.shape_cast %3 : vector<120xf32> to vector<120x1xf32>
    %cst_4 = arith.constant 0.00510204071 : f32
    %5 = vector.broadcast %cst_4 : f32 to vector<120x1xf32>
    %6 = arith.mulf %4, %5 : vector<120x1xf32>
    %7 = arith.mulf %2, %2 : vector<120x196xf32>
    %cst_5 = arith.constant dense<0.000000e+00> : vector<120xf32>
    %8 = vector.multi_reduction <add>, %7, %cst_5 [1] : vector<120x196xf32> to vector<120xf32>
    %9 = vector.shape_cast %8 : vector<120xf32> to vector<120x1xf32>
    %cst_6 = arith.constant 0.00510204071 : f32
    %10 = vector.broadcast %cst_6 : f32 to vector<120x1xf32>
    %11 = arith.mulf %9, %10 : vector<120x1xf32>
    %12 = arith.mulf %6, %6 : vector<120x1xf32>
    %13 = arith.subf %11, %12 : vector<120x1xf32>
    %cst_7 = arith.constant 9.99999974E-6 : f32
    %14 = vector.broadcast %cst_7 : f32 to vector<120x1xf32>
    %15 = arith.addf %13, %14 : vector<120x1xf32>
    %16 = math.rsqrt %15 : vector<120x1xf32>
    %c0_8 = arith.constant 0 : index
    %c0_9 = arith.constant 0 : index
    %17 = vector.load %arg3[%c0_8, %c0_9] : memref<120x1xf32, #tpu.memory_space<vmem>>, vector<120x1xf32>
    %18 = arith.mulf %16, %17 : vector<120x1xf32>
    %c0_10 = arith.constant 0 : index
    %c0_11 = arith.constant 0 : index
    %19 = vector.load %arg4[%c0_10, %c0_11] : memref<120x1xf32, #tpu.memory_space<vmem>>, vector<120x1xf32>
    %20 = arith.mulf %18, %6 : vector<120x1xf32>
    %21 = arith.subf %19, %20 : vector<120x1xf32>
    %c0_12 = arith.constant 0 : index
    %c0_13 = arith.constant 0 : index
    %22 = vector.load %arg5[%c0_12, %c0_13] : memref<720x120xf32, #tpu.memory_space<vmem>>, vector<720x120xf32>
    %23 = tpu.transpose %18, [1, 0] : vector<120x1xf32> -> vector<1x120xf32>
    %24 = vector.broadcast %23 : vector<1x120xf32> to vector<720x120xf32>
    %25 = arith.mulf %22, %24 : vector<720x120xf32>
    %cst_14 = arith.constant dense<0.000000e+00> : vector<720x1xf32>
    %26 = tpu.matmul %22, %21, %cst_14 {dimension_numbers = #tpu.dot_dimension_numbers<[1], [0], [0], [1], [0, 0, 1, 1], [], []>} : vector<720x120xf32>, vector<120x1xf32>, vector<720x1xf32> -> vector<720x1xf32>
    %cst_15 = arith.constant dense<0.000000e+00> : vector<720x196xf32>
    %27 = tpu.matmul %25, %2, %cst_15 {dimension_numbers = #tpu.dot_dimension_numbers<[1], [0], [0], [1], [0, 0, 1, 1], [], []>} : vector<720x120xf32>, vector<120x196xf32>, vector<720x196xf32> -> vector<720x196xf32>
    %28 = vector.broadcast %26 : vector<720x1xf32> to vector<720x196xf32>
    %29 = arith.addf %27, %28 : vector<720x196xf32>
    %c0_16 = arith.constant 0 : index
    %c0_17 = arith.constant 0 : index
    %30 = vector.load %arg6[%c0_16, %c0_17] : memref<720x196xf32, #tpu.memory_space<vmem>>, vector<720x196xf32>
    tpu.vector_store %arg6[%c0_16, %c0_17], %29 {strides = array<i32>} : memref<720x196xf32, #tpu.memory_space<vmem>>, vector<720x196xf32>,
    return
  }
  func.func @transform_0(%arg0: i32) -> (i32, i32) {
    %c0_i32 = arith.constant 0 : i32
    %c0_i32_0 = arith.constant 0 : i32
    %c0_i32_1 = arith.constant 0 : i32
    return %c0_i32, %c0_i32_0 : i32, i32
  }
  func.func @transform_1(%arg0: i32) -> (i32, i32) {
    %c0_i32 = arith.constant 0 : i32
    %c0_i32_0 = arith.constant 0 : i32
    %c0_i32_1 = arith.constant 0 : i32
    return %c0_i32, %c0_i32_0 : i32, i32
  }
  func.func @transform_2(%arg0: i32) -> (i32, i32) {
    %c0_i32 = arith.constant 0 : i32
    %c0_i32_0 = arith.constant 0 : i32
    %c0_i32_1 = arith.constant 0 : i32
    return %c0_i32, %c0_i32_0 : i32, i32
  }
  func.func @transform_3(%arg0: i32) -> (i32, i32) {
    %c0_i32 = arith.constant 0 : i32
    %c0_i32_0 = arith.constant 0 : i32
    %c0_i32_1 = arith.constant 0 : i32
    return %c0_i32, %c0_i32_0 : i32, i32
  }
  func.func @transform_4(%arg0: i32) -> (i32, i32) {
    %c0_i32 = arith.constant 0 : i32
    %c0_i32_0 = arith.constant 0 : i32
    return %arg0, %c0_i32 : i32, i32
  }
  func.func @transform_5(%arg0: i32) -> (i32, i32) {
    %c0_i32 = arith.constant 0 : i32
    %c0_i32_0 = arith.constant 0 : i32
    return %arg0, %c0_i32 : i32, i32
  }
}

</mosaic_0001>

<llo_original>
// kernel: tpu_custom_call.1
$region0: #{tpu_custom_call.1}
  #allocation0 [shape = 'u32[]', space=smem, size = 0x4, offset = 0x4, fixed_abs, tag = 'smem constant byte address 0x4 - core index']
  #allocation1 [shape = 'u32[144,128]{1,0:T(1,128)}', space=vmem, size = 0x12000, scoped, tag = 'internal scratch']
  %s0 = inlined_call_operand.vmem [shape: f32[528,196], index: 0, kind: input, shape index: {}]
  %s1 = inlined_call_operand.vmem [shape: f32[120,528], index: 1, kind: input, shape index: {}]
  %s2 = inlined_call_operand.vmem [shape: f32[120,1], index: 2, kind: input, shape index: {}]
  %s3 = inlined_call_operand.vmem [shape: f32[120,1], index: 3, kind: input, shape index: {}]
  %s4 = inlined_call_operand.vmem [shape: f32[720,120], index: 4, kind: input, shape index: {}]
  %s5 = inlined_call_operand.vmem [shape: f32[720,196], index: 5, kind: output, shape index: {}]
  %s6 = sld [smem:[#allocation0]]
  $region30: #{tpu_custom_call.1} parent=0
    _
  %s8 = ssub.s32 1, %s6
  %s9 = scalar_select 0, %s8, %s6
  // Predicated region
  $region2: #{tpu_custom_call.1} parent=0 // pred_check
    _
  $region3: #{tpu_custom_call.1} parent=0 // pred_check_branch
    %11 = sbr.rel (0) target = $region5
  $region4: #{tpu_custom_call.1} parent=0 // pred_region
    _
  $region5: #{tpu_custom_call.1} parent=0 // pred_fallthru
    _
  // Predicated region
  $region6: #{tpu_custom_call.1} parent=0 // pred_check
    _
  $region7: #{tpu_custom_call.1} parent=0 // pred_check_branch
    %13 = sbr.rel (0) target = $region9
  $region8: #{tpu_custom_call.1} parent=0 // pred_region
    _
  $region9: #{tpu_custom_call.1} parent=0 // pred_fallthru
    _
  // Predicated region
  $region10: #{tpu_custom_call.1} parent=0 // pred_check
    _
  $region11: #{tpu_custom_call.1} parent=0 // pred_check_branch
    %15 = sbr.rel (0) target = $region13
  $region12: #{tpu_custom_call.1} parent=0 // pred_region
    _
  $region13: #{tpu_custom_call.1} parent=0 // pred_fallthru
    _
  // Predicated region
  $region14: #{tpu_custom_call.1} parent=0 // pred_check
    _
  $region15: #{tpu_custom_call.1} parent=0 // pred_check_branch
    %17 = sbr.rel (0) target = $region17
  $region16: #{tpu_custom_call.1} parent=0 // pred_region
    _
  $region17: #{tpu_custom_call.1} parent=0 // pred_fallthru
    _
  // Predicated region
  $region18: #{tpu_custom_call.1} parent=0 // pred_check
    _
  $region19: #{tpu_custom_call.1} parent=0 // pred_check_branch
    %19 = sbr.rel (0) target = $region21
  $region20: #{tpu_custom_call.1} parent=0 // pred_region
    _
  $region21: #{tpu_custom_call.1} parent=0 // pred_fallthru
    _
  %v20 = vld [vmem:[%s0] sm:$0xff]
  %v21 = vld [vmem:[%s0 + $0x8] sm:$0xff]
  %v22 = vld [vmem:[%s0 + $0x10] sm:$0xff]
  %v23 = vld [vmem:[%s0 + $0x18] sm:$0xff]
  %v24 = vld [vmem:[%s0 + $0x20] sm:$0xff]
  %v25 = vld [vmem:[%s0 + $0x28] sm:$0xff]
  %v26 = vld [vmem:[%s0 + $0x30] sm:$0xff]
  %v27 = vld [vmem:[%s0 + $0x38] sm:$0xff]
  %v28 = vld [vmem:[%s0 + $0x40] sm:$0xff]
  %v29 = vld [vmem:[%s0 + $0x48] sm:$0xff]
  %v30 = vld [vmem:[%s0 + $0x50] sm:$0xff]
  %v31 = vld [vmem:[%s0 + $0x58] sm:$0xff]
  %v32 = vld [vmem:[%s0 + $0x60] sm:$0xff]
  %v33 = vld [vmem:[%s0 + $0x68] sm:$0xff]
  %v34 = vld [vmem:[%s0 + $0x70] sm:$0xff]
  %v35 = vld [vmem:[%s0 + $0x78] sm:$0xff]
  %v36 = vld [vmem:[%s0 + $0x80] sm:$0xff]
  %v37 = vld [vmem:[%s0 + $0x88] sm:$0xff]
  %v38 = vld [vmem:[%s0 + $0x90] sm:$0xff]
  %v39 = vld [vmem:[%s0 + $0x98] sm:$0xff]
  %v40 = vld [vmem:[%s0 + $0xa0] sm:$0xff]
  %v41 = vld [vmem:[%s0 + $0xa8] sm:$0xff]
  %v42 = vld [vmem:[%s0 + $0xb0] sm:$0xff]
  %v43 = vld [vmem:[%s0 + $0xb8] sm:$0xff]
  %v44 = vld [vmem:[%s0 + $0xc0] sm:$0xff]
  %v45 = vld [vmem:[%s0 + $0xc8] sm:$0xff]
  %v46 = vld [vmem:[%s0 + $0xd0] sm:$0xff]
  %v47 = vld [vmem:[%s0 + $0xd8] sm:$0xff]
  %v48 = vld [vmem:[%s0 + $0xe0] sm:$0xff]
  %v49 = vld [vmem:[%s0 + $0xe8] sm:$0xff]
  %v50 = vld [vmem:[%s0 + $0xf0] sm:$0xff]
  %v51 = vld [vmem:[%s0 + $0xf8] sm:$0xff]
  %v52 = vld [vmem:[%s0 + $0x100] sm:$0xff]
  %v53 = vld [vmem:[%s0 + $0x108] sm:$0xff]
  %v54 = vld [vmem:[%s0 + $0x110] sm:$0xff]
  %v55 = vld [vmem:[%s0 + $0x118] sm:$0xff]
  %v56 = vld [vmem:[%s0 + $0x120] sm:$0xff]
  %v57 = vld [vmem:[%s0 + $0x128] sm:$0xff]
  %v58 = vld [vmem:[%s0 + $0x130] sm:$0xff]
  %v59 = vld [vmem:[%s0 + $0x138] sm:$0xff]
  %v60 = vld [vmem:[%s0 + $0x140] sm:$0xff]
  %v61 = vld [vmem:[%s0 + $0x148] sm:$0xff]
  %v62 = vld [vmem:[%s0 + $0x150] sm:$0xff]
  %v63 = vld [vmem:[%s0 + $0x158] sm:$0xff]
  %v64 = vld [vmem:[%s0 + $0x160] sm:$0xff]
  %v65 = vld [vmem:[%s0 + $0x168] sm:$0xff]
  %v66 = vld [vmem:[%s0 + $0x170] sm:$0xff]
  %v67 = vld [vmem:[%s0 + $0x178] sm:$0xff]
  %v68 = vld [vmem:[%s0 + $0x180] sm:$0xff]
  %v69 = vld [vmem:[%s0 + $0x188] sm:$0xff]
  %v70 = vld [vmem:[%s0 + $0x190] sm:$0xff]
  %v71 = vld [vmem:[%s0 + $0x198] sm:$0xff]
  %v72 = vld [vmem:[%s0 + $0x1a0] sm:$0xff]
  %v73 = vld [vmem:[%s0 + $0x1a8] sm:$0xff]
  %v74 = vld [vmem:[%s0 + $0x1b0] sm:$0xff]
  %v75 = vld [vmem:[%s0 + $0x1b8] sm:$0xff]
  %v76 = vld [vmem:[%s0 + $0x1c0] sm:$0xff]
  %v77 = vld [vmem:[%s0 + $0x1c8] sm:$0xff]
  %v78 = vld [vmem:[%s0 + $0x1d0] sm:$0xff]
  %v79 = vld [vmem:[%s0 + $0x1d8] sm:$0xff]
  %v80 = vld [vmem:[%s0 + $0x1e0] sm:$0xff]
  %v81 = vld [vmem:[%s0 + $0x1e8] sm:$0xff]
  %v82 = vld [vmem:[%s0 + $0x1f0] sm:$0xff]
  %v83 = vld [vmem:[%s0 + $0x1f8] sm:$0xff]
  %v84 = vld [vmem:[%s0 + $0x200] sm:$0xff]
  %v85 = vld [vmem:[%s0 + $0x208] sm:$0xff]
  %v86 = vld [vmem:[%s0 + $0x210] sm:$0xff]
  %v87 = vld [vmem:[%s0 + $0x218] sm:$0xff]
  %v88 = vld [vmem:[%s0 + $0x220] sm:$0xff]
  %v89 = vld [vmem:[%s0 + $0x228] sm:$0xff]
  %v90 = vld [vmem:[%s0 + $0x230] sm:$0xff]
  %v91 = vld [vmem:[%s0 + $0x238] sm:$0xff]
  %v92 = vld [vmem:[%s0 + $0x240] sm:$0xff]
  %v93 = vld [vmem:[%s0 + $0x248] sm:$0xff]
  %v94 = vld [vmem:[%s0 + $0x250] sm:$0xff]
  %v95 = vld [vmem:[%s0 + $0x258] sm:$0xff]
  %v96 = vld [vmem:[%s0 + $0x260] sm:$0xff]
  %v97 = vld [vmem:[%s0 + $0x268] sm:$0xff]
  %v98 = vld [vmem:[%s0 + $0x270] sm:$0xff]
  %v99 = vld [vmem:[%s0 + $0x278] sm:$0xff]
  %v100 = vld [vmem:[%s0 + $0x280] sm:$0xff]
  %v101 = vld [vmem:[%s0 + $0x288] sm:$0xff]
  %v102 = vld [vmem:[%s0 + $0x290] sm:$0xff]
  %v103 = vld [vmem:[%s0 + $0x298] sm:$0xff]
  %v104 = vld [vmem:[%s0 + $0x2a0] sm:$0xff]
  %v105 = vld [vmem:[%s0 + $0x2a8] sm:$0xff]
  %v106 = vld [vmem:[%s0 + $0x2b0] sm:$0xff]
  %v107 = vld [vmem:[%s0 + $0x2b8] sm:$0xff]
  %v108 = vld [vmem:[%s0 + $0x2c0] sm:$0xff]
  %v109 = vld [vmem:[%s0 + $0x2c8] sm:$0xff]
  %v110 = vld [vmem:[%s0 + $0x2d0] sm:$0xff]
  %v111 = vld [vmem:[%s0 + $0x2d8] sm:$0xff]
  %v112 = vld [vmem:[%s0 + $0x2e0] sm:$0xff]
  %v113 = vld [vmem:[%s0 + $0x2e8] sm:$0xff]
  %v114 = vld [vmem:[%s0 + $0x2f0] sm:$0xff]
  %v115 = vld [vmem:[%s0 + $0x2f8] sm:$0xff]
  %v116 = vld [vmem:[%s0 + $0x300] sm:$0xff]
  %v117 = vld [vmem:[%s0 + $0x308] sm:$0xff]
  %v118 = vld [vmem:[%s0 + $0x310] sm:$0xff]
  %v119 = vld [vmem:[%s0 + $0x318] sm:$0xff]
  %v120 = vld [vmem:[%s0 + $0x320] sm:$0xff]
  %v121 = vld [vmem:[%s0 + $0x328] sm:$0xff]
  %v122 = vld [vmem:[%s0 + $0x330] sm:$0xff]
  %v123 = vld [vmem:[%s0 + $0x338] sm:$0xff]
  %v124 = vld [vmem:[%s0 + $0x340] sm:$0xff]
  %v125 = vld [vmem:[%s0 + $0x348] sm:$0xff]
  %v126 = vld [vmem:[%s0 + $0x350] sm:$0xff]
  %v127 = vld [vmem:[%s0 + $0x358] sm:$0xff]
  %v128 = vld [vmem:[%s0 + $0x360] sm:$0xff]
  %v129 = vld [vmem:[%s0 + $0x368] sm:$0xff]
  %v130 = vld [vmem:[%s0 + $0x370] sm:$0xff]
  %v131 = vld [vmem:[%s0 + $0x378] sm:$0xff]
  %v132 = vld [vmem:[%s0 + $0x380] sm:$0xff]
  %v133 = vld [vmem:[%s0 + $0x388] sm:$0xff]
  %v134 = vld [vmem:[%s0 + $0x390] sm:$0xff]
  %v135 = vld [vmem:[%s0 + $0x398] sm:$0xff]
  %v136 = vld [vmem:[%s0 + $0x3a0] sm:$0xff]
  %v137 = vld [vmem:[%s0 + $0x3a8] sm:$0xff]
  %v138 = vld [vmem:[%s0 + $0x3b0] sm:$0xff]
  %v139 = vld [vmem:[%s0 + $0x3b8] sm:$0xff]
  %v140 = vld [vmem:[%s0 + $0x3c0] sm:$0xff]
  %v141 = vld [vmem:[%s0 + $0x3c8] sm:$0xff]
  %v142 = vld [vmem:[%s0 + $0x3d0] sm:$0xff]
  %v143 = vld [vmem:[%s0 + $0x3d8] sm:$0xff]
  %v144 = vld [vmem:[%s0 + $0x3e0] sm:$0xff]
  %v145 = vld [vmem:[%s0 + $0x3e8] sm:$0xff]
  %v146 = vld [vmem:[%s0 + $0x3f0] sm:$0xff]
  %v147 = vld [vmem:[%s0 + $0x3f8] sm:$0xff]
  %v148 = vld [vmem:[%s0 + $0x400] sm:$0xff]
  %v149 = vld [vmem:[%s0 + $0x408] sm:$0xff]
  %v150 = vld [vmem:[%s0 + $0x410] sm:$0xff]
  %v151 = vld [vmem:[%s0 + $0x418] sm:$0xff]
  %v152 = vld [vmem:[%s1] sm:$0xff]
  %v153 = vld [vmem:[%s1 + $0x8] sm:$0xff]
  %v154 = vld [vmem:[%s1 + $0x10] sm:$0xff]
  %v155 = vld [vmem:[%s1 + $0x18] sm:$0xff]
  %v156 = vld [vmem:[%s1 + $0x20] sm:$0xff]
  %v157 = vld [vmem:[%s1 + $0x28] sm:$0xff]
  %v158 = vld [vmem:[%s1 + $0x30] sm:$0xff]
  %v159 = vld [vmem:[%s1 + $0x38] sm:$0xff]
  %v160 = vld [vmem:[%s1 + $0x40] sm:$0xff]
  %v161 = vld [vmem:[%s1 + $0x48] sm:$0xff]
  %v162 = vld [vmem:[%s1 + $0x50] sm:$0xff]
  %v163 = vld [vmem:[%s1 + $0x58] sm:$0xff]
  %v164 = vld [vmem:[%s1 + $0x60] sm:$0xff]
  %v165 = vld [vmem:[%s1 + $0x68] sm:$0xff]
  %v166 = vld [vmem:[%s1 + $0x70] sm:$0xff]
  %v167 = vld [vmem:[%s1 + $0x78] sm:$0xff]
  %v168 = vld [vmem:[%s1 + $0x80] sm:$0xff]
  %v169 = vld [vmem:[%s1 + $0x88] sm:$0xff]
  %v170 = vld [vmem:[%s1 + $0x90] sm:$0xff]
  %v171 = vld [vmem:[%s1 + $0x98] sm:$0xff]
  %v172 = vld [vmem:[%s1 + $0xa0] sm:$0xff]
  %v173 = vld [vmem:[%s1 + $0xa8] sm:$0xff]
  %v174 = vld [vmem:[%s1 + $0xb0] sm:$0xff]
  %v175 = vld [vmem:[%s1 + $0xb8] sm:$0xff]
  %v176 = vld [vmem:[%s1 + $0xc0] sm:$0xff]
  %v177 = vld [vmem:[%s1 + $0xc8] sm:$0xff]
  %v178 = vld [vmem:[%s1 + $0xd0] sm:$0xff]
  %v179 = vld [vmem:[%s1 + $0xd8] sm:$0xff]
  %v180 = vld [vmem:[%s1 + $0xe0] sm:$0xff]
  %v181 = vld [vmem:[%s1 + $0xe8] sm:$0xff]
  %v182 = vld [vmem:[%s1 + $0xf0] sm:$0xff]
  %v183 = vld [vmem:[%s1 + $0xf8] sm:$0xff]
  %v184 = vld [vmem:[%s1 + $0x100] sm:$0xff]
  %v185 = vld [vmem:[%s1 + $0x108] sm:$0xff]
  %v186 = vld [vmem:[%s1 + $0x110] sm:$0xff]
  %v187 = vld [vmem:[%s1 + $0x118] sm:$0xff]
  %v188 = vld [vmem:[%s1 + $0x120] sm:$0xff]
  %v189 = vld [vmem:[%s1 + $0x128] sm:$0xff]
  %v190 = vld [vmem:[%s1 + $0x130] sm:$0xff]
  %v191 = vld [vmem:[%s1 + $0x138] sm:$0xff]
  %v192 = vld [vmem:[%s1 + $0x140] sm:$0xff]
  %v193 = vld [vmem:[%s1 + $0x148] sm:$0xff]
  %v194 = vld [vmem:[%s1 + $0x150] sm:$0xff]
  %v195 = vld [vmem:[%s1 + $0x158] sm:$0xff]
  %v196 = vld [vmem:[%s1 + $0x160] sm:$0xff]
  %v197 = vld [vmem:[%s1 + $0x168] sm:$0xff]
  %v198 = vld [vmem:[%s1 + $0x170] sm:$0xff]
  %v199 = vld [vmem:[%s1 + $0x178] sm:$0xff]
  %v200 = vld [vmem:[%s1 + $0x180] sm:$0xff]
  %v201 = vld [vmem:[%s1 + $0x188] sm:$0xff]
  %v202 = vld [vmem:[%s1 + $0x190] sm:$0xff]
  %v203 = vld [vmem:[%s1 + $0x198] sm:$0xff]
  %v204 = vld [vmem:[%s1 + $0x1a0] sm:$0xff]
  %v205 = vld [vmem:[%s1 + $0x1a8] sm:$0xff]
  %v206 = vld [vmem:[%s1 + $0x1b0] sm:$0xff]
  %v207 = vld [vmem:[%s1 + $0x1b8] sm:$0xff]
  %v208 = vld [vmem:[%s1 + $0x1c0] sm:$0xff]
  %v209 = vld [vmem:[%s1 + $0x1c8] sm:$0xff]
  %v210 = vld [vmem:[%s1 + $0x1d0] sm:$0xff]
  %v211 = vld [vmem:[%s1 + $0x1d8] sm:$0xff]
  %v212 = vld [vmem:[%s1 + $0x1e0] sm:$0xff]
  %v213 = vld [vmem:[%s1 + $0x1e8] sm:$0xff]
  %v214 = vld [vmem:[%s1 + $0x1f0] sm:$0xff]
  %v215 = vld [vmem:[%s1 + $0x1f8] sm:$0xff]
  %v216 = vld [vmem:[%s1 + $0x200] sm:$0xff]
  %v217 = vld [vmem:[%s1 + $0x208] sm:$0xff]
  %v218 = vld [vmem:[%s1 + $0x210] sm:$0xff]
  %v219 = vld [vmem:[%s1 + $0x218] sm:$0xff]
  %v220 = vld [vmem:[%s1 + $0x220] sm:$0xff]
  %v221 = vld [vmem:[%s1 + $0x228] sm:$0xff]
  %v222 = vld [vmem:[%s1 + $0x230] sm:$0xff]
  %v223 = vld [vmem:[%s1 + $0x238] sm:$0xff]
  %v224 = vld [vmem:[%s1 + $0x240] sm:$0xff]
  %v225 = vld [vmem:[%s1 + $0x248] sm:$0xff]
  %v226 = vld [vmem:[%s1 + $0x250] sm:$0xff]
  %vm227 = vcmask 130048
  %v229 = vsel %vm227, %v156, 0
  %v232 = vsel %vm227, %v161, 0
  %v235 = vsel %vm227, %v166, 0
  %v238 = vsel %vm227, %v171, 0
  %v241 = vsel %vm227, %v176, 0
  %v244 = vsel %vm227, %v181, 0
  %v247 = vsel %vm227, %v186, 0
  %v250 = vsel %vm227, %v191, 0
  %v253 = vsel %vm227, %v196, 0
  %v256 = vsel %vm227, %v201, 0
  %v259 = vsel %vm227, %v206, 0
  %v262 = vsel %vm227, %v211, 0
  %v265 = vsel %vm227, %v216, 0
  %v268 = vsel %vm227, %v221, 0
  %v271 = vsel %vm227, %v226, 0
  %273 = vmatprep.subr.mxu0 %v51
  %274 = vmatpush1.msra.mxu0 %v50
  %275 = vmatprep.subr.mxu0 %v49
  %276 = vmatpush1.msra.mxu0 %v48
  %277 = vmatprep.subr.mxu0 %v47
  %278 = vmatpush1.msra.mxu0 %v46
  %279 = vmatprep.subr.mxu0 %v45
  %280 = vmatpush1.msra.mxu0 %v44
  %281 = vmatprep.subr.mxu0 %v43
  %282 = vmatpush1.msra.mxu0 %v42
  %283 = vmatprep.subr.mxu0 %v41
  %284 = vmatpush1.msra.mxu0 %v40
  %285 = vmatprep.subr.mxu0 %v39
  %286 = vmatpush1.msra.mxu0 %v38
  %287 = vmatprep.subr.mxu0 %v37
  %288 = vmatpush1.msra.mxu0 %v36
  %289 = vmatprep.subr.mxu0 %v35
  %290 = vmatpush1.msra.mxu0 %v34
  %291 = vmatprep.subr.mxu0 %v33
  %292 = vmatpush1.msra.mxu0 %v32
  %293 = vmatprep.subr.mxu0 %v31
  %294 = vmatpush1.msra.mxu0 %v30
  %295 = vmatprep.subr.mxu0 %v29
  %296 = vmatpush1.msra.mxu0 %v28
  %297 = vmatprep.subr.mxu0 %v27
  %298 = vmatpush1.msra.mxu0 %v26
  %299 = vmatprep.subr.mxu0 %v25
  %300 = vmatpush1.msra.mxu0 %v24
  %301 = vmatprep.subr.mxu0 %v23
  %302 = vmatpush1.msra.mxu0 %v22
  %303 = vmatprep.subr.mxu0 %v21
  %304 = vmatpush1.msra.mxu0 %v20
  %305 = vmatprep.subr.mxu0 %v83
  %306 = vmatpush2.msra.mxu0 %v82
  %307 = vmatprep.subr.mxu0 %v81
  %308 = vmatpush2.msra.mxu0 %v80
  %309 = vmatprep.subr.mxu0 %v79
  %310 = vmatpush2.msra.mxu0 %v78
  %311 = vmatprep.subr.mxu0 %v77
  %312 = vmatpush2.msra.mxu0 %v76
  %313 = vmatprep.subr.mxu0 %v75
  %314 = vmatpush2.msra.mxu0 %v74
  %315 = vmatprep.subr.mxu0 %v73
  %316 = vmatpush2.msra.mxu0 %v72
  %317 = vmatprep.subr.mxu0 %v71
  %318 = vmatpush2.msra.mxu0 %v70
  %319 = vmatprep.subr.mxu0 %v69
  %320 = vmatpush2.msra.mxu0 %v68
  %321 = vmatprep.subr.mxu0 %v67
  %322 = vmatpush2.msra.mxu0 %v66
  %323 = vmatprep.subr.mxu0 %v65
  %324 = vmatpush2.msra.mxu0 %v64
  %325 = vmatprep.subr.mxu0 %v63
  %326 = vmatpush2.msra.mxu0 %v62
  %327 = vmatprep.subr.mxu0 %v61
  %328 = vmatpush2.msra.mxu0 %v60
  %329 = vmatprep.subr.mxu0 %v59
  %330 = vmatpush2.msra.mxu0 %v58
  %331 = vmatprep.subr.mxu0 %v57
  %332 = vmatpush2.msra.mxu0 %v56
  %333 = vmatprep.subr.mxu0 %v55
  %334 = vmatpush2.msra.mxu0 %v54
  %335 = vmatprep.subr.mxu0 %v53
  %336 = vmatpush2.msra.mxu0 %v52
  %337 = vmatprep.mubr.f32.mxu0 %v153
  %338 = vmatmul.mubr.f32.gmra.mxu0 %v152
  %v339 = vpop.f32.mrf.mxu0
  %v340 = vadd.f32 0.0, %v339
  %v341 = vpop.f32.mrf.mxu0
  %v342 = vadd.f32 0.0, %v341
  %343 = vmatprep.mubr.f32.mxu0 %v158
  %344 = vmatmul.mubr.f32.gmra.mxu0 %v157
  %v345 = vpop.f32.mrf.mxu0
  %v346 = vadd.f32 0.0, %v345
  %v347 = vpop.f32.mrf.mxu0
  %v348 = vadd.f32 0.0, %v347
  %349 = vmatprep.mubr.f32.mxu0 %v163
  %350 = vmatmul.mubr.f32.gmra.mxu0 %v162
  %v351 = vpop.f32.mrf.mxu0
  %v352 = vadd.f32 0.0, %v351
  %v353 = vpop.f32.mrf.mxu0
  %v354 = vadd.f32 0.0, %v353
  %355 = vmatprep.mubr.f32.mxu0 %v168
  %356 = vmatmul.mubr.f32.gmra.mxu0 %v167
  %v357 = vpop.f32.mrf.mxu0
  %v358 = vadd.f32 0.0, %v357
  %v359 = vpop.f32.mrf.mxu0
  %v360 = vadd.f32 0.0, %v359
  %361 = vmatprep.mubr.f32.mxu0 %v173
  %362 = vmatmul.mubr.f32.gmra.mxu0 %v172
  %v363 = vpop.f32.mrf.mxu0
  %v364 = vadd.f32 0.0, %v363
  %v365 = vpop.f32.mrf.mxu0
  %v366 = vadd.f32 0.0, %v365
  %367 = vmatprep.mubr.f32.mxu0 %v178
  %368 = vmatmul.mubr.f32.gmra.mxu0 %v177
  %v369 = vpop.f32.mrf.mxu0
  %v370 = vadd.f32 0.0, %v369
  %v371 = vpop.f32.mrf.mxu0
  %v372 = vadd.f32 0.0, %v371
  %373 = vmatprep.mubr.f32.mxu0 %v183
  %374 = vmatmul.mubr.f32.gmra.mxu0 %v182
  %v375 = vpop.f32.mrf.mxu0
  %v376 = vadd.f32 0.0, %v375
  %v377 = vpop.f32.mrf.mxu0
  %v378 = vadd.f32 0.0, %v377
  %379 = vmatprep.mubr.f32.mxu0 %v188
  %380 = vmatmul.mubr.f32.gmra.mxu0 %v187
  %v381 = vpop.f32.mrf.mxu0
  %v382 = vadd.f32 0.0, %v381
  %v383 = vpop.f32.mrf.mxu0
  %v384 = vadd.f32 0.0, %v383
  %385 = vmatprep.mubr.f32.mxu0 %v193
  %386 = vmatmul.mubr.f32.gmra.mxu0 %v192
  %v387 = vpop.f32.mrf.mxu0
  %v388 = vadd.f32 0.0, %v387
  %v389 = vpop.f32.mrf.mxu0
  %v390 = vadd.f32 0.0, %v389
  %391 = vmatprep.mubr.f32.mxu0 %v198
  %392 = vmatmul.mubr.f32.gmra.mxu0 %v197
  %v393 = vpop.f32.mrf.mxu0
  %v394 = vadd.f32 0.0, %v393
  %v395 = vpop.f32.mrf.mxu0
  %v396 = vadd.f32 0.0, %v395
  %397 = vmatprep.mubr.f32.mxu0 %v203
  %398 = vmatmul.mubr.f32.gmra.mxu0 %v202
  %v399 = vpop.f32.mrf.mxu0
  %v400 = vadd.f32 0.0, %v399
  %v401 = vpop.f32.mrf.mxu0
  %v402 = vadd.f32 0.0, %v401
  %403 = vmatprep.mubr.f32.mxu0 %v208
  %404 = vmatmul.mubr.f32.gmra.mxu0 %v207
  %v405 = vpop.f32.mrf.mxu0
  %v406 = vadd.f32 0.0, %v405
  %v407 = vpop.f32.mrf.mxu0
  %v408 = vadd.f32 0.0, %v407
  %409 = vmatprep.mubr.f32.mxu0 %v213
  %410 = vmatmul.mubr.f32.gmra.mxu0 %v212
  %v411 = vpop.f32.mrf.mxu0
  %v412 = vadd.f32 0.0, %v411
  %v413 = vpop.f32.mrf.mxu0
  %v414 = vadd.f32 0.0, %v413
  %415 = vmatprep.mubr.f32.mxu0 %v218
  %416 = vmatmul.mubr.f32.gmra.mxu0 %v217
  %v417 = vpop.f32.mrf.mxu0
  %v418 = vadd.f32 0.0, %v417
  %v419 = vpop.f32.mrf.mxu0
  %v420 = vadd.f32 0.0, %v419
  %421 = vmatprep.mubr.f32.mxu0 %v223
  %422 = vmatmul.mubr.f32.gmra.mxu0 %v222
  %v423 = vpop.f32.mrf.mxu0
  %v424 = vadd.f32 0.0, %v423
  %v425 = vpop.f32.mrf.mxu0
  %v426 = vadd.f32 0.0, %v425
  %427 = vdwg.mxu0
  %428 = vmatprep.subr.mxu0 %v115
  %429 = vmatpush1.msra.mxu0 %v114
  %430 = vmatprep.subr.mxu0 %v113
  %431 = vmatpush1.msra.mxu0 %v112
  %432 = vmatprep.subr.mxu0 %v111
  %433 = vmatpush1.msra.mxu0 %v110
  %434 = vmatprep.subr.mxu0 %v109
  %435 = vmatpush1.msra.mxu0 %v108
  %436 = vmatprep.subr.mxu0 %v107
  %437 = vmatpush1.msra.mxu0 %v106
  %438 = vmatprep.subr.mxu0 %v105
  %439 = vmatpush1.msra.mxu0 %v104
  %440 = vmatprep.subr.mxu0 %v103
  %441 = vmatpush1.msra.mxu0 %v102
  %442 = vmatprep.subr.mxu0 %v101
  %443 = vmatpush1.msra.mxu0 %v100
  %444 = vmatprep.subr.mxu0 %v99
  %445 = vmatpush1.msra.mxu0 %v98
  %446 = vmatprep.subr.mxu0 %v97
  %447 = vmatpush1.msra.mxu0 %v96
  %448 = vmatprep.subr.mxu0 %v95
  %449 = vmatpush1.msra.mxu0 %v94
  %450 = vmatprep.subr.mxu0 %v93
  %451 = vmatpush1.msra.mxu0 %v92
  %452 = vmatprep.subr.mxu0 %v91
  %453 = vmatpush1.msra.mxu0 %v90
  %454 = vmatprep.subr.mxu0 %v89
  %455 = vmatpush1.msra.mxu0 %v88
  %456 = vmatprep.subr.mxu0 %v87
  %457 = vmatpush1.msra.mxu0 %v86
  %458 = vmatprep.subr.mxu0 %v85
  %459 = vmatpush1.msra.mxu0 %v84
  %460 = vmatprep.subr.mxu0 %v147
  %461 = vmatpush2.msra.mxu0 %v146
  %462 = vmatprep.subr.mxu0 %v145
  %463 = vmatpush2.msra.mxu0 %v144
  %464 = vmatprep.subr.mxu0 %v143
  %465 = vmatpush2.msra.mxu0 %v142
  %466 = vmatprep.subr.mxu0 %v141
  %467 = vmatpush2.msra.mxu0 %v140
  %468 = vmatprep.subr.mxu0 %v139
  %469 = vmatpush2.msra.mxu0 %v138
  %470 = vmatprep.subr.mxu0 %v137
  %471 = vmatpush2.msra.mxu0 %v136
  %472 = vmatprep.subr.mxu0 %v135
  %473 = vmatpush2.msra.mxu0 %v134
  %474 = vmatprep.subr.mxu0 %v133
  %475 = vmatpush2.msra.mxu0 %v132
  %476 = vmatprep.subr.mxu0 %v131
  %477 = vmatpush2.msra.mxu0 %v130
  %478 = vmatprep.subr.mxu0 %v129
  %479 = vmatpush2.msra.mxu0 %v128
  %480 = vmatprep.subr.mxu0 %v127
  %481 = vmatpush2.msra.mxu0 %v126
  %482 = vmatprep.subr.mxu0 %v125
  %483 = vmatpush2.msra.mxu0 %v124
  %484 = vmatprep.subr.mxu0 %v123
  %485 = vmatpush2.msra.mxu0 %v122
  %486 = vmatprep.subr.mxu0 %v121
  %487 = vmatpush2.msra.mxu0 %v120
  %488 = vmatprep.subr.mxu0 %v119
  %489 = vmatpush2.msra.mxu0 %v118
  %490 = vmatprep.subr.mxu0 %v117
  %491 = vmatpush2.msra.mxu0 %v116
  %492 = vmatprep.mubr.f32.mxu0 %v155
  %493 = vmatmul.mubr.f32.gmra.mxu0 %v154
  %v494 = vpop.f32.mrf.mxu0
  %v495 = vadd.f32 %v340, %v494
  %v496 = vpop.f32.mrf.mxu0
  %v497 = vadd.f32 %v342, %v496
  %498 = vmatprep.mubr.f32.mxu0 %v160
  %499 = vmatmul.mubr.f32.gmra.mxu0 %v159
  %v500 = vpop.f32.mrf.mxu0
  %v501 = vadd.f32 %v346, %v500
  %v502 = vpop.f32.mrf.mxu0
  %v503 = vadd.f32 %v348, %v502
  %504 = vmatprep.mubr.f32.mxu0 %v165
  %505 = vmatmul.mubr.f32.gmra.mxu0 %v164
  %v506 = vpop.f32.mrf.mxu0
  %v507 = vadd.f32 %v352, %v506
  %v508 = vpop.f32.mrf.mxu0
  %v509 = vadd.f32 %v354, %v508
  %510 = vmatprep.mubr.f32.mxu0 %v170
  %511 = vmatmul.mubr.f32.gmra.mxu0 %v169
  %v512 = vpop.f32.mrf.mxu0
  %v513 = vadd.f32 %v358, %v512
  %v514 = vpop.f32.mrf.mxu0
  %v515 = vadd.f32 %v360, %v514
  %516 = vmatprep.mubr.f32.mxu0 %v175
  %517 = vmatmul.mubr.f32.gmra.mxu0 %v174
  %v518 = vpop.f32.mrf.mxu0
  %v519 = vadd.f32 %v364, %v518
  %v520 = vpop.f32.mrf.mxu0
  %v521 = vadd.f32 %v366, %v520
  %522 = vmatprep.mubr.f32.mxu0 %v180
  %523 = vmatmul.mubr.f32.gmra.mxu0 %v179
  %v524 = vpop.f32.mrf.mxu0
  %v525 = vadd.f32 %v370, %v524
  %v526 = vpop.f32.mrf.mxu0
  %v527 = vadd.f32 %v372, %v526
  %528 = vmatprep.mubr.f32.mxu0 %v185
  %529 = vmatmul.mubr.f32.gmra.mxu0 %v184
  %v530 = vpop.f32.mrf.mxu0
  %v531 = vadd.f32 %v376, %v530
  %v532 = vpop.f32.mrf.mxu0
  %v533 = vadd.f32 %v378, %v532
  %534 = vmatprep.mubr.f32.mxu0 %v190
  %535 = vmatmul.mubr.f32.gmra.mxu0 %v189
  %v536 = vpop.f32.mrf.mxu0
  %v537 = vadd.f32 %v382, %v536
  %v538 = vpop.f32.mrf.mxu0
  %v539 = vadd.f32 %v384, %v538
  %540 = vmatprep.mubr.f32.mxu0 %v195
  %541 = vmatmul.mubr.f32.gmra.mxu0 %v194
  %v542 = vpop.f32.mrf.mxu0
  %v543 = vadd.f32 %v388, %v542
  %v544 = vpop.f32.mrf.mxu0
  %v545 = vadd.f32 %v390, %v544
  %546 = vmatprep.mubr.f32.mxu0 %v200
  %547 = vmatmul.mubr.f32.gmra.mxu0 %v199
  %v548 = vpop.f32.mrf.mxu0
  %v549 = vadd.f32 %v394, %v548
  %v550 = vpop.f32.mrf.mxu0
  %v551 = vadd.f32 %v396, %v550
  %552 = vmatprep.mubr.f32.mxu0 %v205
  %553 = vmatmul.mubr.f32.gmra.mxu0 %v204
  %v554 = vpop.f32.mrf.mxu0
  %v555 = vadd.f32 %v400, %v554
  %v556 = vpop.f32.mrf.mxu0
  %v557 = vadd.f32 %v402, %v556
  %558 = vmatprep.mubr.f32.mxu0 %v210
  %559 = vmatmul.mubr.f32.gmra.mxu0 %v209
  %v560 = vpop.f32.mrf.mxu0
  %v561 = vadd.f32 %v406, %v560
  %v562 = vpop.f32.mrf.mxu0
  %v563 = vadd.f32 %v408, %v562
  %564 = vmatprep.mubr.f32.mxu0 %v215
  %565 = vmatmul.mubr.f32.gmra.mxu0 %v214
  %v566 = vpop.f32.mrf.mxu0
  %v567 = vadd.f32 %v412, %v566
  %v568 = vpop.f32.mrf.mxu0
  %v569 = vadd.f32 %v414, %v568
  %570 = vmatprep.mubr.f32.mxu0 %v220
  %571 = vmatmul.mubr.f32.gmra.mxu0 %v219
  %v572 = vpop.f32.mrf.mxu0
  %v573 = vadd.f32 %v418, %v572
  %v574 = vpop.f32.mrf.mxu0
  %v575 = vadd.f32 %v420, %v574
  %576 = vmatprep.mubr.f32.mxu0 %v225
  %577 = vmatmul.mubr.f32.gmra.mxu0 %v224
  %v578 = vpop.f32.mrf.mxu0
  %v579 = vadd.f32 %v424, %v578
  %v580 = vpop.f32.mrf.mxu0
  %v581 = vadd.f32 %v426, %v580
  %582 = vdwg.mxu0
  %583 = vmatprep.subr.mxu0 0.0
  %584 = vmatpush1.msra.mxu0 0.0
  %585 = vmatprep.subr.mxu0 0.0
  %586 = vmatpush1.msra.mxu0 0.0
  %587 = vmatprep.subr.mxu0 0.0
  %588 = vmatpush1.msra.mxu0 0.0
  %589 = vmatprep.subr.mxu0 0.0
  %590 = vmatpush1.msra.mxu0 0.0
  %591 = vmatprep.subr.mxu0 0.0
  %592 = vmatpush1.msra.mxu0 0.0
  %593 = vmatprep.subr.mxu0 0.0
  %594 = vmatpush1.msra.mxu0 0.0
  %595 = vmatprep.subr.mxu0 0.0
  %596 = vmatpush1.msra.mxu0 0.0
  %597 = vmatprep.subr.mxu0 0.0
  %598 = vmatpush1.msra.mxu0 0.0
  %599 = vmatprep.subr.mxu0 0.0
  %600 = vmatpush1.msra.mxu0 0.0
  %601 = vmatprep.subr.mxu0 0.0
  %602 = vmatpush1.msra.mxu0 0.0
  %603 = vmatprep.subr.mxu0 0.0
  %604 = vmatpush1.msra.mxu0 0.0
  %605 = vmatprep.subr.mxu0 0.0
  %606 = vmatpush1.msra.mxu0 0.0
  %607 = vmatprep.subr.mxu0 0.0
  %608 = vmatpush1.msra.mxu0 0.0
  %609 = vmatprep.subr.mxu0 0.0
  %610 = vmatpush1.msra.mxu0 0.0
  %611 = vmatprep.subr.mxu0 %v151
  %612 = vmatpush1.msra.mxu0 %v150
  %613 = vmatprep.subr.mxu0 %v149
  %614 = vmatpush1.msra.mxu0 %v148
  %615 = vmatprep.subr.mxu0 0.0
  %616 = vmatpush2.msra.mxu0 0.0
  %617 = vmatprep.subr.mxu0 0.0
  %618 = vmatpush2.msra.mxu0 0.0
  %619 = vmatprep.subr.mxu0 0.0
  %620 = vmatpush2.msra.mxu0 0.0
  %621 = vmatprep.subr.mxu0 0.0
  %622 = vmatpush2.msra.mxu0 0.0
  %623 = vmatprep.subr.mxu0 0.0
  %624 = vmatpush2.msra.mxu0 0.0
  %625 = vmatprep.subr.mxu0 0.0
  %626 = vmatpush2.msra.mxu0 0.0
  %627 = vmatprep.subr.mxu0 0.0
  %628 = vmatpush2.msra.mxu0 0.0
  %629 = vmatprep.subr.mxu0 0.0
  %630 = vmatpush2.msra.mxu0 0.0
  %631 = vmatprep.subr.mxu0 0.0
  %632 = vmatpush2.msra.mxu0 0.0
  %633 = vmatprep.subr.mxu0 0.0
  %634 = vmatpush2.msra.mxu0 0.0
  %635 = vmatprep.subr.mxu0 0.0
  %636 = vmatpush2.msra.mxu0 0.0
  %637 = vmatprep.subr.mxu0 0.0
  %638 = vmatpush2.msra.mxu0 0.0
  %639 = vmatprep.subr.mxu0 0.0
  %640 = vmatpush2.msra.mxu0 0.0
  %641 = vmatprep.subr.mxu0 0.0
  %642 = vmatpush2.msra.mxu0 0.0
  %643 = vmatprep.subr.mxu0 0.0
  %644 = vmatpush2.msra.mxu0 0.0
  %645 = vmatprep.subr.mxu0 0.0
  %646 = vmatpush2.msra.mxu0 0.0
  %647 = vmatprep.mubr.f32.mxu0 0.0
  %648 = vmatmul.mubr.f32.gmra.mxu0 %v229
  %v649 = vpop.f32.mrf.mxu0
  %v650 = vadd.f32 %v495, %v649
  %v651 = vpop.f32.mrf.mxu0
  %v652 = vadd.f32 %v497, %v651
  %653 = vmatprep.mubr.f32.mxu0 0.0
  %654 = vmatmul.mubr.f32.gmra.mxu0 %v232
  %v655 = vpop.f32.mrf.mxu0
  %v656 = vadd.f32 %v501, %v655
  %v657 = vpop.f32.mrf.mxu0
  %v658 = vadd.f32 %v503, %v657
  %659 = vmatprep.mubr.f32.mxu0 0.0
  %660 = vmatmul.mubr.f32.gmra.mxu0 %v235
  %v661 = vpop.f32.mrf.mxu0
  %v662 = vadd.f32 %v507, %v661
  %v663 = vpop.f32.mrf.mxu0
  %v664 = vadd.f32 %v509, %v663
  %665 = vmatprep.mubr.f32.mxu0 0.0
  %666 = vmatmul.mubr.f32.gmra.mxu0 %v238
  %v667 = vpop.f32.mrf.mxu0
  %v668 = vadd.f32 %v513, %v667
  %v669 = vpop.f32.mrf.mxu0
  %v670 = vadd.f32 %v515, %v669
  %671 = vmatprep.mubr.f32.mxu0 0.0
  %672 = vmatmul.mubr.f32.gmra.mxu0 %v241
  %v673 = vpop.f32.mrf.mxu0
  %v674 = vadd.f32 %v519, %v673
  %v675 = vpop.f32.mrf.mxu0
  %v676 = vadd.f32 %v521, %v675
  %677 = vmatprep.mubr.f32.mxu0 0.0
  %678 = vmatmul.mubr.f32.gmra.mxu0 %v244
  %v679 = vpop.f32.mrf.mxu0
  %v680 = vadd.f32 %v525, %v679
  %v681 = vpop.f32.mrf.mxu0
  %v682 = vadd.f32 %v527, %v681
  %683 = vmatprep.mubr.f32.mxu0 0.0
  %684 = vmatmul.mubr.f32.gmra.mxu0 %v247
  %v685 = vpop.f32.mrf.mxu0
  %v686 = vadd.f32 %v531, %v685
  %v687 = vpop.f32.mrf.mxu0
  %v688 = vadd.f32 %v533, %v687
  %689 = vmatprep.mubr.f32.mxu0 0.0
  %690 = vmatmul.mubr.f32.gmra.mxu0 %v250
  %v691 = vpop.f32.mrf.mxu0
  %v692 = vadd.f32 %v537, %v691
  %v693 = vpop.f32.mrf.mxu0
  %v694 = vadd.f32 %v539, %v693
  %695 = vmatprep.mubr.f32.mxu0 0.0
  %696 = vmatmul.mubr.f32.gmra.mxu0 %v253
  %v697 = vpop.f32.mrf.mxu0
  %v698 = vadd.f32 %v543, %v697
  %v699 = vpop.f32.mrf.mxu0
  %v700 = vadd.f32 %v545, %v699
  %701 = vmatprep.mubr.f32.mxu0 0.0
  %702 = vmatmul.mubr.f32.gmra.mxu0 %v256
  %v703 = vpop.f32.mrf.mxu0
  %v704 = vadd.f32 %v549, %v703
  %v705 = vpop.f32.mrf.mxu0
  %v706 = vadd.f32 %v551, %v705
  %707 = vmatprep.mubr.f32.mxu0 0.0
  %708 = vmatmul.mubr.f32.gmra.mxu0 %v259
  %v709 = vpop.f32.mrf.mxu0
  %v710 = vadd.f32 %v555, %v709
  %v711 = vpop.f32.mrf.mxu0
  %v712 = vadd.f32 %v557, %v711
  %713 = vmatprep.mubr.f32.mxu0 0.0
  %714 = vmatmul.mubr.f32.gmra.mxu0 %v262
  %v715 = vpop.f32.mrf.mxu0
  %v716 = vadd.f32 %v561, %v715
  %v717 = vpop.f32.mrf.mxu0
  %v718 = vadd.f32 %v563, %v717
  %719 = vmatprep.mubr.f32.mxu0 0.0
  %720 = vmatmul.mubr.f32.gmra.mxu0 %v265
  %v721 = vpop.f32.mrf.mxu0
  %v722 = vadd.f32 %v567, %v721
  %v723 = vpop.f32.mrf.mxu0
  %v724 = vadd.f32 %v569, %v723
  %725 = vmatprep.mubr.f32.mxu0 0.0
  %726 = vmatmul.mubr.f32.gmra.mxu0 %v268
  %v727 = vpop.f32.mrf.mxu0
  %v728 = vadd.f32 %v573, %v727
  %v729 = vpop.f32.mrf.mxu0
  %v730 = vadd.f32 %v575, %v729
  %731 = vmatprep.mubr.f32.mxu0 0.0
  %732 = vmatmul.mubr.f32.gmra.mxu0 %v271
  %v733 = vpop.f32.mrf.mxu0
  %v734 = vadd.f32 %v579, %v733
  %v735 = vpop.f32.mrf.mxu0
  %v736 = vadd.f32 %v581, %v735
  %737 = vdwg.mxu0
  %vm738 = vcmask 556032
  %v739 = vsel %vm738, %v652, 0.0
  %v740 = vadd.f32 %v650, %v739
  %741 = vadd.xlane.f32.xlu0 %v740
  %v742 = vpop.xlane.xlu0 %741
  %v743 = vsel %vm738, %v658, 0.0
  %v744 = vadd.f32 %v656, %v743
  %745 = vadd.xlane.f32.xlu0 %v744
  %v746 = vpop.xlane.xlu0 %745
  %v747 = vsel %vm738, %v664, 0.0
  %v748 = vadd.f32 %v662, %v747
  %749 = vadd.xlane.f32.xlu0 %v748
  %v750 = vpop.xlane.xlu0 %749
  %v751 = vsel %vm738, %v670, 0.0
  %v752 = vadd.f32 %v668, %v751
  %753 = vadd.xlane.f32.xlu0 %v752
  %v754 = vpop.xlane.xlu0 %753
  %v755 = vsel %vm738, %v676, 0.0
  %v756 = vadd.f32 %v674, %v755
  %757 = vadd.xlane.f32.xlu0 %v756
  %v758 = vpop.xlane.xlu0 %757
  %v759 = vsel %vm738, %v682, 0.0
  %v760 = vadd.f32 %v680, %v759
  %761 = vadd.xlane.f32.xlu0 %v760
  %v762 = vpop.xlane.xlu0 %761
  %v763 = vsel %vm738, %v688, 0.0
  %v764 = vadd.f32 %v686, %v763
  %765 = vadd.xlane.f32.xlu0 %v764
  %v766 = vpop.xlane.xlu0 %765
  %v767 = vsel %vm738, %v694, 0.0
  %v768 = vadd.f32 %v692, %v767
  %769 = vadd.xlane.f32.xlu0 %v768
  %v770 = vpop.xlane.xlu0 %769
  %v771 = vsel %vm738, %v700, 0.0
  %v772 = vadd.f32 %v698, %v771
  %773 = vadd.xlane.f32.xlu0 %v772
  %v774 = vpop.xlane.xlu0 %773
  %v775 = vsel %vm738, %v706, 0.0
  %v776 = vadd.f32 %v704, %v775
  %777 = vadd.xlane.f32.xlu0 %v776
  %v778 = vpop.xlane.xlu0 %777
  %v779 = vsel %vm738, %v712, 0.0
  %v780 = vadd.f32 %v710, %v779
  %781 = vadd.xlane.f32.xlu0 %v780
  %v782 = vpop.xlane.xlu0 %781
  %v783 = vsel %vm738, %v718, 0.0
  %v784 = vadd.f32 %v716, %v783
  %785 = vadd.xlane.f32.xlu0 %v784
  %v786 = vpop.xlane.xlu0 %785
  %v787 = vsel %vm738, %v724, 0.0
  %v788 = vadd.f32 %v722, %v787
  %789 = vadd.xlane.f32.xlu0 %v788
  %v790 = vpop.xlane.xlu0 %789
  %v791 = vsel %vm738, %v730, 0.0
  %v792 = vadd.f32 %v728, %v791
  %793 = vadd.xlane.f32.xlu0 %v792
  %v794 = vpop.xlane.xlu0 %793
  %v795 = vsel %vm738, %v736, 0.0
  %v796 = vadd.f32 %v734, %v795
  %797 = vadd.xlane.f32.xlu0 %v796
  %v798 = vpop.xlane.xlu0 %797
  %v799 = vmul.f32 %v742, 0.0051020407
  %v800 = vmul.f32 %v746, 0.0051020407
  %v801 = vmul.f32 %v750, 0.0051020407
  %v802 = vmul.f32 %v754, 0.0051020407
  %v803 = vmul.f32 %v758, 0.0051020407
  %v804 = vmul.f32 %v762, 0.0051020407
  %v805 = vmul.f32 %v766, 0.0051020407
  %v806 = vmul.f32 %v770, 0.0051020407
  %v807 = vmul.f32 %v774, 0.0051020407
  %v808 = vmul.f32 %v778, 0.0051020407
  %v809 = vmul.f32 %v782, 0.0051020407
  %v810 = vmul.f32 %v786, 0.0051020407
  %v811 = vmul.f32 %v790, 0.0051020407
  %v812 = vmul.f32 %v794, 0.0051020407
  %v813 = vmul.f32 %v798, 0.0051020407
  %v814 = vmul.f32 %v650, %v650
  %v815 = vmul.f32 %v652, %v652
  %v816 = vmul.f32 %v656, %v656
  %v817 = vmul.f32 %v658, %v658
  %v818 = vmul.f32 %v662, %v662
  %v819 = vmul.f32 %v664, %v664
  %v820 = vmul.f32 %v668, %v668
  %v821 = vmul.f32 %v670, %v670
  %v822 = vmul.f32 %v674, %v674
  %v823 = vmul.f32 %v676, %v676
  %v824 = vmul.f32 %v680, %v680
  %v825 = vmul.f32 %v682, %v682
  %v826 = vmul.f32 %v686, %v686
  %v827 = vmul.f32 %v688, %v688
  %v828 = vmul.f32 %v692, %v692
  %v829 = vmul.f32 %v694, %v694
  %v830 = vmul.f32 %v698, %v698
  %v831 = vmul.f32 %v700, %v700
  %v832 = vmul.f32 %v704, %v704
  %v833 = vmul.f32 %v706, %v706
  %v834 = vmul.f32 %v710, %v710
  %v835 = vmul.f32 %v712, %v712
  %v836 = vmul.f32 %v716, %v716
  %v837 = vmul.f32 %v718, %v718
  %v838 = vmul.f32 %v722, %v722
  %v839 = vmul.f32 %v724, %v724
  %v840 = vmul.f32 %v728, %v728
  %v841 = vmul.f32 %v730, %v730
  %v842 = vmul.f32 %v734, %v734
  %v843 = vmul.f32 %v736, %v736
  %v844 = vsel %vm738, %v815, 0.0
  %v845 = vadd.f32 %v814, %v844
  %846 = vadd.xlane.f32.xlu0 %v845
  %v847 = vpop.xlane.xlu0 %846
  %v848 = vsel %vm738, %v817, 0.0
  %v849 = vadd.f32 %v816, %v848
  %850 = vadd.xlane.f32.xlu0 %v849
  %v851 = vpop.xlane.xlu0 %850
  %v852 = vsel %vm738, %v819, 0.0
  %v853 = vadd.f32 %v818, %v852
  %854 = vadd.xlane.f32.xlu0 %v853
  %v855 = vpop.xlane.xlu0 %854
  %v856 = vsel %vm738, %v821, 0.0
  %v857 = vadd.f32 %v820, %v856
  %858 = vadd.xlane.f32.xlu0 %v857
  %v859 = vpop.xlane.xlu0 %858
  %v860 = vsel %vm738, %v823, 0.0
  %v861 = vadd.f32 %v822, %v860
  %862 = vadd.xlane.f32.xlu0 %v861
  %v863 = vpop.xlane.xlu0 %862
  %v864 = vsel %vm738, %v825, 0.0
  %v865 = vadd.f32 %v824, %v864
  %866 = vadd.xlane.f32.xlu0 %v865
  %v867 = vpop.xlane.xlu0 %866
  %v868 = vsel %vm738, %v827, 0.0
  %v869 = vadd.f32 %v826, %v868
  %870 = vadd.xlane.f32.xlu0 %v869
  %v871 = vpop.xlane.xlu0 %870
  %v872 = vsel %vm738, %v829, 0.0
  %v873 = vadd.f32 %v828, %v872
  %874 = vadd.xlane.f32.xlu0 %v873
  %v875 = vpop.xlane.xlu0 %874
  %v876 = vsel %vm738, %v831, 0.0
  %v877 = vadd.f32 %v830, %v876
  %878 = vadd.xlane.f32.xlu0 %v877
  %v879 = vpop.xlane.xlu0 %878
  %v880 = vsel %vm738, %v833, 0.0
  %v881 = vadd.f32 %v832, %v880
  %882 = vadd.xlane.f32.xlu0 %v881
  %v883 = vpop.xlane.xlu0 %882
  %v884 = vsel %vm738, %v835, 0.0
  %v885 = vadd.f32 %v834, %v884
  %886 = vadd.xlane.f32.xlu0 %v885
  %v887 = vpop.xlane.xlu0 %886
  %v888 = vsel %vm738, %v837, 0.0
  %v889 = vadd.f32 %v836, %v888
  %890 = vadd.xlane.f32.xlu0 %v889
  %v891 = vpop.xlane.xlu0 %890
  %v892 = vsel %vm738, %v839, 0.0
  %v893 = vadd.f32 %v838, %v892
  %894 = vadd.xlane.f32.xlu0 %v893
  %v895 = vpop.xlane.xlu0 %894
  %v896 = vsel %vm738, %v841, 0.0
  %v897 = vadd.f32 %v840, %v896
  %898 = vadd.xlane.f32.xlu0 %v897
  %v899 = vpop.xlane.xlu0 %898
  %v900 = vsel %vm738, %v843, 0.0
  %v901 = vadd.f32 %v842, %v900
  %902 = vadd.xlane.f32.xlu0 %v901
  %v903 = vpop.xlane.xlu0 %902
  %v904 = vmul.f32 %v847, 0.0051020407
  %v905 = vmul.f32 %v851, 0.0051020407
  %v906 = vmul.f32 %v855, 0.0051020407
  %v907 = vmul.f32 %v859, 0.0051020407
  %v908 = vmul.f32 %v863, 0.0051020407
  %v909 = vmul.f32 %v867, 0.0051020407
  %v910 = vmul.f32 %v871, 0.0051020407
  %v911 = vmul.f32 %v875, 0.0051020407
  %v912 = vmul.f32 %v879, 0.0051020407
  %v913 = vmul.f32 %v883, 0.0051020407
  %v914 = vmul.f32 %v887, 0.0051020407
  %v915 = vmul.f32 %v891, 0.0051020407
  %v916 = vmul.f32 %v895, 0.0051020407
  %v917 = vmul.f32 %v899, 0.0051020407
  %v918 = vmul.f32 %v903, 0.0051020407
  %v919 = vmul.f32 %v799, %v799
  %v920 = vmul.f32 %v800, %v800
  %v921 = vmul.f32 %v801, %v801
  %v922 = vmul.f32 %v802, %v802
  %v923 = vmul.f32 %v803, %v803
  %v924 = vmul.f32 %v804, %v804
  %v925 = vmul.f32 %v805, %v805
  %v926 = vmul.f32 %v806, %v806
  %v927 = vmul.f32 %v807, %v807
  %v928 = vmul.f32 %v808, %v808
  %v929 = vmul.f32 %v809, %v809
  %v930 = vmul.f32 %v810, %v810
  %v931 = vmul.f32 %v811, %v811
  %v932 = vmul.f32 %v812, %v812
  %v933 = vmul.f32 %v813, %v813
  %v934 = vsub.f32 %v904, %v919
  %v935 = vsub.f32 %v905, %v920
  %v936 = vsub.f32 %v906, %v921
  %v937 = vsub.f32 %v907, %v922
  %v938 = vsub.f32 %v908, %v923
  %v939 = vsub.f32 %v909, %v924
  %v940 = vsub.f32 %v910, %v925
  %v941 = vsub.f32 %v911, %v926
  %v942 = vsub.f32 %v912, %v927
  %v943 = vsub.f32 %v913, %v928
  %v944 = vsub.f32 %v914, %v929
  %v945 = vsub.f32 %v915, %v930
  %v946 = vsub.f32 %v916, %v931
  %v947 = vsub.f32 %v917, %v932
  %v948 = vsub.f32 %v918, %v933
  %v949 = vadd.f32 %v934, 1e-05
  %v950 = vadd.f32 %v935, 1e-05
  %v951 = vadd.f32 %v936, 1e-05
  %v952 = vadd.f32 %v937, 1e-05
  %v953 = vadd.f32 %v938, 1e-05
  %v954 = vadd.f32 %v939, 1e-05
  %v955 = vadd.f32 %v940, 1e-05
  %v956 = vadd.f32 %v941, 1e-05
  %v957 = vadd.f32 %v942, 1e-05
  %v958 = vadd.f32 %v943, 1e-05
  %v959 = vadd.f32 %v944, 1e-05
  %v960 = vadd.f32 %v945, 1e-05
  %v961 = vadd.f32 %v946, 1e-05
  %v962 = vadd.f32 %v947, 1e-05
  %v963 = vadd.f32 %v948, 1e-05
  %v964 = vrsqrt.pop %v949
  %v965 = vrsqrt.pop %v950
  %v966 = vrsqrt.pop %v951
  %v967 = vrsqrt.pop %v952
  %v968 = vrsqrt.pop %v953
  %v969 = vrsqrt.pop %v954
  %v970 = vrsqrt.pop %v955
  %v971 = vrsqrt.pop %v956
  %v972 = vrsqrt.pop %v957
  %v973 = vrsqrt.pop %v958
  %v974 = vrsqrt.pop %v959
  %v975 = vrsqrt.pop %v960
  %v976 = vrsqrt.pop %v961
  %v977 = vrsqrt.pop %v962
  %v978 = vrsqrt.pop %v963
  %v979 = vld [vmem:[%s2] sm:$0xff]
  %v980 = vld [vmem:[%s2 + $0x8] sm:$0xff]
  %v981 = vld [vmem:[%s2 + $0x10] sm:$0xff]
  %v982 = vld [vmem:[%s2 + $0x18] sm:$0xff]
  %v983 = vld [vmem:[%s2 + $0x20] sm:$0xff]
  %v984 = vld [vmem:[%s2 + $0x28] sm:$0xff]
  %v985 = vld [vmem:[%s2 + $0x30] sm:$0xff]
  %v986 = vld [vmem:[%s2 + $0x38] sm:$0xff]
  %v987 = vld [vmem:[%s2 + $0x40] sm:$0xff]
  %v988 = vld [vmem:[%s2 + $0x48] sm:$0xff]
  %v989 = vld [vmem:[%s2 + $0x50] sm:$0xff]
  %v990 = vld [vmem:[%s2 + $0x58] sm:$0xff]
  %v991 = vld [vmem:[%s2 + $0x60] sm:$0xff]
  %v992 = vld [vmem:[%s2 + $0x68] sm:$0xff]
  %v993 = vld [vmem:[%s2 + $0x70] sm:$0xff]
  %v994 = vmul.f32 %v964, %v979
  %v995 = vmul.f32 %v965, %v980
  %v996 = vmul.f32 %v966, %v981
  %v997 = vmul.f32 %v967, %v982
  %v998 = vmul.f32 %v968, %v983
  %v999 = vmul.f32 %v969, %v984
  %v1000 = vmul.f32 %v970, %v985
  %v1001 = vmul.f32 %v971, %v986
  %v1002 = vmul.f32 %v972, %v987
  %v1003 = vmul.f32 %v973, %v988
  %v1004 = vmul.f32 %v974, %v989
  %v1005 = vmul.f32 %v975, %v990
  %v1006 = vmul.f32 %v976, %v991
  %v1007 = vmul.f32 %v977, %v992
  %v1008 = vmul.f32 %v978, %v993
  %v1009 = vld [vmem:[%s3] sm:$0xff]
  %v1010 = vld [vmem:[%s3 + $0x8] sm:$0xff]
  %v1011 = vld [vmem:[%s3 + $0x10] sm:$0xff]
  %v1012 = vld [vmem:[%s3 + $0x18] sm:$0xff]
  %v1013 = vld [vmem:[%s3 + $0x20] sm:$0xff]
  %v1014 = vld [vmem:[%s3 + $0x28] sm:$0xff]
  %v1015 = vld [vmem:[%s3 + $0x30] sm:$0xff]
  %v1016 = vld [vmem:[%s3 + $0x38] sm:$0xff]
  %v1017 = vld [vmem:[%s3 + $0x40] sm:$0xff]
  %v1018 = vld [vmem:[%s3 + $0x48] sm:$0xff]
  %v1019 = vld [vmem:[%s3 + $0x50] sm:$0xff]
  %v1020 = vld [vmem:[%s3 + $0x58] sm:$0xff]
  %v1021 = vld [vmem:[%s3 + $0x60] sm:$0xff]
  %v1022 = vld [vmem:[%s3 + $0x68] sm:$0xff]
  %v1023 = vld [vmem:[%s3 + $0x70] sm:$0xff]
  %v1024 = vmul.f32 %v994, %v799
  %v1025 = vmul.f32 %v995, %v800
  %v1026 = vmul.f32 %v996, %v801
  %v1027 = vmul.f32 %v997, %v802
  %v1028 = vmul.f32 %v998, %v803
  %v1029 = vmul.f32 %v999, %v804
  %v1030 = vmul.f32 %v1000, %v805
  %v1031 = vmul.f32 %v1001, %v806
  %v1032 = vmul.f32 %v1002, %v807
  %v1033 = vmul.f32 %v1003, %v808
  %v1034 = vmul.f32 %v1004, %v809
  %v1035 = vmul.f32 %v1005, %v810
  %v1036 = vmul.f32 %v1006, %v811
  %v1037 = vmul.f32 %v1007, %v812
  %v1038 = vmul.f32 %v1008, %v813
  %v1039 = vsub.f32 %v1009, %v1024
  %v1040 = vsub.f32 %v1010, %v1025
  %v1041 = vsub.f32 %v1011, %v1026
  %v1042 = vsub.f32 %v1012, %v1027
  %v1043 = vsub.f32 %v1013, %v1028
  %v1044 = vsub.f32 %v1014, %v1029
  %v1045 = vsub.f32 %v1015, %v1030
  %v1046 = vsub.f32 %v1016, %v1031
  %v1047 = vsub.f32 %v1017, %v1032
  %v1048 = vsub.f32 %v1018, %v1033
  %v1049 = vsub.f32 %v1019, %v1034
  %v1050 = vsub.f32 %v1020, %v1035
  %v1051 = vsub.f32 %v1021, %v1036
  %v1052 = vsub.f32 %v1022, %v1037
  %v1053 = vsub.f32 %v1023, %v1038
  %v1054 = vld [vmem:[%s4] sm:$0xff]
  %v1055 = vld [vmem:[%s4 + $0x8] sm:$0xff]
  %v1056 = vld [vmem:[%s4 + $0x10] sm:$0xff]
  %v1057 = vld [vmem:[%s4 + $0x18] sm:$0xff]
  %v1058 = vld [vmem:[%s4 + $0x20] sm:$0xff]
  %v1059 = vld [vmem:[%s4 + $0x28] sm:$0xff]
  %v1060 = vld [vmem:[%s4 + $0x30] sm:$0xff]
  %v1061 = vld [vmem:[%s4 + $0x38] sm:$0xff]
  %v1062 = vld [vmem:[%s4 + $0x40] sm:$0xff]
  %v1063 = vld [vmem:[%s4 + $0x48] sm:$0xff]
  %v1064 = vld [vmem:[%s4 + $0x50] sm:$0xff]
  %v1065 = vld [vmem:[%s4 + $0x58] sm:$0xff]
  %v1066 = vld [vmem:[%s4 + $0x60] sm:$0xff]
  %v1067 = vld [vmem:[%s4 + $0x68] sm:$0xff]
  %v1068 = vld [vmem:[%s4 + $0x70] sm:$0xff]
  %v1069 = vld [vmem:[%s4 + $0x78] sm:$0xff]
  %v1070 = vld [vmem:[%s4 + $0x80] sm:$0xff]
  %v1071 = vld [vmem:[%s4 + $0x88] sm:$0xff]
  %v1072 = vld [vmem:[%s4 + $0x90] sm:$0xff]
  %v1073 = vld [vmem:[%s4 + $0x98] sm:$0xff]
  %v1074 = vld [vmem:[%s4 + $0xa0] sm:$0xff]
  %v1075 = vld [vmem:[%s4 + $0xa8] sm:$0xff]
  %v1076 = vld [vmem:[%s4 + $0xb0] sm:$0xff]
  %v1077 = vld [vmem:[%s4 + $0xb8] sm:$0xff]
  %v1078 = vld [vmem:[%s4 + $0xc0] sm:$0xff]
  %v1079 = vld [vmem:[%s4 + $0xc8] sm:$0xff]
  %v1080 = vld [vmem:[%s4 + $0xd0] sm:$0xff]
  %v1081 = vld [vmem:[%s4 + $0xd8] sm:$0xff]
  %v1082 = vld [vmem:[%s4 + $0xe0] sm:$0xff]
  %v1083 = vld [vmem:[%s4 + $0xe8] sm:$0xff]
  %v1084 = vld [vmem:[%s4 + $0xf0] sm:$0xff]
  %v1085 = vld [vmem:[%s4 + $0xf8] sm:$0xff]
  %v1086 = vld [vmem:[%s4 + $0x100] sm:$0xff]
  %v1087 = vld [vmem:[%s4 + $0x108] sm:$0xff]
  %v1088 = vld [vmem:[%s4 + $0x110] sm:$0xff]
  %v1089 = vld [vmem:[%s4 + $0x118] sm:$0xff]
  %v1090 = vld [vmem:[%s4 + $0x120] sm:$0xff]
  %v1091 = vld [vmem:[%s4 + $0x128] sm:$0xff]
  %v1092 = vld [vmem:[%s4 + $0x130] sm:$0xff]
  %v1093 = vld [vmem:[%s4 + $0x138] sm:$0xff]
  %v1094 = vld [vmem:[%s4 + $0x140] sm:$0xff]
  %v1095 = vld [vmem:[%s4 + $0x148] sm:$0xff]
  %v1096 = vld [vmem:[%s4 + $0x150] sm:$0xff]
  %v1097 = vld [vmem:[%s4 + $0x158] sm:$0xff]
  %v1098 = vld [vmem:[%s4 + $0x160] sm:$0xff]
  %v1099 = vld [vmem:[%s4 + $0x168] sm:$0xff]
  %v1100 = vld [vmem:[%s4 + $0x170] sm:$0xff]
  %v1101 = vld [vmem:[%s4 + $0x178] sm:$0xff]
  %v1102 = vld [vmem:[%s4 + $0x180] sm:$0xff]
  %v1103 = vld [vmem:[%s4 + $0x188] sm:$0xff]
  %v1104 = vld [vmem:[%s4 + $0x190] sm:$0xff]
  %v1105 = vld [vmem:[%s4 + $0x198] sm:$0xff]
  %v1106 = vld [vmem:[%s4 + $0x1a0] sm:$0xff]
  %v1107 = vld [vmem:[%s4 + $0x1a8] sm:$0xff]
  %v1108 = vld [vmem:[%s4 + $0x1b0] sm:$0xff]
  %v1109 = vld [vmem:[%s4 + $0x1b8] sm:$0xff]
  %v1110 = vld [vmem:[%s4 + $0x1c0] sm:$0xff]
  %v1111 = vld [vmem:[%s4 + $0x1c8] sm:$0xff]
  %v1112 = vld [vmem:[%s4 + $0x1d0] sm:$0xff]
  %v1113 = vld [vmem:[%s4 + $0x1d8] sm:$0xff]
  %v1114 = vld [vmem:[%s4 + $0x1e0] sm:$0xff]
  %v1115 = vld [vmem:[%s4 + $0x1e8] sm:$0xff]
  %v1116 = vld [vmem:[%s4 + $0x1f0] sm:$0xff]
  %v1117 = vld [vmem:[%s4 + $0x1f8] sm:$0xff]
  %v1118 = vld [vmem:[%s4 + $0x200] sm:$0xff]
  %v1119 = vld [vmem:[%s4 + $0x208] sm:$0xff]
  %v1120 = vld [vmem:[%s4 + $0x210] sm:$0xff]
  %v1121 = vld [vmem:[%s4 + $0x218] sm:$0xff]
  %v1122 = vld [vmem:[%s4 + $0x220] sm:$0xff]
  %v1123 = vld [vmem:[%s4 + $0x228] sm:$0xff]
  %v1124 = vld [vmem:[%s4 + $0x230] sm:$0xff]
  %v1125 = vld [vmem:[%s4 + $0x238] sm:$0xff]
  %v1126 = vld [vmem:[%s4 + $0x240] sm:$0xff]
  %v1127 = vld [vmem:[%s4 + $0x248] sm:$0xff]
  %v1128 = vld [vmem:[%s4 + $0x250] sm:$0xff]
  %v1129 = vld [vmem:[%s4 + $0x258] sm:$0xff]
  %v1130 = vld [vmem:[%s4 + $0x260] sm:$0xff]
  %v1131 = vld [vmem:[%s4 + $0x268] sm:$0xff]
  %v1132 = vld [vmem:[%s4 + $0x270] sm:$0xff]
  %v1133 = vld [vmem:[%s4 + $0x278] sm:$0xff]
  %v1134 = vld [vmem:[%s4 + $0x280] sm:$0xff]
  %v1135 = vld [vmem:[%s4 + $0x288] sm:$0xff]
  %v1136 = vld [vmem:[%s4 + $0x290] sm:$0xff]
  %v1137 = vld [vmem:[%s4 + $0x298] sm:$0xff]
  %v1138 = vld [vmem:[%s4 + $0x2a0] sm:$0xff]
  %v1139 = vld [vmem:[%s4 + $0x2a8] sm:$0xff]
  %v1140 = vld [vmem:[%s4 + $0x2b0] sm:$0xff]
  %v1141 = vld [vmem:[%s4 + $0x2b8] sm:$0xff]
  %v1142 = vld [vmem:[%s4 + $0x2c0] sm:$0xff]
  %v1143 = vld [vmem:[%s4 + $0x2c8] sm:$0xff]
  %1144 = vxpose.xlu0.b32.start [1/16] %v994, 128
  %1145 = vxpose.xlu0.b32.cont [2/16] %v995, 128
  %1146 = vxpose.xlu0.b32.cont [3/16] %v996, 128
  %1147 = vxpose.xlu0.b32.cont [4/16] %v997, 128
  %1148 = vxpose.xlu0.b32.cont [5/16] %v998, 128
  %1149 = vxpose.xlu0.b32.cont [6/16] %v999, 128
  %1150 = vxpose.xlu0.b32.cont [7/16] %v1000, 128
  %1151 = vxpose.xlu0.b32.cont [8/16] %v1001, 128
  %1152 = vxpose.xlu0.b32.cont [9/16] %v1002, 128
  %1153 = vxpose.xlu0.b32.cont [10/16] %v1003, 128
  %1154 = vxpose.xlu0.b32.cont [11/16] %v1004, 128
  %1155 = vxpose.xlu0.b32.cont [12/16] %v1005, 128
  %1156 = vxpose.xlu0.b32.cont [13/16] %v1006, 128
  %1157 = vxpose.xlu0.b32.cont [14/16] %v1007, 128
  %1158 = vxpose.xlu0.b32.cont [15/16] %v1008, 128
  %1159 = vxpose.xlu0.b32.end [16/16] 0.0, 128
  %v1160 = vpop.trf.xlu0
  %v1161 = vpop.trf.xlu0
  %v1162 = vpop.trf.xlu0
  %v1163 = vpop.trf.xlu0
  %v1164 = vpop.trf.xlu0
  %v1165 = vpop.trf.xlu0
  %v1166 = vpop.trf.xlu0
  %v1167 = vpop.trf.xlu0
  %v1168 = vpop.trf.xlu0
  %v1169 = vpop.trf.xlu0
  %v1170 = vpop.trf.xlu0
  %v1171 = vpop.trf.xlu0
  %v1172 = vpop.trf.xlu0
  %v1173 = vpop.trf.xlu0
  %v1174 = vpop.trf.xlu0
  %v1175 = vpop.trf.xlu0
  %v1176 = vlaneseq
  %v1177 = vshrl.u32 %v1176, 7
  %v1178 = vsub.s32 0, %v1177
  %v1179 = vrot.slane %v1160, %v1178
  %v1180 = vmul.f32 %v1054, %v1179
  %v1181 = vmul.f32 %v1055, %v1179
  %v1182 = vmul.f32 %v1056, %v1179
  %v1183 = vmul.f32 %v1057, %v1179
  %v1184 = vmul.f32 %v1058, %v1179
  %v1185 = vmul.f32 %v1059, %v1179
  %v1186 = vmul.f32 %v1060, %v1179
  %v1187 = vmul.f32 %v1061, %v1179
  %v1188 = vmul.f32 %v1062, %v1179
  %v1189 = vmul.f32 %v1063, %v1179
  %v1190 = vmul.f32 %v1064, %v1179
  %v1191 = vmul.f32 %v1065, %v1179
  %v1192 = vmul.f32 %v1066, %v1179
  %v1193 = vmul.f32 %v1067, %v1179
  %v1194 = vmul.f32 %v1068, %v1179
  %v1195 = vmul.f32 %v1069, %v1179
  %v1196 = vmul.f32 %v1070, %v1179
  %v1197 = vmul.f32 %v1071, %v1179
  %v1198 = vmul.f32 %v1072, %v1179
  %v1199 = vmul.f32 %v1073, %v1179
  %v1200 = vmul.f32 %v1074, %v1179
  %v1201 = vmul.f32 %v1075, %v1179
  %v1202 = vmul.f32 %v1076, %v1179
  %v1203 = vmul.f32 %v1077, %v1179
  %v1204 = vmul.f32 %v1078, %v1179
  %v1205 = vmul.f32 %v1079, %v1179
  %v1206 = vmul.f32 %v1080, %v1179
  %v1207 = vmul.f32 %v1081, %v1179
  %v1208 = vmul.f32 %v1082, %v1179
  %v1209 = vmul.f32 %v1083, %v1179
  %v1210 = vmul.f32 %v1084, %v1179
  %v1211 = vmul.f32 %v1085, %v1179
  %v1212 = vmul.f32 %v1086, %v1179
  %v1213 = vmul.f32 %v1087, %v1179
  %v1214 = vmul.f32 %v1088, %v1179
  %v1215 = vmul.f32 %v1089, %v1179
  %v1216 = vmul.f32 %v1090, %v1179
  %v1217 = vmul.f32 %v1091, %v1179
  %v1218 = vmul.f32 %v1092, %v1179
  %v1219 = vmul.f32 %v1093, %v1179
  %v1220 = vmul.f32 %v1094, %v1179
  %v1221 = vmul.f32 %v1095, %v1179
  %v1222 = vmul.f32 %v1096, %v1179
  %v1223 = vmul.f32 %v1097, %v1179
  %v1224 = vmul.f32 %v1098, %v1179
  %v1225 = vmul.f32 %v1099, %v1179
  %v1226 = vmul.f32 %v1100, %v1179
  %v1227 = vmul.f32 %v1101, %v1179
  %v1228 = vmul.f32 %v1102, %v1179
  %v1229 = vmul.f32 %v1103, %v1179
  %v1230 = vmul.f32 %v1104, %v1179
  %v1231 = vmul.f32 %v1105, %v1179
  %v1232 = vmul.f32 %v1106, %v1179
  %v1233 = vmul.f32 %v1107, %v1179
  %v1234 = vmul.f32 %v1108, %v1179
  %v1235 = vmul.f32 %v1109, %v1179
  %v1236 = vmul.f32 %v1110, %v1179
  %v1237 = vmul.f32 %v1111, %v1179
  %v1238 = vmul.f32 %v1112, %v1179
  %v1239 = vmul.f32 %v1113, %v1179
  %v1240 = vmul.f32 %v1114, %v1179
  %v1241 = vmul.f32 %v1115, %v1179
  %v1242 = vmul.f32 %v1116, %v1179
  %v1243 = vmul.f32 %v1117, %v1179
  %v1244 = vmul.f32 %v1118, %v1179
  %v1245 = vmul.f32 %v1119, %v1179
  %v1246 = vmul.f32 %v1120, %v1179
  %v1247 = vmul.f32 %v1121, %v1179
  %v1248 = vmul.f32 %v1122, %v1179
  %v1249 = vmul.f32 %v1123, %v1179
  %v1250 = vmul.f32 %v1124, %v1179
  %v1251 = vmul.f32 %v1125, %v1179
  %v1252 = vmul.f32 %v1126, %v1179
  %v1253 = vmul.f32 %v1127, %v1179
  %v1254 = vmul.f32 %v1128, %v1179
  %v1255 = vmul.f32 %v1129, %v1179
  %v1256 = vmul.f32 %v1130, %v1179
  %v1257 = vmul.f32 %v1131, %v1179
  %v1258 = vmul.f32 %v1132, %v1179
  %v1259 = vmul.f32 %v1133, %v1179
  %v1260 = vmul.f32 %v1134, %v1179
  %v1261 = vmul.f32 %v1135, %v1179
  %v1262 = vmul.f32 %v1136, %v1179
  %v1263 = vmul.f32 %v1137, %v1179
  %v1264 = vmul.f32 %v1138, %v1179
  %v1265 = vmul.f32 %v1139, %v1179
  %v1266 = vmul.f32 %v1140, %v1179
  %v1267 = vmul.f32 %v1141, %v1179
  %v1268 = vmul.f32 %v1142, %v1179
  %v1269 = vmul.f32 %v1143, %v1179
  %vm1270 = vcmask 982016
  %v1272 = vsel %vm1270, %v1054, 0
  %v1275 = vsel %vm1270, %v1055, 0
  %v1278 = vsel %vm1270, %v1056, 0
  %v1281 = vsel %vm1270, %v1057, 0
  %v1284 = vsel %vm1270, %v1058, 0
  %v1287 = vsel %vm1270, %v1059, 0
  %v1290 = vsel %vm1270, %v1060, 0
  %v1293 = vsel %vm1270, %v1061, 0
  %v1296 = vsel %vm1270, %v1062, 0
  %v1299 = vsel %vm1270, %v1063, 0
  %v1302 = vsel %vm1270, %v1064, 0
  %v1305 = vsel %vm1270, %v1065, 0
  %v1308 = vsel %vm1270, %v1066, 0
  %v1311 = vsel %vm1270, %v1067, 0
  %v1314 = vsel %vm1270, %v1068, 0
  %v1317 = vsel %vm1270, %v1069, 0
  %v1320 = vsel %vm1270, %v1070, 0
  %v1323 = vsel %vm1270, %v1071, 0
  %v1326 = vsel %vm1270, %v1072, 0
  %v1329 = vsel %vm1270, %v1073, 0
  %v1332 = vsel %vm1270, %v1074, 0
  %v1335 = vsel %vm1270, %v1075, 0
  %v1338 = vsel %vm1270, %v1076, 0
  %v1341 = vsel %vm1270, %v1077, 0
  %v1344 = vsel %vm1270, %v1078, 0
  %v1347 = vsel %vm1270, %v1079, 0
  %v1350 = vsel %vm1270, %v1080, 0
  %v1353 = vsel %vm1270, %v1081, 0
  %v1356 = vsel %vm1270, %v1082, 0
  %v1359 = vsel %vm1270, %v1083, 0
  %v1362 = vsel %vm1270, %v1084, 0
  %v1365 = vsel %vm1270, %v1085, 0
  %v1368 = vsel %vm1270, %v1086, 0
  %v1371 = vsel %vm1270, %v1087, 0
  %v1374 = vsel %vm1270, %v1088, 0
  %v1377 = vsel %vm1270, %v1089, 0
  %v1380 = vsel %vm1270, %v1090, 0
  %v1383 = vsel %vm1270, %v1091, 0
  %v1386 = vsel %vm1270, %v1092, 0
  %v1389 = vsel %vm1270, %v1093, 0
  %v1392 = vsel %vm1270, %v1094, 0
  %v1395 = vsel %vm1270, %v1095, 0
  %v1398 = vsel %vm1270, %v1096, 0
  %v1401 = vsel %vm1270, %v1097, 0
  %v1404 = vsel %vm1270, %v1098, 0
  %v1407 = vsel %vm1270, %v1099, 0
  %v1410 = vsel %vm1270, %v1100, 0
  %v1413 = vsel %vm1270, %v1101, 0
  %v1416 = vsel %vm1270, %v1102, 0
  %v1419 = vsel %vm1270, %v1103, 0
  %v1422 = vsel %vm1270, %v1104, 0
  %v1425 = vsel %vm1270, %v1105, 0
  %v1428 = vsel %vm1270, %v1106, 0
  %v1431 = vsel %vm1270, %v1107, 0
  %v1434 = vsel %vm1270, %v1108, 0
  %v1437 = vsel %vm1270, %v1109, 0
  %v1440 = vsel %vm1270, %v1110, 0
  %v1443 = vsel %vm1270, %v1111, 0
  %v1446 = vsel %vm1270, %v1112, 0
  %v1449 = vsel %vm1270, %v1113, 0
  %v1452 = vsel %vm1270, %v1114, 0
  %v1455 = vsel %vm1270, %v1115, 0
  %v1458 = vsel %vm1270, %v1116, 0
  %v1461 = vsel %vm1270, %v1117, 0
  %v1464 = vsel %vm1270, %v1118, 0
  %v1467 = vsel %vm1270, %v1119, 0
  %v1470 = vsel %vm1270, %v1120, 0
  %v1473 = vsel %vm1270, %v1121, 0
  %v1476 = vsel %vm1270, %v1122, 0
  %v1479 = vsel %vm1270, %v1123, 0
  %v1482 = vsel %vm1270, %v1124, 0
  %v1485 = vsel %vm1270, %v1125, 0
  %v1488 = vsel %vm1270, %v1126, 0
  %v1491 = vsel %vm1270, %v1127, 0
  %v1494 = vsel %vm1270, %v1128, 0
  %v1497 = vsel %vm1270, %v1129, 0
  %v1500 = vsel %vm1270, %v1130, 0
  %v1503 = vsel %vm1270, %v1131, 0
  %v1506 = vsel %vm1270, %v1132, 0
  %v1509 = vsel %vm1270, %v1133, 0
  %v1512 = vsel %vm1270, %v1134, 0
  %v1515 = vsel %vm1270, %v1135, 0
  %v1518 = vsel %vm1270, %v1136, 0
  %v1521 = vsel %vm1270, %v1137, 0
  %v1524 = vsel %vm1270, %v1138, 0
  %v1527 = vsel %vm1270, %v1139, 0
  %v1530 = vsel %vm1270, %v1140, 0
  %v1533 = vsel %vm1270, %v1141, 0
  %v1536 = vsel %vm1270, %v1142, 0
  %v1539 = vsel %vm1270, %v1143, 0
  %1541 = vmatprep.subr.mxu0 0.0
  %1542 = vmatpush1.msra.mxu0 0.0
  %1543 = vmatprep.subr.mxu0 0.0
  %1544 = vmatpush1.msra.mxu0 %v1053
  %1545 = vmatprep.subr.mxu0 0.0
  %1546 = vmatpush1.msra.mxu0 %v1052
  %1547 = vmatprep.subr.mxu0 0.0
  %1548 = vmatpush1.msra.mxu0 %v1051
  %1549 = vmatprep.subr.mxu0 0.0
  %1550 = vmatpush1.msra.mxu0 %v1050
  %1551 = vmatprep.subr.mxu0 0.0
  %1552 = vmatpush1.msra.mxu0 %v1049
  %1553 = vmatprep.subr.mxu0 0.0
  %1554 = vmatpush1.msra.mxu0 %v1048
  %1555 = vmatprep.subr.mxu0 0.0
  %1556 = vmatpush1.msra.mxu0 %v1047
  %1557 = vmatprep.subr.mxu0 0.0
  %1558 = vmatpush1.msra.mxu0 %v1046
  %1559 = vmatprep.subr.mxu0 0.0
  %1560 = vmatpush1.msra.mxu0 %v1045
  %1561 = vmatprep.subr.mxu0 0.0
  %1562 = vmatpush1.msra.mxu0 %v1044
  %1563 = vmatprep.subr.mxu0 0.0
  %1564 = vmatpush1.msra.mxu0 %v1043
  %1565 = vmatprep.subr.mxu0 0.0
  %1566 = vmatpush1.msra.mxu0 %v1042
  %1567 = vmatprep.subr.mxu0 0.0
  %1568 = vmatpush1.msra.mxu0 %v1041
  %1569 = vmatprep.subr.mxu0 0.0
  %1570 = vmatpush1.msra.mxu0 %v1040
  %1571 = vmatprep.subr.mxu0 0.0
  %1572 = vmatpush1.msra.mxu0 %v1039
  %1573 = vmatprep.subr.mxu0 0.0
  %1574 = vmatpush2.msra.mxu0 0.0
  %1575 = vmatprep.subr.mxu0 0.0
  %1576 = vmatpush2.msra.mxu0 0.0
  %1577 = vmatprep.subr.mxu0 0.0
  %1578 = vmatpush2.msra.mxu0 0.0
  %1579 = vmatprep.subr.mxu0 0.0
  %1580 = vmatpush2.msra.mxu0 0.0
  %1581 = vmatprep.subr.mxu0 0.0
  %1582 = vmatpush2.msra.mxu0 0.0
  %1583 = vmatprep.subr.mxu0 0.0
  %1584 = vmatpush2.msra.mxu0 0.0
  %1585 = vmatprep.subr.mxu0 0.0
  %1586 = vmatpush2.msra.mxu0 0.0
  %1587 = vmatprep.subr.mxu0 0.0
  %1588 = vmatpush2.msra.mxu0 0.0
  %1589 = vmatprep.subr.mxu0 0.0
  %1590 = vmatpush2.msra.mxu0 0.0
  %1591 = vmatprep.subr.mxu0 0.0
  %1592 = vmatpush2.msra.mxu0 0.0
  %1593 = vmatprep.subr.mxu0 0.0
  %1594 = vmatpush2.msra.mxu0 0.0
  %1595 = vmatprep.subr.mxu0 0.0
  %1596 = vmatpush2.msra.mxu0 0.0
  %1597 = vmatprep.subr.mxu0 0.0
  %1598 = vmatpush2.msra.mxu0 0.0
  %1599 = vmatprep.subr.mxu0 0.0
  %1600 = vmatpush2.msra.mxu0 0.0
  %1601 = vmatprep.subr.mxu0 0.0
  %1602 = vmatpush2.msra.mxu0 0.0
  %1603 = vmatprep.subr.mxu0 0.0
  %1604 = vmatpush2.msra.mxu0 0.0
  %1605 = vmatprep.mubr.f32.mxu0 0.0
  %1606 = vmatmul.mubr.f32.gmra.mxu0 %v1272
  %v1607 = vpop.f32.mrf.mxu0
  %v1608 = vadd.f32 0.0, %v1607
  %v1609 = vpop.f32.mrf.mxu0
  %1610 = vmatprep.mubr.f32.mxu0 0.0
  %1611 = vmatmul.mubr.f32.gmra.mxu0 %v1275
  %v1612 = vpop.f32.mrf.mxu0
  %v1613 = vadd.f32 0.0, %v1612
  %v1614 = vpop.f32.mrf.mxu0
  %1615 = vmatprep.mubr.f32.mxu0 0.0
  %1616 = vmatmul.mubr.f32.gmra.mxu0 %v1278
  %v1617 = vpop.f32.mrf.mxu0
  %v1618 = vadd.f32 0.0, %v1617
  %v1619 = vpop.f32.mrf.mxu0
  %1620 = vmatprep.mubr.f32.mxu0 0.0
  %1621 = vmatmul.mubr.f32.gmra.mxu0 %v1281
  %v1622 = vpop.f32.mrf.mxu0
  %v1623 = vadd.f32 0.0, %v1622
  %v1624 = vpop.f32.mrf.mxu0
  %1625 = vmatprep.mubr.f32.mxu0 0.0
  %1626 = vmatmul.mubr.f32.gmra.mxu0 %v1284
  %v1627 = vpop.f32.mrf.mxu0
  %v1628 = vadd.f32 0.0, %v1627
  %v1629 = vpop.f32.mrf.mxu0
  %1630 = vmatprep.mubr.f32.mxu0 0.0
  %1631 = vmatmul.mubr.f32.gmra.mxu0 %v1287
  %v1632 = vpop.f32.mrf.mxu0
  %v1633 = vadd.f32 0.0, %v1632
  %v1634 = vpop.f32.mrf.mxu0
  %1635 = vmatprep.mubr.f32.mxu0 0.0
  %1636 = vmatmul.mubr.f32.gmra.mxu0 %v1290
  %v1637 = vpop.f32.mrf.mxu0
  %v1638 = vadd.f32 0.0, %v1637
  %v1639 = vpop.f32.mrf.mxu0
  %1640 = vmatprep.mubr.f32.mxu0 0.0
  %1641 = vmatmul.mubr.f32.gmra.mxu0 %v1293
  %v1642 = vpop.f32.mrf.mxu0
  %v1643 = vadd.f32 0.0, %v1642
  %v1644 = vpop.f32.mrf.mxu0
  %1645 = vmatprep.mubr.f32.mxu0 0.0
  %1646 = vmatmul.mubr.f32.gmra.mxu0 %v1296
  %v1647 = vpop.f32.mrf.mxu0
  %v1648 = vadd.f32 0.0, %v1647
  %v1649 = vpop.f32.mrf.mxu0
  %1650 = vmatprep.mubr.f32.mxu0 0.0
  %1651 = vmatmul.mubr.f32.gmra.mxu0 %v1299
  %v1652 = vpop.f32.mrf.mxu0
  %v1653 = vadd.f32 0.0, %v1652
  %v1654 = vpop.f32.mrf.mxu0
  %1655 = vmatprep.mubr.f32.mxu0 0.0
  %1656 = vmatmul.mubr.f32.gmra.mxu0 %v1302
  %v1657 = vpop.f32.mrf.mxu0
  %v1658 = vadd.f32 0.0, %v1657
  %v1659 = vpop.f32.mrf.mxu0
  %1660 = vmatprep.mubr.f32.mxu0 0.0
  %1661 = vmatmul.mubr.f32.gmra.mxu0 %v1305
  %v1662 = vpop.f32.mrf.mxu0
  %v1663 = vadd.f32 0.0, %v1662
  %v1664 = vpop.f32.mrf.mxu0
  %1665 = vmatprep.mubr.f32.mxu0 0.0
  %1666 = vmatmul.mubr.f32.gmra.mxu0 %v1308
  %v1667 = vpop.f32.mrf.mxu0
  %v1668 = vadd.f32 0.0, %v1667
  %v1669 = vpop.f32.mrf.mxu0
  %1670 = vmatprep.mubr.f32.mxu0 0.0
  %1671 = vmatmul.mubr.f32.gmra.mxu0 %v1311
  %v1672 = vpop.f32.mrf.mxu0
  %v1673 = vadd.f32 0.0, %v1672
  %v1674 = vpop.f32.mrf.mxu0
  %1675 = vmatprep.mubr.f32.mxu0 0.0
  %1676 = vmatmul.mubr.f32.gmra.mxu0 %v1314
  %v1677 = vpop.f32.mrf.mxu0
  %v1678 = vadd.f32 0.0, %v1677
  %v1679 = vpop.f32.mrf.mxu0
  %1680 = vmatprep.mubr.f32.mxu0 0.0
  %1681 = vmatmul.mubr.f32.gmra.mxu0 %v1317
  %v1682 = vpop.f32.mrf.mxu0
  %v1683 = vadd.f32 0.0, %v1682
  %v1684 = vpop.f32.mrf.mxu0
  %1685 = vmatprep.mubr.f32.mxu0 0.0
  %1686 = vmatmul.mubr.f32.gmra.mxu0 %v1320
  %v1687 = vpop.f32.mrf.mxu0
  %v1688 = vadd.f32 0.0, %v1687
  %v1689 = vpop.f32.mrf.mxu0
  %1690 = vmatprep.mubr.f32.mxu0 0.0
  %1691 = vmatmul.mubr.f32.gmra.mxu0 %v1323
  %v1692 = vpop.f32.mrf.mxu0
  %v1693 = vadd.f32 0.0, %v1692
  %v1694 = vpop.f32.mrf.mxu0
  %1695 = vmatprep.mubr.f32.mxu0 0.0
  %1696 = vmatmul.mubr.f32.gmra.mxu0 %v1326
  %v1697 = vpop.f32.mrf.mxu0
  %v1698 = vadd.f32 0.0, %v1697
  %v1699 = vpop.f32.mrf.mxu0
  %1700 = vmatprep.mubr.f32.mxu0 0.0
  %1701 = vmatmul.mubr.f32.gmra.mxu0 %v1329
  %v1702 = vpop.f32.mrf.mxu0
  %v1703 = vadd.f32 0.0, %v1702
  %v1704 = vpop.f32.mrf.mxu0
  %1705 = vmatprep.mubr.f32.mxu0 0.0
  %1706 = vmatmul.mubr.f32.gmra.mxu0 %v1332
  %v1707 = vpop.f32.mrf.mxu0
  %v1708 = vadd.f32 0.0, %v1707
  %v1709 = vpop.f32.mrf.mxu0
  %1710 = vmatprep.mubr.f32.mxu0 0.0
  %1711 = vmatmul.mubr.f32.gmra.mxu0 %v1335
  %v1712 = vpop.f32.mrf.mxu0
  %v1713 = vadd.f32 0.0, %v1712
  %v1714 = vpop.f32.mrf.mxu0
  %1715 = vmatprep.mubr.f32.mxu0 0.0
  %1716 = vmatmul.mubr.f32.gmra.mxu0 %v1338
  %v1717 = vpop.f32.mrf.mxu0
  %v1718 = vadd.f32 0.0, %v1717
  %v1719 = vpop.f32.mrf.mxu0
  %1720 = vmatprep.mubr.f32.mxu0 0.0
  %1721 = vmatmul.mubr.f32.gmra.mxu0 %v1341
  %v1722 = vpop.f32.mrf.mxu0
  %v1723 = vadd.f32 0.0, %v1722
  %v1724 = vpop.f32.mrf.mxu0
  %1725 = vmatprep.mubr.f32.mxu0 0.0
  %1726 = vmatmul.mubr.f32.gmra.mxu0 %v1344
  %v1727 = vpop.f32.mrf.mxu0
  %v1728 = vadd.f32 0.0, %v1727
  %v1729 = vpop.f32.mrf.mxu0
  %1730 = vmatprep.mubr.f32.mxu0 0.0
  %1731 = vmatmul.mubr.f32.gmra.mxu0 %v1347
  %v1732 = vpop.f32.mrf.mxu0
  %v1733 = vadd.f32 0.0, %v1732
  %v1734 = vpop.f32.mrf.mxu0
  %1735 = vmatprep.mubr.f32.mxu0 0.0
  %1736 = vmatmul.mubr.f32.gmra.mxu0 %v1350
  %v1737 = vpop.f32.mrf.mxu0
  %v1738 = vadd.f32 0.0, %v1737
  %v1739 = vpop.f32.mrf.mxu0
  %1740 = vmatprep.mubr.f32.mxu0 0.0
  %1741 = vmatmul.mubr.f32.gmra.mxu0 %v1353
  %v1742 = vpop.f32.mrf.mxu0
  %v1743 = vadd.f32 0.0, %v1742
  %v1744 = vpop.f32.mrf.mxu0
  %1745 = vmatprep.mubr.f32.mxu0 0.0
  %1746 = vmatmul.mubr.f32.gmra.mxu0 %v1356
  %v1747 = vpop.f32.mrf.mxu0
  %v1748 = vadd.f32 0.0, %v1747
  %v1749 = vpop.f32.mrf.mxu0
  %1750 = vmatprep.mubr.f32.mxu0 0.0
  %1751 = vmatmul.mubr.f32.gmra.mxu0 %v1359
  %v1752 = vpop.f32.mrf.mxu0
  %v1753 = vadd.f32 0.0, %v1752
  %v1754 = vpop.f32.mrf.mxu0
  %1755 = vmatprep.mubr.f32.mxu0 0.0
  %1756 = vmatmul.mubr.f32.gmra.mxu0 %v1362
  %v1757 = vpop.f32.mrf.mxu0
  %v1758 = vadd.f32 0.0, %v1757
  %v1759 = vpop.f32.mrf.mxu0
  %1760 = vmatprep.mubr.f32.mxu0 0.0
  %1761 = vmatmul.mubr.f32.gmra.mxu0 %v1365
  %v1762 = vpop.f32.mrf.mxu0
  %v1763 = vadd.f32 0.0, %v1762
  %v1764 = vpop.f32.mrf.mxu0
  %1765 = vmatprep.mubr.f32.mxu0 0.0
  %1766 = vmatmul.mubr.f32.gmra.mxu0 %v1368
  %v1767 = vpop.f32.mrf.mxu0
  %v1768 = vadd.f32 0.0, %v1767
  %v1769 = vpop.f32.mrf.mxu0
  %1770 = vmatprep.mubr.f32.mxu0 0.0
  %1771 = vmatmul.mubr.f32.gmra.mxu0 %v1371
  %v1772 = vpop.f32.mrf.mxu0
  %v1773 = vadd.f32 0.0, %v1772
  %v1774 = vpop.f32.mrf.mxu0
  %1775 = vmatprep.mubr.f32.mxu0 0.0
  %1776 = vmatmul.mubr.f32.gmra.mxu0 %v1374
  %v1777 = vpop.f32.mrf.mxu0
  %v1778 = vadd.f32 0.0, %v1777
  %v1779 = vpop.f32.mrf.mxu0
  %1780 = vmatprep.mubr.f32.mxu0 0.0
  %1781 = vmatmul.mubr.f32.gmra.mxu0 %v1377
  %v1782 = vpop.f32.mrf.mxu0
  %v1783 = vadd.f32 0.0, %v1782
  %v1784 = vpop.f32.mrf.mxu0
  %1785 = vmatprep.mubr.f32.mxu0 0.0
  %1786 = vmatmul.mubr.f32.gmra.mxu0 %v1380
  %v1787 = vpop.f32.mrf.mxu0
  %v1788 = vadd.f32 0.0, %v1787
  %v1789 = vpop.f32.mrf.mxu0
  %1790 = vmatprep.mubr.f32.mxu0 0.0
  %1791 = vmatmul.mubr.f32.gmra.mxu0 %v1383
  %v1792 = vpop.f32.mrf.mxu0
  %v1793 = vadd.f32 0.0, %v1792
  %v1794 = vpop.f32.mrf.mxu0
  %1795 = vmatprep.mubr.f32.mxu0 0.0
  %1796 = vmatmul.mubr.f32.gmra.mxu0 %v1386
  %v1797 = vpop.f32.mrf.mxu0
  %v1798 = vadd.f32 0.0, %v1797
  %v1799 = vpop.f32.mrf.mxu0
  %1800 = vmatprep.mubr.f32.mxu0 0.0
  %1801 = vmatmul.mubr.f32.gmra.mxu0 %v1389
  %v1802 = vpop.f32.mrf.mxu0
  %v1803 = vadd.f32 0.0, %v1802
  %v1804 = vpop.f32.mrf.mxu0
  %1805 = vmatprep.mubr.f32.mxu0 0.0
  %1806 = vmatmul.mubr.f32.gmra.mxu0 %v1392
  %v1807 = vpop.f32.mrf.mxu0
  %v1808 = vadd.f32 0.0, %v1807
  %v1809 = vpop.f32.mrf.mxu0
  %1810 = vmatprep.mubr.f32.mxu0 0.0
  %1811 = vmatmul.mubr.f32.gmra.mxu0 %v1395
  %v1812 = vpop.f32.mrf.mxu0
  %v1813 = vadd.f32 0.0, %v1812
  %v1814 = vpop.f32.mrf.mxu0
  %1815 = vmatprep.mubr.f32.mxu0 0.0
  %1816 = vmatmul.mubr.f32.gmra.mxu0 %v1398
  %v1817 = vpop.f32.mrf.mxu0
  %v1818 = vadd.f32 0.0, %v1817
  %v1819 = vpop.f32.mrf.mxu0
  %1820 = vmatprep.mubr.f32.mxu0 0.0
  %1821 = vmatmul.mubr.f32.gmra.mxu0 %v1401
  %v1822 = vpop.f32.mrf.mxu0
  %v1823 = vadd.f32 0.0, %v1822
  %v1824 = vpop.f32.mrf.mxu0
  %1825 = vmatprep.mubr.f32.mxu0 0.0
  %1826 = vmatmul.mubr.f32.gmra.mxu0 %v1404
  %v1827 = vpop.f32.mrf.mxu0
  %v1828 = vadd.f32 0.0, %v1827
  %v1829 = vpop.f32.mrf.mxu0
  %1830 = vmatprep.mubr.f32.mxu0 0.0
  %1831 = vmatmul.mubr.f32.gmra.mxu0 %v1407
  %v1832 = vpop.f32.mrf.mxu0
  %v1833 = vadd.f32 0.0, %v1832
  %v1834 = vpop.f32.mrf.mxu0
  %1835 = vmatprep.mubr.f32.mxu0 0.0
  %1836 = vmatmul.mubr.f32.gmra.mxu0 %v1410
  %v1837 = vpop.f32.mrf.mxu0
  %v1838 = vadd.f32 0.0, %v1837
  %v1839 = vpop.f32.mrf.mxu0
  %1840 = vmatprep.mubr.f32.mxu0 0.0
  %1841 = vmatmul.mubr.f32.gmra.mxu0 %v1413
  %v1842 = vpop.f32.mrf.mxu0
  %v1843 = vadd.f32 0.0, %v1842
  %v1844 = vpop.f32.mrf.mxu0
  %1845 = vmatprep.mubr.f32.mxu0 0.0
  %1846 = vmatmul.mubr.f32.gmra.mxu0 %v1416
  %v1847 = vpop.f32.mrf.mxu0
  %v1848 = vadd.f32 0.0, %v1847
  %v1849 = vpop.f32.mrf.mxu0
  %1850 = vmatprep.mubr.f32.mxu0 0.0
  %1851 = vmatmul.mubr.f32.gmra.mxu0 %v1419
  %v1852 = vpop.f32.mrf.mxu0
  %v1853 = vadd.f32 0.0, %v1852
  %v1854 = vpop.f32.mrf.mxu0
  %1855 = vmatprep.mubr.f32.mxu0 0.0
  %1856 = vmatmul.mubr.f32.gmra.mxu0 %v1422
  %v1857 = vpop.f32.mrf.mxu0
  %v1858 = vadd.f32 0.0, %v1857
  %v1859 = vpop.f32.mrf.mxu0
  %1860 = vmatprep.mubr.f32.mxu0 0.0
  %1861 = vmatmul.mubr.f32.gmra.mxu0 %v1425
  %v1862 = vpop.f32.mrf.mxu0
  %v1863 = vadd.f32 0.0, %v1862
  %v1864 = vpop.f32.mrf.mxu0
  %1865 = vmatprep.mubr.f32.mxu0 0.0
  %1866 = vmatmul.mubr.f32.gmra.mxu0 %v1428
  %v1867 = vpop.f32.mrf.mxu0
  %v1868 = vadd.f32 0.0, %v1867
  %v1869 = vpop.f32.mrf.mxu0
  %1870 = vmatprep.mubr.f32.mxu0 0.0
  %1871 = vmatmul.mubr.f32.gmra.mxu0 %v1431
  %v1872 = vpop.f32.mrf.mxu0
  %v1873 = vadd.f32 0.0, %v1872
  %v1874 = vpop.f32.mrf.mxu0
  %1875 = vmatprep.mubr.f32.mxu0 0.0
  %1876 = vmatmul.mubr.f32.gmra.mxu0 %v1434
  %v1877 = vpop.f32.mrf.mxu0
  %v1878 = vadd.f32 0.0, %v1877
  %v1879 = vpop.f32.mrf.mxu0
  %1880 = vmatprep.mubr.f32.mxu0 0.0
  %1881 = vmatmul.mubr.f32.gmra.mxu0 %v1437
  %v1882 = vpop.f32.mrf.mxu0
  %v1883 = vadd.f32 0.0, %v1882
  %v1884 = vpop.f32.mrf.mxu0
  %1885 = vmatprep.mubr.f32.mxu0 0.0
  %1886 = vmatmul.mubr.f32.gmra.mxu0 %v1440
  %v1887 = vpop.f32.mrf.mxu0
  %v1888 = vadd.f32 0.0, %v1887
  %v1889 = vpop.f32.mrf.mxu0
  %1890 = vmatprep.mubr.f32.mxu0 0.0
  %1891 = vmatmul.mubr.f32.gmra.mxu0 %v1443
  %v1892 = vpop.f32.mrf.mxu0
  %v1893 = vadd.f32 0.0, %v1892
  %v1894 = vpop.f32.mrf.mxu0
  %1895 = vmatprep.mubr.f32.mxu0 0.0
  %1896 = vmatmul.mubr.f32.gmra.mxu0 %v1446
  %v1897 = vpop.f32.mrf.mxu0
  %v1898 = vadd.f32 0.0, %v1897
  %v1899 = vpop.f32.mrf.mxu0
  %1900 = vmatprep.mubr.f32.mxu0 0.0
  %1901 = vmatmul.mubr.f32.gmra.mxu0 %v1449
  %v1902 = vpop.f32.mrf.mxu0
  %v1903 = vadd.f32 0.0, %v1902
  %v1904 = vpop.f32.mrf.mxu0
  %1905 = vmatprep.mubr.f32.mxu0 0.0
  %1906 = vmatmul.mubr.f32.gmra.mxu0 %v1452
  %v1907 = vpop.f32.mrf.mxu0
  %v1908 = vadd.f32 0.0, %v1907
  %v1909 = vpop.f32.mrf.mxu0
  %1910 = vmatprep.mubr.f32.mxu0 0.0
  %1911 = vmatmul.mubr.f32.gmra.mxu0 %v1455
  %v1912 = vpop.f32.mrf.mxu0
  %v1913 = vadd.f32 0.0, %v1912
  %v1914 = vpop.f32.mrf.mxu0
  %1915 = vmatprep.mubr.f32.mxu0 0.0
  %1916 = vmatmul.mubr.f32.gmra.mxu0 %v1458
  %v1917 = vpop.f32.mrf.mxu0
  %v1918 = vadd.f32 0.0, %v1917
  %v1919 = vpop.f32.mrf.mxu0
  %1920 = vmatprep.mubr.f32.mxu0 0.0
  %1921 = vmatmul.mubr.f32.gmra.mxu0 %v1461
  %v1922 = vpop.f32.mrf.mxu0
  %v1923 = vadd.f32 0.0, %v1922
  %v1924 = vpop.f32.mrf.mxu0
  %1925 = vmatprep.mubr.f32.mxu0 0.0
  %1926 = vmatmul.mubr.f32.gmra.mxu0 %v1464
  %v1927 = vpop.f32.mrf.mxu0
  %v1928 = vadd.f32 0.0, %v1927
  %v1929 = vpop.f32.mrf.mxu0
  %1930 = vmatprep.mubr.f32.mxu0 0.0
  %1931 = vmatmul.mubr.f32.gmra.mxu0 %v1467
  %v1932 = vpop.f32.mrf.mxu0
  %v1933 = vadd.f32 0.0, %v1932
  %v1934 = vpop.f32.mrf.mxu0
  %1935 = vmatprep.mubr.f32.mxu0 0.0
  %1936 = vmatmul.mubr.f32.gmra.mxu0 %v1470
  %v1937 = vpop.f32.mrf.mxu0
  %v1938 = vadd.f32 0.0, %v1937
  %v1939 = vpop.f32.mrf.mxu0
  %1940 = vmatprep.mubr.f32.mxu0 0.0
  %1941 = vmatmul.mubr.f32.gmra.mxu0 %v1473
  %v1942 = vpop.f32.mrf.mxu0
  %v1943 = vadd.f32 0.0, %v1942
  %v1944 = vpop.f32.mrf.mxu0
  %1945 = vmatprep.mubr.f32.mxu0 0.0
  %1946 = vmatmul.mubr.f32.gmra.mxu0 %v1476
  %v1947 = vpop.f32.mrf.mxu0
  %v1948 = vadd.f32 0.0, %v1947
  %v1949 = vpop.f32.mrf.mxu0
  %1950 = vmatprep.mubr.f32.mxu0 0.0
  %1951 = vmatmul.mubr.f32.gmra.mxu0 %v1479
  %v1952 = vpop.f32.mrf.mxu0
  %v1953 = vadd.f32 0.0, %v1952
  %v1954 = vpop.f32.mrf.mxu0
  %1955 = vmatprep.mubr.f32.mxu0 0.0
  %1956 = vmatmul.mubr.f32.gmra.mxu0 %v1482
  %v1957 = vpop.f32.mrf.mxu0
  %v1958 = vadd.f32 0.0, %v1957
  %v1959 = vpop.f32.mrf.mxu0
  %1960 = vmatprep.mubr.f32.mxu0 0.0
  %1961 = vmatmul.mubr.f32.gmra.mxu0 %v1485
  %v1962 = vpop.f32.mrf.mxu0
  %v1963 = vadd.f32 0.0, %v1962
  %v1964 = vpop.f32.mrf.mxu0
  %1965 = vmatprep.mubr.f32.mxu0 0.0
  %1966 = vmatmul.mubr.f32.gmra.mxu0 %v1488
  %v1967 = vpop.f32.mrf.mxu0
  %v1968 = vadd.f32 0.0, %v1967
  %v1969 = vpop.f32.mrf.mxu0
  %1970 = vmatprep.mubr.f32.mxu0 0.0
  %1971 = vmatmul.mubr.f32.gmra.mxu0 %v1491
  %v1972 = vpop.f32.mrf.mxu0
  %v1973 = vadd.f32 0.0, %v1972
  %v1974 = vpop.f32.mrf.mxu0
  %1975 = vmatprep.mubr.f32.mxu0 0.0
  %1976 = vmatmul.mubr.f32.gmra.mxu0 %v1494
  %v1977 = vpop.f32.mrf.mxu0
  %v1978 = vadd.f32 0.0, %v1977
  %v1979 = vpop.f32.mrf.mxu0
  %1980 = vmatprep.mubr.f32.mxu0 0.0
  %1981 = vmatmul.mubr.f32.gmra.mxu0 %v1497
  %v1982 = vpop.f32.mrf.mxu0
  %v1983 = vadd.f32 0.0, %v1982
  %v1984 = vpop.f32.mrf.mxu0
  %1985 = vmatprep.mubr.f32.mxu0 0.0
  %1986 = vmatmul.mubr.f32.gmra.mxu0 %v1500
  %v1987 = vpop.f32.mrf.mxu0
  %v1988 = vadd.f32 0.0, %v1987
  %v1989 = vpop.f32.mrf.mxu0
  %1990 = vmatprep.mubr.f32.mxu0 0.0
  %1991 = vmatmul.mubr.f32.gmra.mxu0 %v1503
  %v1992 = vpop.f32.mrf.mxu0
  %v1993 = vadd.f32 0.0, %v1992
  %v1994 = vpop.f32.mrf.mxu0
  %1995 = vmatprep.mubr.f32.mxu0 0.0
  %1996 = vmatmul.mubr.f32.gmra.mxu0 %v1506
  %v1997 = vpop.f32.mrf.mxu0
  %v1998 = vadd.f32 0.0, %v1997
  %v1999 = vpop.f32.mrf.mxu0
  %2000 = vmatprep.mubr.f32.mxu0 0.0
  %2001 = vmatmul.mubr.f32.gmra.mxu0 %v1509
  %v2002 = vpop.f32.mrf.mxu0
  %v2003 = vadd.f32 0.0, %v2002
  %v2004 = vpop.f32.mrf.mxu0
  %2005 = vmatprep.mubr.f32.mxu0 0.0
  %2006 = vmatmul.mubr.f32.gmra.mxu0 %v1512
  %v2007 = vpop.f32.mrf.mxu0
  %v2008 = vadd.f32 0.0, %v2007
  %v2009 = vpop.f32.mrf.mxu0
  %2010 = vmatprep.mubr.f32.mxu0 0.0
  %2011 = vmatmul.mubr.f32.gmra.mxu0 %v1515
  %v2012 = vpop.f32.mrf.mxu0
  %v2013 = vadd.f32 0.0, %v2012
  %v2014 = vpop.f32.mrf.mxu0
  %2015 = vmatprep.mubr.f32.mxu0 0.0
  %2016 = vmatmul.mubr.f32.gmra.mxu0 %v1518
  %v2017 = vpop.f32.mrf.mxu0
  %v2018 = vadd.f32 0.0, %v2017
  %v2019 = vpop.f32.mrf.mxu0
  %2020 = vmatprep.mubr.f32.mxu0 0.0
  %2021 = vmatmul.mubr.f32.gmra.mxu0 %v1521
  %v2022 = vpop.f32.mrf.mxu0
  %v2023 = vadd.f32 0.0, %v2022
  %v2024 = vpop.f32.mrf.mxu0
  %2025 = vmatprep.mubr.f32.mxu0 0.0
  %2026 = vmatmul.mubr.f32.gmra.mxu0 %v1524
  %v2027 = vpop.f32.mrf.mxu0
  %v2028 = vadd.f32 0.0, %v2027
  %v2029 = vpop.f32.mrf.mxu0
  %2030 = vmatprep.mubr.f32.mxu0 0.0
  %2031 = vmatmul.mubr.f32.gmra.mxu0 %v1527
  %v2032 = vpop.f32.mrf.mxu0
  %v2033 = vadd.f32 0.0, %v2032
  %v2034 = vpop.f32.mrf.mxu0
  %2035 = vmatprep.mubr.f32.mxu0 0.0
  %2036 = vmatmul.mubr.f32.gmra.mxu0 %v1530
  %v2037 = vpop.f32.mrf.mxu0
  %v2038 = vadd.f32 0.0, %v2037
  %v2039 = vpop.f32.mrf.mxu0
  %2040 = vmatprep.mubr.f32.mxu0 0.0
  %2041 = vmatmul.mubr.f32.gmra.mxu0 %v1533
  %v2042 = vpop.f32.mrf.mxu0
  %v2043 = vadd.f32 0.0, %v2042
  %v2044 = vpop.f32.mrf.mxu0
  %2045 = vmatprep.mubr.f32.mxu0 0.0
  %2046 = vmatmul.mubr.f32.gmra.mxu0 %v1536
  %v2047 = vpop.f32.mrf.mxu0
  %v2048 = vadd.f32 0.0, %v2047
  %v2049 = vpop.f32.mrf.mxu0
  %2050 = vmatprep.mubr.f32.mxu0 0.0
  %2051 = vmatmul.mubr.f32.gmra.mxu0 %v1539
  %v2052 = vpop.f32.mrf.mxu0
  %v2053 = vadd.f32 0.0, %v2052
  %v2054 = vpop.f32.mrf.mxu0
  %2055 = vdwg.mxu0
  %2057 = vset.pattern.permute.xlu0 0
  %2058 = vperm.xlu0 %2057, %v1608
  %v2059 = vpop.permute.xlu0 %2058
  %2062 = vset.pattern.permute.xlu0 0
  %2063 = vperm.xlu0 %2062, %v1613
  %v2064 = vpop.permute.xlu0 %2063
  %2067 = vset.pattern.permute.xlu0 0
  %2068 = vperm.xlu0 %2067, %v1618
  %v2069 = vpop.permute.xlu0 %2068
  %2072 = vset.pattern.permute.xlu0 0
  %2073 = vperm.xlu0 %2072, %v1623
  %v2074 = vpop.permute.xlu0 %2073
  %2077 = vset.pattern.permute.xlu0 0
  %2078 = vperm.xlu0 %2077, %v1628
  %v2079 = vpop.permute.xlu0 %2078
  %2082 = vset.pattern.permute.xlu0 0
  %2083 = vperm.xlu0 %2082, %v1633
  %v2084 = vpop.permute.xlu0 %2083
  %2087 = vset.pattern.permute.xlu0 0
  %2088 = vperm.xlu0 %2087, %v1638
  %v2089 = vpop.permute.xlu0 %2088
  %2092 = vset.pattern.permute.xlu0 0
  %2093 = vperm.xlu0 %2092, %v1643
  %v2094 = vpop.permute.xlu0 %2093
  %2097 = vset.pattern.permute.xlu0 0
  %2098 = vperm.xlu0 %2097, %v1648
  %v2099 = vpop.permute.xlu0 %2098
  %2102 = vset.pattern.permute.xlu0 0
  %2103 = vperm.xlu0 %2102, %v1653
  %v2104 = vpop.permute.xlu0 %2103
  %2107 = vset.pattern.permute.xlu0 0
  %2108 = vperm.xlu0 %2107, %v1658
  %v2109 = vpop.permute.xlu0 %2108
  %2112 = vset.pattern.permute.xlu0 0
  %2113 = vperm.xlu0 %2112, %v1663
  %v2114 = vpop.permute.xlu0 %2113
  %2117 = vset.pattern.permute.xlu0 0
  %2118 = vperm.xlu0 %2117, %v1668
  %v2119 = vpop.permute.xlu0 %2118
  %2122 = vset.pattern.permute.xlu0 0
  %2123 = vperm.xlu0 %2122, %v1673
  %v2124 = vpop.permute.xlu0 %2123
  %2127 = vset.pattern.permute.xlu0 0
  %2128 = vperm.xlu0 %2127, %v1678
  %v2129 = vpop.permute.xlu0 %2128
  %2132 = vset.pattern.permute.xlu0 0
  %2133 = vperm.xlu0 %2132, %v1683
  %v2134 = vpop.permute.xlu0 %2133
  %2137 = vset.pattern.permute.xlu0 0
  %2138 = vperm.xlu0 %2137, %v1688
  %v2139 = vpop.permute.xlu0 %2138
  %2142 = vset.pattern.permute.xlu0 0
  %2143 = vperm.xlu0 %2142, %v1693
  %v2144 = vpop.permute.xlu0 %2143
  %2147 = vset.pattern.permute.xlu0 0
  %2148 = vperm.xlu0 %2147, %v1698
  %v2149 = vpop.permute.xlu0 %2148
  %2152 = vset.pattern.permute.xlu0 0
  %2153 = vperm.xlu0 %2152, %v1703
  %v2154 = vpop.permute.xlu0 %2153
  %2157 = vset.pattern.permute.xlu0 0
  %2158 = vperm.xlu0 %2157, %v1708
  %v2159 = vpop.permute.xlu0 %2158
  %2162 = vset.pattern.permute.xlu0 0
  %2163 = vperm.xlu0 %2162, %v1713
  %v2164 = vpop.permute.xlu0 %2163
  %2167 = vset.pattern.permute.xlu0 0
  %2168 = vperm.xlu0 %2167, %v1718
  %v2169 = vpop.permute.xlu0 %2168
  %2172 = vset.pattern.permute.xlu0 0
  %2173 = vperm.xlu0 %2172, %v1723
  %v2174 = vpop.permute.xlu0 %2173
  %2177 = vset.pattern.permute.xlu0 0
  %2178 = vperm.xlu0 %2177, %v1728
  %v2179 = vpop.permute.xlu0 %2178
  %2182 = vset.pattern.permute.xlu0 0
  %2183 = vperm.xlu0 %2182, %v1733
  %v2184 = vpop.permute.xlu0 %2183
  %2187 = vset.pattern.permute.xlu0 0
  %2188 = vperm.xlu0 %2187, %v1738
  %v2189 = vpop.permute.xlu0 %2188
  %2192 = vset.pattern.permute.xlu0 0
  %2193 = vperm.xlu0 %2192, %v1743
  %v2194 = vpop.permute.xlu0 %2193
  %2197 = vset.pattern.permute.xlu0 0
  %2198 = vperm.xlu0 %2197, %v1748
  %v2199 = vpop.permute.xlu0 %2198
  %2202 = vset.pattern.permute.xlu0 0
  %2203 = vperm.xlu0 %2202, %v1753
  %v2204 = vpop.permute.xlu0 %2203
  %2207 = vset.pattern.permute.xlu0 0
  %2208 = vperm.xlu0 %2207, %v1758
  %v2209 = vpop.permute.xlu0 %2208
  %2212 = vset.pattern.permute.xlu0 0
  %2213 = vperm.xlu0 %2212, %v1763
  %v2214 = vpop.permute.xlu0 %2213
  %2217 = vset.pattern.permute.xlu0 0
  %2218 = vperm.xlu0 %2217, %v1768
  %v2219 = vpop.permute.xlu0 %2218
  %2222 = vset.pattern.permute.xlu0 0
  %2223 = vperm.xlu0 %2222, %v1773
  %v2224 = vpop.permute.xlu0 %2223
  %2227 = vset.pattern.permute.xlu0 0
  %2228 = vperm.xlu0 %2227, %v1778
  %v2229 = vpop.permute.xlu0 %2228
  %2232 = vset.pattern.permute.xlu0 0
  %2233 = vperm.xlu0 %2232, %v1783
  %v2234 = vpop.permute.xlu0 %2233
  %2237 = vset.pattern.permute.xlu0 0
  %2238 = vperm.xlu0 %2237, %v1788
  %v2239 = vpop.permute.xlu0 %2238
  %2242 = vset.pattern.permute.xlu0 0
  %2243 = vperm.xlu0 %2242, %v1793
  %v2244 = vpop.permute.xlu0 %2243
  %2247 = vset.pattern.permute.xlu0 0
  %2248 = vperm.xlu0 %2247, %v1798
  %v2249 = vpop.permute.xlu0 %2248
  %2252 = vset.pattern.permute.xlu0 0
  %2253 = vperm.xlu0 %2252, %v1803
  %v2254 = vpop.permute.xlu0 %2253
  %2257 = vset.pattern.permute.xlu0 0
  %2258 = vperm.xlu0 %2257, %v1808
  %v2259 = vpop.permute.xlu0 %2258
  %2262 = vset.pattern.permute.xlu0 0
  %2263 = vperm.xlu0 %2262, %v1813
  %v2264 = vpop.permute.xlu0 %2263
  %2267 = vset.pattern.permute.xlu0 0
  %2268 = vperm.xlu0 %2267, %v1818
  %v2269 = vpop.permute.xlu0 %2268
  %2272 = vset.pattern.permute.xlu0 0
  %2273 = vperm.xlu0 %2272, %v1823
  %v2274 = vpop.permute.xlu0 %2273
  %2277 = vset.pattern.permute.xlu0 0
  %2278 = vperm.xlu0 %2277, %v1828
  %v2279 = vpop.permute.xlu0 %2278
  %2282 = vset.pattern.permute.xlu0 0
  %2283 = vperm.xlu0 %2282, %v1833
  %v2284 = vpop.permute.xlu0 %2283
  %2287 = vset.pattern.permute.xlu0 0
  %2288 = vperm.xlu0 %2287, %v1838
  %v2289 = vpop.permute.xlu0 %2288
  %2292 = vset.pattern.permute.xlu0 0
  %2293 = vperm.xlu0 %2292, %v1843
  %v2294 = vpop.permute.xlu0 %2293
  %2297 = vset.pattern.permute.xlu0 0
  %2298 = vperm.xlu0 %2297, %v1848
  %v2299 = vpop.permute.xlu0 %2298
  %2302 = vset.pattern.permute.xlu0 0
  %2303 = vperm.xlu0 %2302, %v1853
  %v2304 = vpop.permute.xlu0 %2303
  %2307 = vset.pattern.permute.xlu0 0
  %2308 = vperm.xlu0 %2307, %v1858
  %v2309 = vpop.permute.xlu0 %2308
  %2312 = vset.pattern.permute.xlu0 0
  %2313 = vperm.xlu0 %2312, %v1863
  %v2314 = vpop.permute.xlu0 %2313
  %2317 = vset.pattern.permute.xlu0 0
  %2318 = vperm.xlu0 %2317, %v1868
  %v2319 = vpop.permute.xlu0 %2318
  %2322 = vset.pattern.permute.xlu0 0
  %2323 = vperm.xlu0 %2322, %v1873
  %v2324 = vpop.permute.xlu0 %2323
  %2327 = vset.pattern.permute.xlu0 0
  %2328 = vperm.xlu0 %2327, %v1878
  %v2329 = vpop.permute.xlu0 %2328
  %2332 = vset.pattern.permute.xlu0 0
  %2333 = vperm.xlu0 %2332, %v1883
  %v2334 = vpop.permute.xlu0 %2333
  %2337 = vset.pattern.permute.xlu0 0
  %2338 = vperm.xlu0 %2337, %v1888
  %v2339 = vpop.permute.xlu0 %2338
  %2342 = vset.pattern.permute.xlu0 0
  %2343 = vperm.xlu0 %2342, %v1893
  %v2344 = vpop.permute.xlu0 %2343
  %2347 = vset.pattern.permute.xlu0 0
  %2348 = vperm.xlu0 %2347, %v1898
  %v2349 = vpop.permute.xlu0 %2348
  %2352 = vset.pattern.permute.xlu0 0
  %2353 = vperm.xlu0 %2352, %v1903
  %v2354 = vpop.permute.xlu0 %2353
  %2357 = vset.pattern.permute.xlu0 0
  %2358 = vperm.xlu0 %2357, %v1908
  %v2359 = vpop.permute.xlu0 %2358
  %2362 = vset.pattern.permute.xlu0 0
  %2363 = vperm.xlu0 %2362, %v1913
  %v2364 = vpop.permute.xlu0 %2363
  %2367 = vset.pattern.permute.xlu0 0
  %2368 = vperm.xlu0 %2367, %v1918
  %v2369 = vpop.permute.xlu0 %2368
  %2372 = vset.pattern.permute.xlu0 0
  %2373 = vperm.xlu0 %2372, %v1923
  %v2374 = vpop.permute.xlu0 %2373
  %2377 = vset.pattern.permute.xlu0 0
  %2378 = vperm.xlu0 %2377, %v1928
  %v2379 = vpop.permute.xlu0 %2378
  %2382 = vset.pattern.permute.xlu0 0
  %2383 = vperm.xlu0 %2382, %v1933
  %v2384 = vpop.permute.xlu0 %2383
  %2387 = vset.pattern.permute.xlu0 0
  %2388 = vperm.xlu0 %2387, %v1938
  %v2389 = vpop.permute.xlu0 %2388
  %2392 = vset.pattern.permute.xlu0 0
  %2393 = vperm.xlu0 %2392, %v1943
  %v2394 = vpop.permute.xlu0 %2393
  %2397 = vset.pattern.permute.xlu0 0
  %2398 = vperm.xlu0 %2397, %v1948
  %v2399 = vpop.permute.xlu0 %2398
  %2402 = vset.pattern.permute.xlu0 0
  %2403 = vperm.xlu0 %2402, %v1953
  %v2404 = vpop.permute.xlu0 %2403
  %2407 = vset.pattern.permute.xlu0 0
  %2408 = vperm.xlu0 %2407, %v1958
  %v2409 = vpop.permute.xlu0 %2408
  %2412 = vset.pattern.permute.xlu0 0
  %2413 = vperm.xlu0 %2412, %v1963
  %v2414 = vpop.permute.xlu0 %2413
  %2417 = vset.pattern.permute.xlu0 0
  %2418 = vperm.xlu0 %2417, %v1968
  %v2419 = vpop.permute.xlu0 %2418
  %2422 = vset.pattern.permute.xlu0 0
  %2423 = vperm.xlu0 %2422, %v1973
  %v2424 = vpop.permute.xlu0 %2423
  %2427 = vset.pattern.permute.xlu0 0
  %2428 = vperm.xlu0 %2427, %v1978
  %v2429 = vpop.permute.xlu0 %2428
  %2432 = vset.pattern.permute.xlu0 0
  %2433 = vperm.xlu0 %2432, %v1983
  %v2434 = vpop.permute.xlu0 %2433
  %2437 = vset.pattern.permute.xlu0 0
  %2438 = vperm.xlu0 %2437, %v1988
  %v2439 = vpop.permute.xlu0 %2438
  %2442 = vset.pattern.permute.xlu0 0
  %2443 = vperm.xlu0 %2442, %v1993
  %v2444 = vpop.permute.xlu0 %2443
  %2447 = vset.pattern.permute.xlu0 0
  %2448 = vperm.xlu0 %2447, %v1998
  %v2449 = vpop.permute.xlu0 %2448
  %2452 = vset.pattern.permute.xlu0 0
  %2453 = vperm.xlu0 %2452, %v2003
  %v2454 = vpop.permute.xlu0 %2453
  %2457 = vset.pattern.permute.xlu0 0
  %2458 = vperm.xlu0 %2457, %v2008
  %v2459 = vpop.permute.xlu0 %2458
  %2462 = vset.pattern.permute.xlu0 0
  %2463 = vperm.xlu0 %2462, %v2013
  %v2464 = vpop.permute.xlu0 %2463
  %2467 = vset.pattern.permute.xlu0 0
  %2468 = vperm.xlu0 %2467, %v2018
  %v2469 = vpop.permute.xlu0 %2468
  %2472 = vset.pattern.permute.xlu0 0
  %2473 = vperm.xlu0 %2472, %v2023
  %v2474 = vpop.permute.xlu0 %2473
  %2477 = vset.pattern.permute.xlu0 0
  %2478 = vperm.xlu0 %2477, %v2028
  %v2479 = vpop.permute.xlu0 %2478
  %2482 = vset.pattern.permute.xlu0 0
  %2483 = vperm.xlu0 %2482, %v2033
  %v2484 = vpop.permute.xlu0 %2483
  %2487 = vset.pattern.permute.xlu0 0
  %2488 = vperm.xlu0 %2487, %v2038
  %v2489 = vpop.permute.xlu0 %2488
  %2492 = vset.pattern.permute.xlu0 0
  %2493 = vperm.xlu0 %2492, %v2043
  %v2494 = vpop.permute.xlu0 %2493
  %2497 = vset.pattern.permute.xlu0 0
  %2498 = vperm.xlu0 %2497, %v2048
  %v2499 = vpop.permute.xlu0 %2498
  %2502 = vset.pattern.permute.xlu0 0
  %2503 = vperm.xlu0 %2502, %v2053
  %v2504 = vpop.permute.xlu0 %2503
  %v2507 = vsel %vm1270, %v1180, 0
  %v2510 = vsel %vm1270, %v1181, 0
  %v2513 = vsel %vm1270, %v1182, 0
  %v2516 = vsel %vm1270, %v1183, 0
  %v2519 = vsel %vm1270, %v1184, 0
  %v2522 = vsel %vm1270, %v1185, 0
  %v2525 = vsel %vm1270, %v1186, 0
  %v2528 = vsel %vm1270, %v1187, 0
  %v2531 = vsel %vm1270, %v1188, 0
  %v2534 = vsel %vm1270, %v1189, 0
  %v2537 = vsel %vm1270, %v1190, 0
  %v2540 = vsel %vm1270, %v1191, 0
  %v2543 = vsel %vm1270, %v1192, 0
  %v2546 = vsel %vm1270, %v1193, 0
  %v2549 = vsel %vm1270, %v1194, 0
  %v2552 = vsel %vm1270, %v1195, 0
  %v2555 = vsel %vm1270, %v1196, 0
  %v2558 = vsel %vm1270, %v1197, 0
  %v2561 = vsel %vm1270, %v1198, 0
  %v2564 = vsel %vm1270, %v1199, 0
  %v2567 = vsel %vm1270, %v1200, 0
  %v2570 = vsel %vm1270, %v1201, 0
  %v2573 = vsel %vm1270, %v1202, 0
  %v2576 = vsel %vm1270, %v1203, 0
  %v2579 = vsel %vm1270, %v1204, 0
  %v2582 = vsel %vm1270, %v1205, 0
  %v2585 = vsel %vm1270, %v1206, 0
  %v2588 = vsel %vm1270, %v1207, 0
  %v2591 = vsel %vm1270, %v1208, 0
  %v2594 = vsel %vm1270, %v1209, 0
  %v2597 = vsel %vm1270, %v1210, 0
  %v2600 = vsel %vm1270, %v1211, 0
  %v2603 = vsel %vm1270, %v1212, 0
  %v2606 = vsel %vm1270, %v1213, 0
  %v2609 = vsel %vm1270, %v1214, 0
  %v2612 = vsel %vm1270, %v1215, 0
  %v2615 = vsel %vm1270, %v1216, 0
  %v2618 = vsel %vm1270, %v1217, 0
  %v2621 = vsel %vm1270, %v1218, 0
  %v2624 = vsel %vm1270, %v1219, 0
  %v2627 = vsel %vm1270, %v1220, 0
  %v2630 = vsel %vm1270, %v1221, 0
  %v2633 = vsel %vm1270, %v1222, 0
  %v2636 = vsel %vm1270, %v1223, 0
  %v2639 = vsel %vm1270, %v1224, 0
  %v2642 = vsel %vm1270, %v1225, 0
  %v2645 = vsel %vm1270, %v1226, 0
  %v2648 = vsel %vm1270, %v1227, 0
  %v2651 = vsel %vm1270, %v1228, 0
  %v2654 = vsel %vm1270, %v1229, 0
  %v2657 = vsel %vm1270, %v1230, 0
  %v2660 = vsel %vm1270, %v1231, 0
  %v2663 = vsel %vm1270, %v1232, 0
  %v2666 = vsel %vm1270, %v1233, 0
  %v2669 = vsel %vm1270, %v1234, 0
  %v2672 = vsel %vm1270, %v1235, 0
  %v2675 = vsel %vm1270, %v1236, 0
  %v2678 = vsel %vm1270, %v1237, 0
  %v2681 = vsel %vm1270, %v1238, 0
  %v2684 = vsel %vm1270, %v1239, 0
  %v2687 = vsel %vm1270, %v1240, 0
  %v2690 = vsel %vm1270, %v1241, 0
  %v2693 = vsel %vm1270, %v1242, 0
  %v2696 = vsel %vm1270, %v1243, 0
  %v2699 = vsel %vm1270, %v1244, 0
  %v2702 = vsel %vm1270, %v1245, 0
  %v2705 = vsel %vm1270, %v1246, 0
  %v2708 = vsel %vm1270, %v1247, 0
  %v2711 = vsel %vm1270, %v1248, 0
  %v2714 = vsel %vm1270, %v1249, 0
  %v2717 = vsel %vm1270, %v1250, 0
  %v2720 = vsel %vm1270, %v1251, 0
  %v2723 = vsel %vm1270, %v1252, 0
  %v2726 = vsel %vm1270, %v1253, 0
  %v2729 = vsel %vm1270, %v1254, 0
  %v2732 = vsel %vm1270, %v1255, 0
  %v2735 = vsel %vm1270, %v1256, 0
  %v2738 = vsel %vm1270, %v1257, 0
  %v2741 = vsel %vm1270, %v1258, 0
  %v2744 = vsel %vm1270, %v1259, 0
  %v2747 = vsel %vm1270, %v1260, 0
  %v2750 = vsel %vm1270, %v1261, 0
  %v2753 = vsel %vm1270, %v1262, 0
  %v2756 = vsel %vm1270, %v1263, 0
  %v2759 = vsel %vm1270, %v1264, 0
  %v2762 = vsel %vm1270, %v1265, 0
  %v2765 = vsel %vm1270, %v1266, 0
  %v2768 = vsel %vm1270, %v1267, 0
  %v2771 = vsel %vm1270, %v1268, 0
  %v2774 = vsel %vm1270, %v1269, 0
  %2776 = vmatprep.subr.mxu0 0.0
  %2777 = vmatpush1.msra.mxu0 0.0
  %2778 = vmatprep.subr.mxu0 %v736
  %2779 = vmatpush1.msra.mxu0 %v734
  %2780 = vmatprep.subr.mxu0 %v730
  %2781 = vmatpush1.msra.mxu0 %v728
  %2782 = vmatprep.subr.mxu0 %v724
  %2783 = vmatpush1.msra.mxu0 %v722
  %2784 = vmatprep.subr.mxu0 %v718
  %2785 = vmatpush1.msra.mxu0 %v716
  %2786 = vmatprep.subr.mxu0 %v712
  %2787 = vmatpush1.msra.mxu0 %v710
  %2788 = vmatprep.subr.mxu0 %v706
  %2789 = vmatpush1.msra.mxu0 %v704
  %2790 = vmatprep.subr.mxu0 %v700
  %2791 = vmatpush1.msra.mxu0 %v698
  %2792 = vmatprep.subr.mxu0 %v694
  %2793 = vmatpush1.msra.mxu0 %v692
  %2794 = vmatprep.subr.mxu0 %v688
  %2795 = vmatpush1.msra.mxu0 %v686
  %2796 = vmatprep.subr.mxu0 %v682
  %2797 = vmatpush1.msra.mxu0 %v680
  %2798 = vmatprep.subr.mxu0 %v676
  %2799 = vmatpush1.msra.mxu0 %v674
  %2800 = vmatprep.subr.mxu0 %v670
  %2801 = vmatpush1.msra.mxu0 %v668
  %2802 = vmatprep.subr.mxu0 %v664
  %2803 = vmatpush1.msra.mxu0 %v662
  %2804 = vmatprep.subr.mxu0 %v658
  %2805 = vmatpush1.msra.mxu0 %v656
  %2806 = vmatprep.subr.mxu0 %v652
  %2807 = vmatpush1.msra.mxu0 %v650
  %2808 = vmatprep.subr.mxu0 0.0
  %2809 = vmatpush2.msra.mxu0 0.0
  %2810 = vmatprep.subr.mxu0 0.0
  %2811 = vmatpush2.msra.mxu0 0.0
  %2812 = vmatprep.subr.mxu0 0.0
  %2813 = vmatpush2.msra.mxu0 0.0
  %2814 = vmatprep.subr.mxu0 0.0
  %2815 = vmatpush2.msra.mxu0 0.0
  %2816 = vmatprep.subr.mxu0 0.0
  %2817 = vmatpush2.msra.mxu0 0.0
  %2818 = vmatprep.subr.mxu0 0.0
  %2819 = vmatpush2.msra.mxu0 0.0
  %2820 = vmatprep.subr.mxu0 0.0
  %2821 = vmatpush2.msra.mxu0 0.0
  %2822 = vmatprep.subr.mxu0 0.0
  %2823 = vmatpush2.msra.mxu0 0.0
  %2824 = vmatprep.subr.mxu0 0.0
  %2825 = vmatpush2.msra.mxu0 0.0
  %2826 = vmatprep.subr.mxu0 0.0
  %2827 = vmatpush2.msra.mxu0 0.0
  %2828 = vmatprep.subr.mxu0 0.0
  %2829 = vmatpush2.msra.mxu0 0.0
  %2830 = vmatprep.subr.mxu0 0.0
  %2831 = vmatpush2.msra.mxu0 0.0
  %2832 = vmatprep.subr.mxu0 0.0
  %2833 = vmatpush2.msra.mxu0 0.0
  %2834 = vmatprep.subr.mxu0 0.0
  %2835 = vmatpush2.msra.mxu0 0.0
  %2836 = vmatprep.subr.mxu0 0.0
  %2837 = vmatpush2.msra.mxu0 0.0
  %2838 = vmatprep.subr.mxu0 0.0
  %2839 = vmatpush2.msra.mxu0 0.0
  %2840 = vmatprep.mubr.f32.mxu0 0.0
  %2841 = vmatmul.mubr.f32.gmra.mxu0 %v2507
  %v2842 = vpop.f32.mrf.mxu0
  %v2843 = vadd.f32 %v2059, %v2842
  %v2844 = vpop.f32.mrf.mxu0
  %v2845 = vadd.f32 %v2059, %v2844
  %2846 = vmatprep.mubr.f32.mxu0 0.0
  %2847 = vmatmul.mubr.f32.gmra.mxu0 %v2510
  %v2848 = vpop.f32.mrf.mxu0
  %v2849 = vadd.f32 %v2064, %v2848
  %v2850 = vpop.f32.mrf.mxu0
  %v2851 = vadd.f32 %v2064, %v2850
  %2852 = vmatprep.mubr.f32.mxu0 0.0
  %2853 = vmatmul.mubr.f32.gmra.mxu0 %v2513
  %v2854 = vpop.f32.mrf.mxu0
  %v2855 = vadd.f32 %v2069, %v2854
  %v2856 = vpop.f32.mrf.mxu0
  %v2857 = vadd.f32 %v2069, %v2856
  %2858 = vmatprep.mubr.f32.mxu0 0.0
  %2859 = vmatmul.mubr.f32.gmra.mxu0 %v2516
  %v2860 = vpop.f32.mrf.mxu0
  %v2861 = vadd.f32 %v2074, %v2860
  %v2862 = vpop.f32.mrf.mxu0
  %v2863 = vadd.f32 %v2074, %v2862
  %2864 = vmatprep.mubr.f32.mxu0 0.0
  %2865 = vmatmul.mubr.f32.gmra.mxu0 %v2519
  %v2866 = vpop.f32.mrf.mxu0
  %v2867 = vadd.f32 %v2079, %v2866
  %v2868 = vpop.f32.mrf.mxu0
  %v2869 = vadd.f32 %v2079, %v2868
  %2870 = vmatprep.mubr.f32.mxu0 0.0
  %2871 = vmatmul.mubr.f32.gmra.mxu0 %v2522
  %v2872 = vpop.f32.mrf.mxu0
  %v2873 = vadd.f32 %v2084, %v2872
  %v2874 = vpop.f32.mrf.mxu0
  %v2875 = vadd.f32 %v2084, %v2874
  %2876 = vmatprep.mubr.f32.mxu0 0.0
  %2877 = vmatmul.mubr.f32.gmra.mxu0 %v2525
  %v2878 = vpop.f32.mrf.mxu0
  %v2879 = vadd.f32 %v2089, %v2878
  %v2880 = vpop.f32.mrf.mxu0
  %v2881 = vadd.f32 %v2089, %v2880
  %2882 = vmatprep.mubr.f32.mxu0 0.0
  %2883 = vmatmul.mubr.f32.gmra.mxu0 %v2528
  %v2884 = vpop.f32.mrf.mxu0
  %v2885 = vadd.f32 %v2094, %v2884
  %v2886 = vpop.f32.mrf.mxu0
  %v2887 = vadd.f32 %v2094, %v2886
  %2888 = vmatprep.mubr.f32.mxu0 0.0
  %2889 = vmatmul.mubr.f32.gmra.mxu0 %v2531
  %v2890 = vpop.f32.mrf.mxu0
  %v2891 = vadd.f32 %v2099, %v2890
  %v2892 = vpop.f32.mrf.mxu0
  %v2893 = vadd.f32 %v2099, %v2892
  %2894 = vmatprep.mubr.f32.mxu0 0.0
  %2895 = vmatmul.mubr.f32.gmra.mxu0 %v2534
  %v2896 = vpop.f32.mrf.mxu0
  %v2897 = vadd.f32 %v2104, %v2896
  %v2898 = vpop.f32.mrf.mxu0
  %v2899 = vadd.f32 %v2104, %v2898
  %2900 = vmatprep.mubr.f32.mxu0 0.0
  %2901 = vmatmul.mubr.f32.gmra.mxu0 %v2537
  %v2902 = vpop.f32.mrf.mxu0
  %v2903 = vadd.f32 %v2109, %v2902
  %v2904 = vpop.f32.mrf.mxu0
  %v2905 = vadd.f32 %v2109, %v2904
  %2906 = vmatprep.mubr.f32.mxu0 0.0
  %2907 = vmatmul.mubr.f32.gmra.mxu0 %v2540
  %v2908 = vpop.f32.mrf.mxu0
  %v2909 = vadd.f32 %v2114, %v2908
  %v2910 = vpop.f32.mrf.mxu0
  %v2911 = vadd.f32 %v2114, %v2910
  %2912 = vmatprep.mubr.f32.mxu0 0.0
  %2913 = vmatmul.mubr.f32.gmra.mxu0 %v2543
  %v2914 = vpop.f32.mrf.mxu0
  %v2915 = vadd.f32 %v2119, %v2914
  %v2916 = vpop.f32.mrf.mxu0
  %v2917 = vadd.f32 %v2119, %v2916
  %2918 = vmatprep.mubr.f32.mxu0 0.0
  %2919 = vmatmul.mubr.f32.gmra.mxu0 %v2546
  %v2920 = vpop.f32.mrf.mxu0
  %v2921 = vadd.f32 %v2124, %v2920
  %v2922 = vpop.f32.mrf.mxu0
  %v2923 = vadd.f32 %v2124, %v2922
  %2924 = vmatprep.mubr.f32.mxu0 0.0
  %2925 = vmatmul.mubr.f32.gmra.mxu0 %v2549
  %v2926 = vpop.f32.mrf.mxu0
  %v2927 = vadd.f32 %v2129, %v2926
  %v2928 = vpop.f32.mrf.mxu0
  %v2929 = vadd.f32 %v2129, %v2928
  %2930 = vmatprep.mubr.f32.mxu0 0.0
  %2931 = vmatmul.mubr.f32.gmra.mxu0 %v2552
  %v2932 = vpop.f32.mrf.mxu0
  %v2933 = vadd.f32 %v2134, %v2932
  %v2934 = vpop.f32.mrf.mxu0
  %v2935 = vadd.f32 %v2134, %v2934
  %2936 = vmatprep.mubr.f32.mxu0 0.0
  %2937 = vmatmul.mubr.f32.gmra.mxu0 %v2555
  %v2938 = vpop.f32.mrf.mxu0
  %v2939 = vadd.f32 %v2139, %v2938
  %v2940 = vpop.f32.mrf.mxu0
  %v2941 = vadd.f32 %v2139, %v2940
  %2942 = vmatprep.mubr.f32.mxu0 0.0
  %2943 = vmatmul.mubr.f32.gmra.mxu0 %v2558
  %v2944 = vpop.f32.mrf.mxu0
  %v2945 = vadd.f32 %v2144, %v2944
  %v2946 = vpop.f32.mrf.mxu0
  %v2947 = vadd.f32 %v2144, %v2946
  %2948 = vmatprep.mubr.f32.mxu0 0.0
  %2949 = vmatmul.mubr.f32.gmra.mxu0 %v2561
  %v2950 = vpop.f32.mrf.mxu0
  %v2951 = vadd.f32 %v2149, %v2950
  %v2952 = vpop.f32.mrf.mxu0
  %v2953 = vadd.f32 %v2149, %v2952
  %2954 = vmatprep.mubr.f32.mxu0 0.0
  %2955 = vmatmul.mubr.f32.gmra.mxu0 %v2564
  %v2956 = vpop.f32.mrf.mxu0
  %v2957 = vadd.f32 %v2154, %v2956
  %v2958 = vpop.f32.mrf.mxu0
  %v2959 = vadd.f32 %v2154, %v2958
  %2960 = vmatprep.mubr.f32.mxu0 0.0
  %2961 = vmatmul.mubr.f32.gmra.mxu0 %v2567
  %v2962 = vpop.f32.mrf.mxu0
  %v2963 = vadd.f32 %v2159, %v2962
  %v2964 = vpop.f32.mrf.mxu0
  %v2965 = vadd.f32 %v2159, %v2964
  %2966 = vmatprep.mubr.f32.mxu0 0.0
  %2967 = vmatmul.mubr.f32.gmra.mxu0 %v2570
  %v2968 = vpop.f32.mrf.mxu0
  %v2969 = vadd.f32 %v2164, %v2968
  %v2970 = vpop.f32.mrf.mxu0
  %v2971 = vadd.f32 %v2164, %v2970
  %2972 = vmatprep.mubr.f32.mxu0 0.0
  %2973 = vmatmul.mubr.f32.gmra.mxu0 %v2573
  %v2974 = vpop.f32.mrf.mxu0
  %v2975 = vadd.f32 %v2169, %v2974
  %v2976 = vpop.f32.mrf.mxu0
  %v2977 = vadd.f32 %v2169, %v2976
  %2978 = vmatprep.mubr.f32.mxu0 0.0
  %2979 = vmatmul.mubr.f32.gmra.mxu0 %v2576
  %v2980 = vpop.f32.mrf.mxu0
  %v2981 = vadd.f32 %v2174, %v2980
  %v2982 = vpop.f32.mrf.mxu0
  %v2983 = vadd.f32 %v2174, %v2982
  %2984 = vmatprep.mubr.f32.mxu0 0.0
  %2985 = vmatmul.mubr.f32.gmra.mxu0 %v2579
  %v2986 = vpop.f32.mrf.mxu0
  %v2987 = vadd.f32 %v2179, %v2986
  %v2988 = vpop.f32.mrf.mxu0
  %v2989 = vadd.f32 %v2179, %v2988
  %2990 = vmatprep.mubr.f32.mxu0 0.0
  %2991 = vmatmul.mubr.f32.gmra.mxu0 %v2582
  %v2992 = vpop.f32.mrf.mxu0
  %v2993 = vadd.f32 %v2184, %v2992
  %v2994 = vpop.f32.mrf.mxu0
  %v2995 = vadd.f32 %v2184, %v2994
  %2996 = vmatprep.mubr.f32.mxu0 0.0
  %2997 = vmatmul.mubr.f32.gmra.mxu0 %v2585
  %v2998 = vpop.f32.mrf.mxu0
  %v2999 = vadd.f32 %v2189, %v2998
  %v3000 = vpop.f32.mrf.mxu0
  %v3001 = vadd.f32 %v2189, %v3000
  %3002 = vmatprep.mubr.f32.mxu0 0.0
  %3003 = vmatmul.mubr.f32.gmra.mxu0 %v2588
  %v3004 = vpop.f32.mrf.mxu0
  %v3005 = vadd.f32 %v2194, %v3004
  %v3006 = vpop.f32.mrf.mxu0
  %v3007 = vadd.f32 %v2194, %v3006
  %3008 = vmatprep.mubr.f32.mxu0 0.0
  %3009 = vmatmul.mubr.f32.gmra.mxu0 %v2591
  %v3010 = vpop.f32.mrf.mxu0
  %v3011 = vadd.f32 %v2199, %v3010
  %v3012 = vpop.f32.mrf.mxu0
  %v3013 = vadd.f32 %v2199, %v3012
  %3014 = vmatprep.mubr.f32.mxu0 0.0
  %3015 = vmatmul.mubr.f32.gmra.mxu0 %v2594
  %v3016 = vpop.f32.mrf.mxu0
  %v3017 = vadd.f32 %v2204, %v3016
  %v3018 = vpop.f32.mrf.mxu0
  %v3019 = vadd.f32 %v2204, %v3018
  %3020 = vmatprep.mubr.f32.mxu0 0.0
  %3021 = vmatmul.mubr.f32.gmra.mxu0 %v2597
  %v3022 = vpop.f32.mrf.mxu0
  %v3023 = vadd.f32 %v2209, %v3022
  %v3024 = vpop.f32.mrf.mxu0
  %v3025 = vadd.f32 %v2209, %v3024
  %3026 = vmatprep.mubr.f32.mxu0 0.0
  %3027 = vmatmul.mubr.f32.gmra.mxu0 %v2600
  %v3028 = vpop.f32.mrf.mxu0
  %v3029 = vadd.f32 %v2214, %v3028
  %v3030 = vpop.f32.mrf.mxu0
  %v3031 = vadd.f32 %v2214, %v3030
  %3032 = vmatprep.mubr.f32.mxu0 0.0
  %3033 = vmatmul.mubr.f32.gmra.mxu0 %v2603
  %v3034 = vpop.f32.mrf.mxu0
  %v3035 = vadd.f32 %v2219, %v3034
  %v3036 = vpop.f32.mrf.mxu0
  %v3037 = vadd.f32 %v2219, %v3036
  %3038 = vmatprep.mubr.f32.mxu0 0.0
  %3039 = vmatmul.mubr.f32.gmra.mxu0 %v2606
  %v3040 = vpop.f32.mrf.mxu0
  %v3041 = vadd.f32 %v2224, %v3040
  %v3042 = vpop.f32.mrf.mxu0
  %v3043 = vadd.f32 %v2224, %v3042
  %3044 = vmatprep.mubr.f32.mxu0 0.0
  %3045 = vmatmul.mubr.f32.gmra.mxu0 %v2609
  %v3046 = vpop.f32.mrf.mxu0
  %v3047 = vadd.f32 %v2229, %v3046
  %v3048 = vpop.f32.mrf.mxu0
  %v3049 = vadd.f32 %v2229, %v3048
  %3050 = vmatprep.mubr.f32.mxu0 0.0
  %3051 = vmatmul.mubr.f32.gmra.mxu0 %v2612
  %v3052 = vpop.f32.mrf.mxu0
  %v3053 = vadd.f32 %v2234, %v3052
  %v3054 = vpop.f32.mrf.mxu0
  %v3055 = vadd.f32 %v2234, %v3054
  %3056 = vmatprep.mubr.f32.mxu0 0.0
  %3057 = vmatmul.mubr.f32.gmra.mxu0 %v2615
  %v3058 = vpop.f32.mrf.mxu0
  %v3059 = vadd.f32 %v2239, %v3058
  %v3060 = vpop.f32.mrf.mxu0
  %v3061 = vadd.f32 %v2239, %v3060
  %3062 = vmatprep.mubr.f32.mxu0 0.0
  %3063 = vmatmul.mubr.f32.gmra.mxu0 %v2618
  %v3064 = vpop.f32.mrf.mxu0
  %v3065 = vadd.f32 %v2244, %v3064
  %v3066 = vpop.f32.mrf.mxu0
  %v3067 = vadd.f32 %v2244, %v3066
  %3068 = vmatprep.mubr.f32.mxu0 0.0
  %3069 = vmatmul.mubr.f32.gmra.mxu0 %v2621
  %v3070 = vpop.f32.mrf.mxu0
  %v3071 = vadd.f32 %v2249, %v3070
  %v3072 = vpop.f32.mrf.mxu0
  %v3073 = vadd.f32 %v2249, %v3072
  %3074 = vmatprep.mubr.f32.mxu0 0.0
  %3075 = vmatmul.mubr.f32.gmra.mxu0 %v2624
  %v3076 = vpop.f32.mrf.mxu0
  %v3077 = vadd.f32 %v2254, %v3076
  %v3078 = vpop.f32.mrf.mxu0
  %v3079 = vadd.f32 %v2254, %v3078
  %3080 = vmatprep.mubr.f32.mxu0 0.0
  %3081 = vmatmul.mubr.f32.gmra.mxu0 %v2627
  %v3082 = vpop.f32.mrf.mxu0
  %v3083 = vadd.f32 %v2259, %v3082
  %v3084 = vpop.f32.mrf.mxu0
  %v3085 = vadd.f32 %v2259, %v3084
  %3086 = vmatprep.mubr.f32.mxu0 0.0
  %3087 = vmatmul.mubr.f32.gmra.mxu0 %v2630
  %v3088 = vpop.f32.mrf.mxu0
  %v3089 = vadd.f32 %v2264, %v3088
  %v3090 = vpop.f32.mrf.mxu0
  %v3091 = vadd.f32 %v2264, %v3090
  %3092 = vmatprep.mubr.f32.mxu0 0.0
  %3093 = vmatmul.mubr.f32.gmra.mxu0 %v2633
  %v3094 = vpop.f32.mrf.mxu0
  %v3095 = vadd.f32 %v2269, %v3094
  %v3096 = vpop.f32.mrf.mxu0
  %v3097 = vadd.f32 %v2269, %v3096
  %3098 = vmatprep.mubr.f32.mxu0 0.0
  %3099 = vmatmul.mubr.f32.gmra.mxu0 %v2636
  %v3100 = vpop.f32.mrf.mxu0
  %v3101 = vadd.f32 %v2274, %v3100
  %v3102 = vpop.f32.mrf.mxu0
  %v3103 = vadd.f32 %v2274, %v3102
  %3104 = vmatprep.mubr.f32.mxu0 0.0
  %3105 = vmatmul.mubr.f32.gmra.mxu0 %v2639
  %v3106 = vpop.f32.mrf.mxu0
  %v3107 = vadd.f32 %v2279, %v3106
  %v3108 = vpop.f32.mrf.mxu0
  %v3109 = vadd.f32 %v2279, %v3108
  %3110 = vmatprep.mubr.f32.mxu0 0.0
  %3111 = vmatmul.mubr.f32.gmra.mxu0 %v2642
  %v3112 = vpop.f32.mrf.mxu0
  %v3113 = vadd.f32 %v2284, %v3112
  %v3114 = vpop.f32.mrf.mxu0
  %v3115 = vadd.f32 %v2284, %v3114
  %3116 = vmatprep.mubr.f32.mxu0 0.0
  %3117 = vmatmul.mubr.f32.gmra.mxu0 %v2645
  %v3118 = vpop.f32.mrf.mxu0
  %v3119 = vadd.f32 %v2289, %v3118
  %v3120 = vpop.f32.mrf.mxu0
  %v3121 = vadd.f32 %v2289, %v3120
  %3122 = vmatprep.mubr.f32.mxu0 0.0
  %3123 = vmatmul.mubr.f32.gmra.mxu0 %v2648
  %v3124 = vpop.f32.mrf.mxu0
  %v3125 = vadd.f32 %v2294, %v3124
  %v3126 = vpop.f32.mrf.mxu0
  %v3127 = vadd.f32 %v2294, %v3126
  %3128 = vmatprep.mubr.f32.mxu0 0.0
  %3129 = vmatmul.mubr.f32.gmra.mxu0 %v2651
  %v3130 = vpop.f32.mrf.mxu0
  %v3131 = vadd.f32 %v2299, %v3130
  %v3132 = vpop.f32.mrf.mxu0
  %v3133 = vadd.f32 %v2299, %v3132
  %3134 = vmatprep.mubr.f32.mxu0 0.0
  %3135 = vmatmul.mubr.f32.gmra.mxu0 %v2654
  %v3136 = vpop.f32.mrf.mxu0
  %v3137 = vadd.f32 %v2304, %v3136
  %v3138 = vpop.f32.mrf.mxu0
  %v3139 = vadd.f32 %v2304, %v3138
  %3140 = vmatprep.mubr.f32.mxu0 0.0
  %3141 = vmatmul.mubr.f32.gmra.mxu0 %v2657
  %v3142 = vpop.f32.mrf.mxu0
  %v3143 = vadd.f32 %v2309, %v3142
  %v3144 = vpop.f32.mrf.mxu0
  %v3145 = vadd.f32 %v2309, %v3144
  %3146 = vmatprep.mubr.f32.mxu0 0.0
  %3147 = vmatmul.mubr.f32.gmra.mxu0 %v2660
  %v3148 = vpop.f32.mrf.mxu0
  %v3149 = vadd.f32 %v2314, %v3148
  %v3150 = vpop.f32.mrf.mxu0
  %v3151 = vadd.f32 %v2314, %v3150
  %3152 = vmatprep.mubr.f32.mxu0 0.0
  %3153 = vmatmul.mubr.f32.gmra.mxu0 %v2663
  %v3154 = vpop.f32.mrf.mxu0
  %v3155 = vadd.f32 %v2319, %v3154
  %v3156 = vpop.f32.mrf.mxu0
  %v3157 = vadd.f32 %v2319, %v3156
  %3158 = vmatprep.mubr.f32.mxu0 0.0
  %3159 = vmatmul.mubr.f32.gmra.mxu0 %v2666
  %v3160 = vpop.f32.mrf.mxu0
  %v3161 = vadd.f32 %v2324, %v3160
  %v3162 = vpop.f32.mrf.mxu0
  %v3163 = vadd.f32 %v2324, %v3162
  %3164 = vmatprep.mubr.f32.mxu0 0.0
  %3165 = vmatmul.mubr.f32.gmra.mxu0 %v2669
  %v3166 = vpop.f32.mrf.mxu0
  %v3167 = vadd.f32 %v2329, %v3166
  %v3168 = vpop.f32.mrf.mxu0
  %v3169 = vadd.f32 %v2329, %v3168
  %3170 = vmatprep.mubr.f32.mxu0 0.0
  %3171 = vmatmul.mubr.f32.gmra.mxu0 %v2672
  %v3172 = vpop.f32.mrf.mxu0
  %v3173 = vadd.f32 %v2334, %v3172
  %v3174 = vpop.f32.mrf.mxu0
  %v3175 = vadd.f32 %v2334, %v3174
  %3176 = vmatprep.mubr.f32.mxu0 0.0
  %3177 = vmatmul.mubr.f32.gmra.mxu0 %v2675
  %v3178 = vpop.f32.mrf.mxu0
  %v3179 = vadd.f32 %v2339, %v3178
  %v3180 = vpop.f32.mrf.mxu0
  %v3181 = vadd.f32 %v2339, %v3180
  %3182 = vmatprep.mubr.f32.mxu0 0.0
  %3183 = vmatmul.mubr.f32.gmra.mxu0 %v2678
  %v3184 = vpop.f32.mrf.mxu0
  %v3185 = vadd.f32 %v2344, %v3184
  %v3186 = vpop.f32.mrf.mxu0
  %v3187 = vadd.f32 %v2344, %v3186
  %3188 = vmatprep.mubr.f32.mxu0 0.0
  %3189 = vmatmul.mubr.f32.gmra.mxu0 %v2681
  %v3190 = vpop.f32.mrf.mxu0
  %v3191 = vadd.f32 %v2349, %v3190
  %v3192 = vpop.f32.mrf.mxu0
  %v3193 = vadd.f32 %v2349, %v3192
  %3194 = vmatprep.mubr.f32.mxu0 0.0
  %3195 = vmatmul.mubr.f32.gmra.mxu0 %v2684
  %v3196 = vpop.f32.mrf.mxu0
  %v3197 = vadd.f32 %v2354, %v3196
  %v3198 = vpop.f32.mrf.mxu0
  %v3199 = vadd.f32 %v2354, %v3198
  %3200 = vmatprep.mubr.f32.mxu0 0.0
  %3201 = vmatmul.mubr.f32.gmra.mxu0 %v2687
  %v3202 = vpop.f32.mrf.mxu0
  %v3203 = vadd.f32 %v2359, %v3202
  %v3204 = vpop.f32.mrf.mxu0
  %v3205 = vadd.f32 %v2359, %v3204
  %3206 = vmatprep.mubr.f32.mxu0 0.0
  %3207 = vmatmul.mubr.f32.gmra.mxu0 %v2690
  %v3208 = vpop.f32.mrf.mxu0
  %v3209 = vadd.f32 %v2364, %v3208
  %v3210 = vpop.f32.mrf.mxu0
  %v3211 = vadd.f32 %v2364, %v3210
  %3212 = vmatprep.mubr.f32.mxu0 0.0
  %3213 = vmatmul.mubr.f32.gmra.mxu0 %v2693
  %v3214 = vpop.f32.mrf.mxu0
  %v3215 = vadd.f32 %v2369, %v3214
  %v3216 = vpop.f32.mrf.mxu0
  %v3217 = vadd.f32 %v2369, %v3216
  %3218 = vmatprep.mubr.f32.mxu0 0.0
  %3219 = vmatmul.mubr.f32.gmra.mxu0 %v2696
  %v3220 = vpop.f32.mrf.mxu0
  %v3221 = vadd.f32 %v2374, %v3220
  %v3222 = vpop.f32.mrf.mxu0
  %v3223 = vadd.f32 %v2374, %v3222
  %3224 = vmatprep.mubr.f32.mxu0 0.0
  %3225 = vmatmul.mubr.f32.gmra.mxu0 %v2699
  %v3226 = vpop.f32.mrf.mxu0
  %v3227 = vadd.f32 %v2379, %v3226
  %v3228 = vpop.f32.mrf.mxu0
  %v3229 = vadd.f32 %v2379, %v3228
  %3230 = vmatprep.mubr.f32.mxu0 0.0
  %3231 = vmatmul.mubr.f32.gmra.mxu0 %v2702
  %v3232 = vpop.f32.mrf.mxu0
  %v3233 = vadd.f32 %v2384, %v3232
  %v3234 = vpop.f32.mrf.mxu0
  %v3235 = vadd.f32 %v2384, %v3234
  %3236 = vmatprep.mubr.f32.mxu0 0.0
  %3237 = vmatmul.mubr.f32.gmra.mxu0 %v2705
  %v3238 = vpop.f32.mrf.mxu0
  %v3239 = vadd.f32 %v2389, %v3238
  %v3240 = vpop.f32.mrf.mxu0
  %v3241 = vadd.f32 %v2389, %v3240
  %3242 = vmatprep.mubr.f32.mxu0 0.0
  %3243 = vmatmul.mubr.f32.gmra.mxu0 %v2708
  %v3244 = vpop.f32.mrf.mxu0
  %v3245 = vadd.f32 %v2394, %v3244
  %v3246 = vpop.f32.mrf.mxu0
  %v3247 = vadd.f32 %v2394, %v3246
  %3248 = vmatprep.mubr.f32.mxu0 0.0
  %3249 = vmatmul.mubr.f32.gmra.mxu0 %v2711
  %v3250 = vpop.f32.mrf.mxu0
  %v3251 = vadd.f32 %v2399, %v3250
  %v3252 = vpop.f32.mrf.mxu0
  %v3253 = vadd.f32 %v2399, %v3252
  %3254 = vmatprep.mubr.f32.mxu0 0.0
  %3255 = vmatmul.mubr.f32.gmra.mxu0 %v2714
  %v3256 = vpop.f32.mrf.mxu0
  %v3257 = vadd.f32 %v2404, %v3256
  %v3258 = vpop.f32.mrf.mxu0
  %v3259 = vadd.f32 %v2404, %v3258
  %3260 = vmatprep.mubr.f32.mxu0 0.0
  %3261 = vmatmul.mubr.f32.gmra.mxu0 %v2717
  %v3262 = vpop.f32.mrf.mxu0
  %v3263 = vadd.f32 %v2409, %v3262
  %v3264 = vpop.f32.mrf.mxu0
  %v3265 = vadd.f32 %v2409, %v3264
  %3266 = vmatprep.mubr.f32.mxu0 0.0
  %3267 = vmatmul.mubr.f32.gmra.mxu0 %v2720
  %v3268 = vpop.f32.mrf.mxu0
  %v3269 = vadd.f32 %v2414, %v3268
  %v3270 = vpop.f32.mrf.mxu0
  %v3271 = vadd.f32 %v2414, %v3270
  %3272 = vmatprep.mubr.f32.mxu0 0.0
  %3273 = vmatmul.mubr.f32.gmra.mxu0 %v2723
  %v3274 = vpop.f32.mrf.mxu0
  %v3275 = vadd.f32 %v2419, %v3274
  %v3276 = vpop.f32.mrf.mxu0
  %v3277 = vadd.f32 %v2419, %v3276
  %3278 = vmatprep.mubr.f32.mxu0 0.0
  %3279 = vmatmul.mubr.f32.gmra.mxu0 %v2726
  %v3280 = vpop.f32.mrf.mxu0
  %v3281 = vadd.f32 %v2424, %v3280
  %v3282 = vpop.f32.mrf.mxu0
  %v3283 = vadd.f32 %v2424, %v3282
  %3284 = vmatprep.mubr.f32.mxu0 0.0
  %3285 = vmatmul.mubr.f32.gmra.mxu0 %v2729
  %v3286 = vpop.f32.mrf.mxu0
  %v3287 = vadd.f32 %v2429, %v3286
  %v3288 = vpop.f32.mrf.mxu0
  %v3289 = vadd.f32 %v2429, %v3288
  %3290 = vmatprep.mubr.f32.mxu0 0.0
  %3291 = vmatmul.mubr.f32.gmra.mxu0 %v2732
  %v3292 = vpop.f32.mrf.mxu0
  %v3293 = vadd.f32 %v2434, %v3292
  %v3294 = vpop.f32.mrf.mxu0
  %v3295 = vadd.f32 %v2434, %v3294
  %3296 = vmatprep.mubr.f32.mxu0 0.0
  %3297 = vmatmul.mubr.f32.gmra.mxu0 %v2735
  %v3298 = vpop.f32.mrf.mxu0
  %v3299 = vadd.f32 %v2439, %v3298
  %v3300 = vpop.f32.mrf.mxu0
  %v3301 = vadd.f32 %v2439, %v3300
  %3302 = vmatprep.mubr.f32.mxu0 0.0
  %3303 = vmatmul.mubr.f32.gmra.mxu0 %v2738
  %v3304 = vpop.f32.mrf.mxu0
  %v3305 = vadd.f32 %v2444, %v3304
  %v3306 = vpop.f32.mrf.mxu0
  %v3307 = vadd.f32 %v2444, %v3306
  %3308 = vmatprep.mubr.f32.mxu0 0.0
  %3309 = vmatmul.mubr.f32.gmra.mxu0 %v2741
  %v3310 = vpop.f32.mrf.mxu0
  %v3311 = vadd.f32 %v2449, %v3310
  %v3312 = vpop.f32.mrf.mxu0
  %v3313 = vadd.f32 %v2449, %v3312
  %3314 = vmatprep.mubr.f32.mxu0 0.0
  %3315 = vmatmul.mubr.f32.gmra.mxu0 %v2744
  %v3316 = vpop.f32.mrf.mxu0
  %v3317 = vadd.f32 %v2454, %v3316
  %v3318 = vpop.f32.mrf.mxu0
  %v3319 = vadd.f32 %v2454, %v3318
  %3320 = vmatprep.mubr.f32.mxu0 0.0
  %3321 = vmatmul.mubr.f32.gmra.mxu0 %v2747
  %v3322 = vpop.f32.mrf.mxu0
  %v3323 = vadd.f32 %v2459, %v3322
  %v3324 = vpop.f32.mrf.mxu0
  %v3325 = vadd.f32 %v2459, %v3324
  %3326 = vmatprep.mubr.f32.mxu0 0.0
  %3327 = vmatmul.mubr.f32.gmra.mxu0 %v2750
  %v3328 = vpop.f32.mrf.mxu0
  %v3329 = vadd.f32 %v2464, %v3328
  %v3330 = vpop.f32.mrf.mxu0
  %v3331 = vadd.f32 %v2464, %v3330
  %3332 = vmatprep.mubr.f32.mxu0 0.0
  %3333 = vmatmul.mubr.f32.gmra.mxu0 %v2753
  %v3334 = vpop.f32.mrf.mxu0
  %v3335 = vadd.f32 %v2469, %v3334
  %v3336 = vpop.f32.mrf.mxu0
  %v3337 = vadd.f32 %v2469, %v3336
  %3338 = vmatprep.mubr.f32.mxu0 0.0
  %3339 = vmatmul.mubr.f32.gmra.mxu0 %v2756
  %v3340 = vpop.f32.mrf.mxu0
  %v3341 = vadd.f32 %v2474, %v3340
  %v3342 = vpop.f32.mrf.mxu0
  %v3343 = vadd.f32 %v2474, %v3342
  %3344 = vmatprep.mubr.f32.mxu0 0.0
  %3345 = vmatmul.mubr.f32.gmra.mxu0 %v2759
  %v3346 = vpop.f32.mrf.mxu0
  %v3347 = vadd.f32 %v2479, %v3346
  %v3348 = vpop.f32.mrf.mxu0
  %v3349 = vadd.f32 %v2479, %v3348
  %3350 = vmatprep.mubr.f32.mxu0 0.0
  %3351 = vmatmul.mubr.f32.gmra.mxu0 %v2762
  %v3352 = vpop.f32.mrf.mxu0
  %v3353 = vadd.f32 %v2484, %v3352
  %v3354 = vpop.f32.mrf.mxu0
  %v3355 = vadd.f32 %v2484, %v3354
  %3356 = vmatprep.mubr.f32.mxu0 0.0
  %3357 = vmatmul.mubr.f32.gmra.mxu0 %v2765
  %v3358 = vpop.f32.mrf.mxu0
  %v3359 = vadd.f32 %v2489, %v3358
  %v3360 = vpop.f32.mrf.mxu0
  %v3361 = vadd.f32 %v2489, %v3360
  %3362 = vmatprep.mubr.f32.mxu0 0.0
  %3363 = vmatmul.mubr.f32.gmra.mxu0 %v2768
  %v3364 = vpop.f32.mrf.mxu0
  %v3365 = vadd.f32 %v2494, %v3364
  %v3366 = vpop.f32.mrf.mxu0
  %v3367 = vadd.f32 %v2494, %v3366
  %3368 = vmatprep.mubr.f32.mxu0 0.0
  %3369 = vmatmul.mubr.f32.gmra.mxu0 %v2771
  %v3370 = vpop.f32.mrf.mxu0
  %v3371 = vadd.f32 %v2499, %v3370
  %v3372 = vpop.f32.mrf.mxu0
  %v3373 = vadd.f32 %v2499, %v3372
  %3374 = vmatprep.mubr.f32.mxu0 0.0
  %3375 = vmatmul.mubr.f32.gmra.mxu0 %v2774
  %v3376 = vpop.f32.mrf.mxu0
  %v3377 = vadd.f32 %v2504, %v3376
  %v3378 = vpop.f32.mrf.mxu0
  %v3379 = vadd.f32 %v2504, %v3378
  %3380 = vdwg.mxu0
  %3381 = vst [vmem:[%s5] sm:$0xff] %v2843
  %3382 = vst.msk [vmem:[%s5 + $0x8] sm:$0xff] %vm738, %v2845
  %3383 = vst [vmem:[%s5 + $0x10] sm:$0xff] %v2849
  %3384 = vst.msk [vmem:[%s5 + $0x18] sm:$0xff] %vm738, %v2851
  %3385 = vst [vmem:[%s5 + $0x20] sm:$0xff] %v2855
  %3386 = vst.msk [vmem:[%s5 + $0x28] sm:$0xff] %vm738, %v2857
  %3387 = vst [vmem:[%s5 + $0x30] sm:$0xff] %v2861
  %3388 = vst.msk [vmem:[%s5 + $0x38] sm:$0xff] %vm738, %v2863
  %3389 = vst [vmem:[%s5 + $0x40] sm:$0xff] %v2867
  %3390 = vst.msk [vmem:[%s5 + $0x48] sm:$0xff] %vm738, %v2869
  %3391 = vst [vmem:[%s5 + $0x50] sm:$0xff] %v2873
  %3392 = vst.msk [vmem:[%s5 + $0x58] sm:$0xff] %vm738, %v2875
  %3393 = vst [vmem:[%s5 + $0x60] sm:$0xff] %v2879
  %3394 = vst.msk [vmem:[%s5 + $0x68] sm:$0xff] %vm738, %v2881
  %3395 = vst [vmem:[%s5 + $0x70] sm:$0xff] %v2885
  %3396 = vst.msk [vmem:[%s5 + $0x78] sm:$0xff] %vm738, %v2887
  %3397 = vst [vmem:[%s5 + $0x80] sm:$0xff] %v2891
  %3398 = vst.msk [vmem:[%s5 + $0x88] sm:$0xff] %vm738, %v2893
  %3399 = vst [vmem:[%s5 + $0x90] sm:$0xff] %v2897
  %3400 = vst.msk [vmem:[%s5 + $0x98] sm:$0xff] %vm738, %v2899
  %3401 = vst [vmem:[%s5 + $0xa0] sm:$0xff] %v2903
  %3402 = vst.msk [vmem:[%s5 + $0xa8] sm:$0xff] %vm738, %v2905
  %3403 = vst [vmem:[%s5 + $0xb0] sm:$0xff] %v2909
  %3404 = vst.msk [vmem:[%s5 + $0xb8] sm:$0xff] %vm738, %v2911
  %3405 = vst [vmem:[%s5 + $0xc0] sm:$0xff] %v2915
  %3406 = vst.msk [vmem:[%s5 + $0xc8] sm:$0xff] %vm738, %v2917
  %3407 = vst [vmem:[%s5 + $0xd0] sm:$0xff] %v2921
  %3408 = vst.msk [vmem:[%s5 + $0xd8] sm:$0xff] %vm738, %v2923
  %3409 = vst [vmem:[%s5 + $0xe0] sm:$0xff] %v2927
  %3410 = vst.msk [vmem:[%s5 + $0xe8] sm:$0xff] %vm738, %v2929
  %3411 = vst [vmem:[%s5 + $0xf0] sm:$0xff] %v2933
  %3412 = vst.msk [vmem:[%s5 + $0xf8] sm:$0xff] %vm738, %v2935
  %3413 = vst [vmem:[%s5 + $0x100] sm:$0xff] %v2939
  %3414 = vst.msk [vmem:[%s5 + $0x108] sm:$0xff] %vm738, %v2941
  %3415 = vst [vmem:[%s5 + $0x110] sm:$0xff] %v2945
  %3416 = vst.msk [vmem:[%s5 + $0x118] sm:$0xff] %vm738, %v2947
  %3417 = vst [vmem:[%s5 + $0x120] sm:$0xff] %v2951
  %3418 = vst.msk [vmem:[%s5 + $0x128] sm:$0xff] %vm738, %v2953
  %3419 = vst [vmem:[%s5 + $0x130] sm:$0xff] %v2957
  %3420 = vst.msk [vmem:[%s5 + $0x138] sm:$0xff] %vm738, %v2959
  %3421 = vst [vmem:[%s5 + $0x140] sm:$0xff] %v2963
  %3422 = vst.msk [vmem:[%s5 + $0x148] sm:$0xff] %vm738, %v2965
  %3423 = vst [vmem:[%s5 + $0x150] sm:$0xff] %v2969
  %3424 = vst.msk [vmem:[%s5 + $0x158] sm:$0xff] %vm738, %v2971
  %3425 = vst [vmem:[%s5 + $0x160] sm:$0xff] %v2975
  %3426 = vst.msk [vmem:[%s5 + $0x168] sm:$0xff] %vm738, %v2977
  %3427 = vst [vmem:[%s5 + $0x170] sm:$0xff] %v2981
  %3428 = vst.msk [vmem:[%s5 + $0x178] sm:$0xff] %vm738, %v2983
  %3429 = vst [vmem:[%s5 + $0x180] sm:$0xff] %v2987
  %3430 = vst.msk [vmem:[%s5 + $0x188] sm:$0xff] %vm738, %v2989
  %3431 = vst [vmem:[%s5 + $0x190] sm:$0xff] %v2993
  %3432 = vst.msk [vmem:[%s5 + $0x198] sm:$0xff] %vm738, %v2995
  %3433 = vst [vmem:[%s5 + $0x1a0] sm:$0xff] %v2999
  %3434 = vst.msk [vmem:[%s5 + $0x1a8] sm:$0xff] %vm738, %v3001
  %3435 = vst [vmem:[%s5 + $0x1b0] sm:$0xff] %v3005
  %3436 = vst.msk [vmem:[%s5 + $0x1b8] sm:$0xff] %vm738, %v3007
  %3437 = vst [vmem:[%s5 + $0x1c0] sm:$0xff] %v3011
  %3438 = vst.msk [vmem:[%s5 + $0x1c8] sm:$0xff] %vm738, %v3013
  %3439 = vst [vmem:[%s5 + $0x1d0] sm:$0xff] %v3017
  %3440 = vst.msk [vmem:[%s5 + $0x1d8] sm:$0xff] %vm738, %v3019
  %3441 = vst [vmem:[%s5 + $0x1e0] sm:$0xff] %v3023
  %3442 = vst.msk [vmem:[%s5 + $0x1e8] sm:$0xff] %vm738, %v3025
  %3443 = vst [vmem:[%s5 + $0x1f0] sm:$0xff] %v3029
  %3444 = vst.msk [vmem:[%s5 + $0x1f8] sm:$0xff] %vm738, %v3031
  %3445 = vst [vmem:[%s5 + $0x200] sm:$0xff] %v3035
  %3446 = vst.msk [vmem:[%s5 + $0x208] sm:$0xff] %vm738, %v3037
  %3447 = vst [vmem:[%s5 + $0x210] sm:$0xff] %v3041
  %3448 = vst.msk [vmem:[%s5 + $0x218] sm:$0xff] %vm738, %v3043
  %3449 = vst [vmem:[%s5 + $0x220] sm:$0xff] %v3047
  %3450 = vst.msk [vmem:[%s5 + $0x228] sm:$0xff] %vm738, %v3049
  %3451 = vst [vmem:[%s5 + $0x230] sm:$0xff] %v3053
  %3452 = vst.msk [vmem:[%s5 + $0x238] sm:$0xff] %vm738, %v3055
  %3453 = vst [vmem:[%s5 + $0x240] sm:$0xff] %v3059
  %3454 = vst.msk [vmem:[%s5 + $0x248] sm:$0xff] %vm738, %v3061
  %3455 = vst [vmem:[%s5 + $0x250] sm:$0xff] %v3065
  %3456 = vst.msk [vmem:[%s5 + $0x258] sm:$0xff] %vm738, %v3067
  %3457 = vst [vmem:[%s5 + $0x260] sm:$0xff] %v3071
  %3458 = vst.msk [vmem:[%s5 + $0x268] sm:$0xff] %vm738, %v3073
  %3459 = vst [vmem:[%s5 + $0x270] sm:$0xff] %v3077
  %3460 = vst.msk [vmem:[%s5 + $0x278] sm:$0xff] %vm738, %v3079
  %3461 = vst [vmem:[%s5 + $0x280] sm:$0xff] %v3083
  %3462 = vst.msk [vmem:[%s5 + $0x288] sm:$0xff] %vm738, %v3085
  %3463 = vst [vmem:[%s5 + $0x290] sm:$0xff] %v3089
  %3464 = vst.msk [vmem:[%s5 + $0x298] sm:$0xff] %vm738, %v3091
  %3465 = vst [vmem:[%s5 + $0x2a0] sm:$0xff] %v3095
  %3466 = vst.msk [vmem:[%s5 + $0x2a8] sm:$0xff] %vm738, %v3097
  %3467 = vst [vmem:[%s5 + $0x2b0] sm:$0xff] %v3101
  %3468 = vst.msk [vmem:[%s5 + $0x2b8] sm:$0xff] %vm738, %v3103
  %3469 = vst [vmem:[%s5 + $0x2c0] sm:$0xff] %v3107
  %3470 = vst.msk [vmem:[%s5 + $0x2c8] sm:$0xff] %vm738, %v3109
  %3471 = vst [vmem:[%s5 + $0x2d0] sm:$0xff] %v3113
  %3472 = vst.msk [vmem:[%s5 + $0x2d8] sm:$0xff] %vm738, %v3115
  %3473 = vst [vmem:[%s5 + $0x2e0] sm:$0xff] %v3119
  %3474 = vst.msk [vmem:[%s5 + $0x2e8] sm:$0xff] %vm738, %v3121
  %3475 = vst [vmem:[%s5 + $0x2f0] sm:$0xff] %v3125
  %3476 = vst.msk [vmem:[%s5 + $0x2f8] sm:$0xff] %vm738, %v3127
  %3477 = vst [vmem:[%s5 + $0x300] sm:$0xff] %v3131
  %3478 = vst.msk [vmem:[%s5 + $0x308] sm:$0xff] %vm738, %v3133
  %3479 = vst [vmem:[%s5 + $0x310] sm:$0xff] %v3137
  %3480 = vst.msk [vmem:[%s5 + $0x318] sm:$0xff] %vm738, %v3139
  %3481 = vst [vmem:[%s5 + $0x320] sm:$0xff] %v3143
  %3482 = vst.msk [vmem:[%s5 + $0x328] sm:$0xff] %vm738, %v3145
  %3483 = vst [vmem:[%s5 + $0x330] sm:$0xff] %v3149
  %3484 = vst.msk [vmem:[%s5 + $0x338] sm:$0xff] %vm738, %v3151
  %3485 = vst [vmem:[%s5 + $0x340] sm:$0xff] %v3155
  %3486 = vst.msk [vmem:[%s5 + $0x348] sm:$0xff] %vm738, %v3157
  %3487 = vst [vmem:[%s5 + $0x350] sm:$0xff] %v3161
  %3488 = vst.msk [vmem:[%s5 + $0x358] sm:$0xff] %vm738, %v3163
  %3489 = vst [vmem:[%s5 + $0x360] sm:$0xff] %v3167
  %3490 = vst.msk [vmem:[%s5 + $0x368] sm:$0xff] %vm738, %v3169
  %3491 = vst [vmem:[%s5 + $0x370] sm:$0xff] %v3173
  %3492 = vst.msk [vmem:[%s5 + $0x378] sm:$0xff] %vm738, %v3175
  %3493 = vst [vmem:[%s5 + $0x380] sm:$0xff] %v3179
  %3494 = vst.msk [vmem:[%s5 + $0x388] sm:$0xff] %vm738, %v3181
  %3495 = vst [vmem:[%s5 + $0x390] sm:$0xff] %v3185
  %3496 = vst.msk [vmem:[%s5 + $0x398] sm:$0xff] %vm738, %v3187
  %3497 = vst [vmem:[%s5 + $0x3a0] sm:$0xff] %v3191
  %3498 = vst.msk [vmem:[%s5 + $0x3a8] sm:$0xff] %vm738, %v3193
  %3499 = vst [vmem:[%s5 + $0x3b0] sm:$0xff] %v3197
  %3500 = vst.msk [vmem:[%s5 + $0x3b8] sm:$0xff] %vm738, %v3199
  %3501 = vst [vmem:[%s5 + $0x3c0] sm:$0xff] %v3203
  %3502 = vst.msk [vmem:[%s5 + $0x3c8] sm:$0xff] %vm738, %v3205
  %3503 = vst [vmem:[%s5 + $0x3d0] sm:$0xff] %v3209
  %3504 = vst.msk [vmem:[%s5 + $0x3d8] sm:$0xff] %vm738, %v3211
  %3505 = vst [vmem:[%s5 + $0x3e0] sm:$0xff] %v3215
  %3506 = vst.msk [vmem:[%s5 + $0x3e8] sm:$0xff] %vm738, %v3217
  %3507 = vst [vmem:[%s5 + $0x3f0] sm:$0xff] %v3221
  %3508 = vst.msk [vmem:[%s5 + $0x3f8] sm:$0xff] %vm738, %v3223
  %3509 = vst [vmem:[%s5 + $0x400] sm:$0xff] %v3227
  %3510 = vst.msk [vmem:[%s5 + $0x408] sm:$0xff] %vm738, %v3229
  %3511 = vst [vmem:[%s5 + $0x410] sm:$0xff] %v3233
  %3512 = vst.msk [vmem:[%s5 + $0x418] sm:$0xff] %vm738, %v3235
  %3513 = vst [vmem:[%s5 + $0x420] sm:$0xff] %v3239
  %3514 = vst.msk [vmem:[%s5 + $0x428] sm:$0xff] %vm738, %v3241
  %3515 = vst [vmem:[%s5 + $0x430] sm:$0xff] %v3245
  %3516 = vst.msk [vmem:[%s5 + $0x438] sm:$0xff] %vm738, %v3247
  %3517 = vst [vmem:[%s5 + $0x440] sm:$0xff] %v3251
  %3518 = vst.msk [vmem:[%s5 + $0x448] sm:$0xff] %vm738, %v3253
  %3519 = vst [vmem:[%s5 + $0x450] sm:$0xff] %v3257
  %3520 = vst.msk [vmem:[%s5 + $0x458] sm:$0xff] %vm738, %v3259
  %3521 = vst [vmem:[%s5 + $0x460] sm:$0xff] %v3263
  %3522 = vst.msk [vmem:[%s5 + $0x468] sm:$0xff] %vm738, %v3265
  %3523 = vst [vmem:[%s5 + $0x470] sm:$0xff] %v3269
  %3524 = vst.msk [vmem:[%s5 + $0x478] sm:$0xff] %vm738, %v3271
  %3525 = vst [vmem:[%s5 + $0x480] sm:$0xff] %v3275
  %3526 = vst.msk [vmem:[%s5 + $0x488] sm:$0xff] %vm738, %v3277
  %3527 = vst [vmem:[%s5 + $0x490] sm:$0xff] %v3281
  %3528 = vst.msk [vmem:[%s5 + $0x498] sm:$0xff] %vm738, %v3283
  %3529 = vst [vmem:[%s5 + $0x4a0] sm:$0xff] %v3287
  %3530 = vst.msk [vmem:[%s5 + $0x4a8] sm:$0xff] %vm738, %v3289
  %3531 = vst [vmem:[%s5 + $0x4b0] sm:$0xff] %v3293
  %3532 = vst.msk [vmem:[%s5 + $0x4b8] sm:$0xff] %vm738, %v3295
  %3533 = vst [vmem:[%s5 + $0x4c0] sm:$0xff] %v3299
  %3534 = vst.msk [vmem:[%s5 + $0x4c8] sm:$0xff] %vm738, %v3301
  %3535 = vst [vmem:[%s5 + $0x4d0] sm:$0xff] %v3305
  %3536 = vst.msk [vmem:[%s5 + $0x4d8] sm:$0xff] %vm738, %v3307
  %3537 = vst [vmem:[%s5 + $0x4e0] sm:$0xff] %v3311
  %3538 = vst.msk [vmem:[%s5 + $0x4e8] sm:$0xff] %vm738, %v3313
  %3539 = vst [vmem:[%s5 + $0x4f0] sm:$0xff] %v3317
  %3540 = vst.msk [vmem:[%s5 + $0x4f8] sm:$0xff] %vm738, %v3319
  %3541 = vst [vmem:[%s5 + $0x500] sm:$0xff] %v3323
  %3542 = vst.msk [vmem:[%s5 + $0x508] sm:$0xff] %vm738, %v3325
  %3543 = vst [vmem:[%s5 + $0x510] sm:$0xff] %v3329
  %3544 = vst.msk [vmem:[%s5 + $0x518] sm:$0xff] %vm738, %v3331
  %3545 = vst [vmem:[%s5 + $0x520] sm:$0xff] %v3335
  %3546 = vst.msk [vmem:[%s5 + $0x528] sm:$0xff] %vm738, %v3337
  %3547 = vst [vmem:[%s5 + $0x530] sm:$0xff] %v3341
  %3548 = vst.msk [vmem:[%s5 + $0x538] sm:$0xff] %vm738, %v3343
  %3549 = vst [vmem:[%s5 + $0x540] sm:$0xff] %v3347
  %3550 = vst.msk [vmem:[%s5 + $0x548] sm:$0xff] %vm738, %v3349
  %3551 = vst [vmem:[%s5 + $0x550] sm:$0xff] %v3353
  %3552 = vst.msk [vmem:[%s5 + $0x558] sm:$0xff] %vm738, %v3355
  %3553 = vst [vmem:[%s5 + $0x560] sm:$0xff] %v3359
  %3554 = vst.msk [vmem:[%s5 + $0x568] sm:$0xff] %vm738, %v3361
  %3555 = vst [vmem:[%s5 + $0x570] sm:$0xff] %v3365
  %3556 = vst.msk [vmem:[%s5 + $0x578] sm:$0xff] %vm738, %v3367
  %3557 = vst [vmem:[%s5 + $0x580] sm:$0xff] %v3371
  %3558 = vst.msk [vmem:[%s5 + $0x588] sm:$0xff] %vm738, %v3373
  %3559 = vst [vmem:[%s5 + $0x590] sm:$0xff] %v3377
  %3560 = vst.msk [vmem:[%s5 + $0x598] sm:$0xff] %vm738, %v3379
  // Predicated region
  $region22: #{tpu_custom_call.1} parent=0 // pred_check
    _
  $region23: #{tpu_custom_call.1} parent=0 // pred_check_branch
    %3562 = sbr.rel (0) target = $region25
  $region24: #{tpu_custom_call.1} parent=0 // pred_region
    _
  $region25: #{tpu_custom_call.1} parent=0 // pred_fallthru
    _
  // Predicated region
  $region26: #{tpu_custom_call.1} parent=0 // pred_check
    _
  $region27: #{tpu_custom_call.1} parent=0 // pred_check_branch
    %3564 = sbr.rel (0) target = $region29
  $region28: #{tpu_custom_call.1} parent=0 // pred_region
    _
  $region29: #{tpu_custom_call.1} parent=0 // pred_fallthru
    _

</llo_original>
